<compile_context>
chip_gen: v5e
topology: v5e:2x2
jax: 0.10.0
libtpu: 0.0.40
codegen_flags: <defaults>
</compile_context>

<pallas_src>
import functools

import jax
import jax.numpy as jnp
from jax.experimental import pallas as pl
from jax.experimental.pallas import tpu as pltpu

LANE = 128
NEG_FILL = -1e30  # finite "minus infinity" baked into padded class columns of b4


def _round_up(x, m):
    return (x + m - 1) // m * m


def _pick_batch_tile(B):
    """MXU-friendly batch tile.  Large B -> 512-row tiles (256-multiple for v6e/v7x),
    with at least 2 grid steps when B > 256 so v7x's two TensorCores both get work."""
    if B <= 256:
        return max(8, _round_up(B, 8))
    if _round_up(B, 512) // 512 >= 2:
        return 512
    return 256


def mlp_logsoftmax_kernel(x_ref,
                          w1_ref, b1_ref,
                          w2_ref, b2_ref,
                          w3_ref, b3_ref,
                          w4_ref, b4_ref,
                          o_ref):
    """Fused 4-layer MLP + log_softmax over the class axis for one batch tile.

    Matmul operands are bf16 (MXU), accumulation and elementwise math are f32.
    Padded class columns already carry a -1e30 bias, so no in-kernel masking is
    needed before the log-sum-exp.
    """
    x = x_ref[...]  # bf16 [T, K0]

    # Layer 1..3: matmul (f32 acc) + bias + ReLU fused with the bf16 re-cast.
    h = jnp.maximum(
        jnp.dot(x, w1_ref[...], preferred_element_type=jnp.float32) + b1_ref[...],
        0.0).astype(jnp.bfloat16)
    h = jnp.maximum(
        jnp.dot(h, w2_ref[...], preferred_element_type=jnp.float32) + b2_ref[...],
        0.0).astype(jnp.bfloat16)
    h = jnp.maximum(
        jnp.dot(h, w3_ref[...], preferred_element_type=jnp.float32) + b3_ref[...],
        0.0).astype(jnp.bfloat16)

    # Layer 4: logits in f32 (padded columns get bias == -1e30 -> exp underflows to 0).
    logits = jnp.dot(h, w4_ref[...], preferred_element_type=jnp.float32) + b4_ref[...]

    # Numerically stable log_softmax along dim=1 (class axis).
    m = jnp.max(logits, axis=-1, keepdims=True)
    z = logits - m
    lse = jnp.log(jnp.sum(jnp.exp(z), axis=-1, keepdims=True))
    o_ref[...] = (z - lse).astype(o_ref.dtype)


def _resident_spec(shape, single_buffer):
    """Full-array block, same block index every grid step (stays resident in VMEM)."""
    nd = len(shape)
    index_map = lambda i, _nd=nd: (0,) * _nd
    if single_buffer:
        # Constant blocks never re-DMA across grid steps -> single-buffer them.
        return pl.BlockSpec(shape, index_map, pipeline_mode=pl.Buffered(1))
    return pl.BlockSpec(shape, index_map)


def nn_arch_forward(x, params, *, batch_tile=None, vmem_limit_bytes=None,
                    single_buffer_weights=True):
    """x: [B, n_input] float32.  params: dict of w1..w4 ([in,out]) and b1..b4 ([1,out]).

    Call under jax.jit so the padding / bf16 casts fuse with the surrounding graph.
    """
    B, n_input = x.shape
    w1, b1 = params["w1"], params["b1"]
    w2, b2 = params["w2"], params["b2"]
    w3, b3 = params["w3"], params["b3"]
    w4, b4 = params["w4"], params["b4"]
    df_length = w4.shape[1]

    if batch_tile is None:
        batch_tile = _pick_batch_tile(B)

    # Lane-dense / MXU-aligned padding (all plumbing stays in the wrapper).
    K0 = _round_up(n_input, LANE)          # first-layer K
    C = _round_up(df_length, LANE)         # class axis (lane-dense output)
    Bp = _round_up(B, batch_tile)          # batch padded to the tile

    xp = jnp.pad(x, ((0, Bp - B), (0, K0 - n_input))).astype(jnp.bfloat16)
    w1p = jnp.pad(w1, ((0, K0 - n_input), (0, 0))).astype(jnp.bfloat16)
    w2b = w2.astype(jnp.bfloat16)
    w3b = w3.astype(jnp.bfloat16)
    w4p = jnp.pad(w4, ((0, 0), (0, C - df_length))).astype(jnp.bfloat16)
    b1f = b1.astype(jnp.float32)
    b2f = b2.astype(jnp.float32)
    b3f = b3.astype(jnp.float32)
    # Padded w4 columns are zero, so padded logits == bias; bake the class mask here.
    b4p = jnp.pad(b4.astype(jnp.float32), ((0, 0), (0, C - df_length)),
                  constant_values=NEG_FILL)

    grid = (Bp // batch_tile,)

    compiler_kwargs = dict(dimension_semantics=("parallel",))
    if vmem_limit_bytes is None and batch_tile >= 512:
        # Large tiles: f32 intermediates (tile x 1024 etc.) outgrow v5e's ~16 MiB
        # default scoped VMEM; 48 MiB is safe on every generation (v7x phys = 64 MiB).
        vmem_limit_bytes = 48 * 1024 * 1024
    if vmem_limit_bytes is not None:
        compiler_kwargs["vmem_limit_bytes"] = vmem_limit_bytes

    out_padded = pl.pallas_call(
        mlp_logsoftmax_kernel,
        out_shape=jax.ShapeDtypeStruct((Bp, C), jnp.float32),
        grid_spec=pltpu.PrefetchScalarGridSpec(
            num_scalar_prefetch=0,
            grid=grid,
            in_specs=[
                pl.BlockSpec((batch_tile, K0), lambda i: (i, 0)),     # x tile
                _resident_spec(w1p.shape, single_buffer_weights),
                _resident_spec(b1f.shape, single_buffer_weights),
                _resident_spec(w2b.shape, single_buffer_weights),
                _resident_spec(b2f.shape, single_buffer_weights),
                _resident_spec(w3b.shape, single_buffer_weights),
                _resident_spec(b3f.shape, single_buffer_weights),
                _resident_spec(w4p.shape, single_buffer_weights),
                _resident_spec(b4p.shape, single_buffer_weights),
            ],
            out_specs=pl.BlockSpec((batch_tile, C), lambda i: (i, 0)),
        ),
        compiler_params=pltpu.CompilerParams(**compiler_kwargs),
    )(xp, w1p, b1f, w2b, b2f, w3b, b3f, w4p, b4p)

    # Drop batch and class padding.
    return out_padded[:B, :df_length]


def init_params(key, n_input, df_length):
    """Deterministic init mimicking PyTorch Linear default:
       U(-1/sqrt(fan_in), 1/sqrt(fan_in)) for both weight and bias."""
    dims = [n_input, 1024, 512, 256, df_length]
    params = {}
    for idx in range(4):
        fan_in, fan_out = dims[idx], dims[idx + 1]
        key, kw, kb = jax.random.split(key, 3)
        bound = 1.0 / (fan_in ** 0.5)
        params[f"w{idx+1}"] = jax.random.uniform(
            kw, (fan_in, fan_out), jnp.float32, minval=-bound, maxval=bound)
        params[f"b{idx+1}"] = jax.random.uniform(
            kb, (1, fan_out), jnp.float32, minval=-bound, maxval=bound)
    return params


def reference_forward(x, params):
    """Pure-JAX reference using the same bf16-operand / f32-accumulate matmuls.
    (The PyTorch module is fp32 end to end; the bf16 MXU operands are a documented
    TPU-performance deviation shared by kernel and reference.)"""
    def mm(a, w):
        return jnp.dot(a.astype(jnp.bfloat16), w.astype(jnp.bfloat16),
                       preferred_element_type=jnp.float32)
    h = jnp.maximum(mm(x, params["w1"]) + params["b1"], 0.0)
    h = jnp.maximum(mm(h, params["w2"]) + params["b2"], 0.0)
    h = jnp.maximum(mm(h, params["w3"]) + params["b3"], 0.0)
    logits = mm(h, params["w4"]) + params["b4"]
    return jax.nn.log_softmax(logits, axis=1)


def _run(x, params):
    """Run the Pallas forward under jit; fall back to double-buffered weight specs
    if this JAX version lacks single-buffer pipeline_mode support."""
    try:
        return jax.block_until_ready(jax.jit(nn_arch_forward)(x, params))
    except Exception:
        fwd = functools.partial(nn_arch_forward, single_buffer_weights=False)
        return jax.block_until_ready(jax.jit(fwd)(x, params))


def _check(out, ref, B, df_length):
    assert out.shape == (B, df_length)
    assert bool(jnp.all(jnp.isfinite(out))), "non-finite log-probs"
    assert jnp.allclose(out, ref, atol=2e-3, rtol=2e-3), "mismatch vs pure-JAX reference"
    # probabilities must sum to 1 per row
    assert jnp.allclose(jnp.sum(jnp.exp(out), axis=1), 1.0, atol=1e-3)


if __name__ == "__main__":
    key = jax.random.PRNGKey(0)
    # Small synthetic shapes exercising every padding path:
    #   n_input=32    -> padded to K=128
    #   df_length=10  -> padded to 128 classes with -1e30 baked into padded biases
    n_input, df_length = 32, 10
    kx1, kx2, kp = jax.random.split(key, 3)
    params = init_params(kp, n_input, df_length)

    # Case 1: tiny batch (B=8) -> single small batch tile.
    B1 = 8
    x1 = jax.random.normal(kx1, (B1, n_input), jnp.float32)
    out1 = _run(x1, params)
    _check(out1, reference_forward(x1, params), B1, df_length)

    # Case 2: B=272 -> 256-row tiles, 2 grid steps (parallel batch axis) + row padding.
    B2 = 272
    x2 = jax.random.normal(kx2, (B2, n_input), jnp.float32)
    out2 = _run(x2, params)
    _check(out2, reference_forward(x2, params), B2, df_length)

    print("KERNEL_OK")
</pallas_src>

<mosaic_0001>
module attributes {stable_mosaic.version = 11 : i64} {
  func.func @mlp_logsoftmax_kernel(%arg0: i32, %arg1: memref<8x128xbf16, #tpu.memory_space<vmem>>, %arg2: memref<128x1024xbf16, #tpu.memory_space<vmem>>, %arg3: memref<1x1024xf32, #tpu.memory_space<vmem>>, %arg4: memref<1024x512xbf16, #tpu.memory_space<vmem>>, %arg5: memref<1x512xf32, #tpu.memory_space<vmem>>, %arg6: memref<512x256xbf16, #tpu.memory_space<vmem>>, %arg7: memref<1x256xf32, #tpu.memory_space<vmem>>, %arg8: memref<256x128xbf16, #tpu.memory_space<vmem>>, %arg9: memref<1x128xf32, #tpu.memory_space<vmem>>, %arg10: memref<8x128xf32, #tpu.memory_space<vmem>>) attributes {dimension_semantics = [#tpu.dimension_semantics<parallel>], iteration_bounds = array<i64: 1>, scalar_prefetch = 0 : i64, scratch_operands = 0 : i64, tpu.core_type = #tpu.core_type<tc>, window_params = [{transform_indices = @transform_0, window_bounds = array<i64: 8, 128>}, {pipeline_mode = #tpu.pipeline_mode<synchronous>, transform_indices = @transform_1, window_bounds = array<i64: 128, 1024>}, {pipeline_mode = #tpu.pipeline_mode<synchronous>, transform_indices = @transform_2, window_bounds = array<i64: 1, 1024>}, {pipeline_mode = #tpu.pipeline_mode<synchronous>, transform_indices = @transform_3, window_bounds = array<i64: 1024, 512>}, {pipeline_mode = #tpu.pipeline_mode<synchronous>, transform_indices = @transform_4, window_bounds = array<i64: 1, 512>}, {pipeline_mode = #tpu.pipeline_mode<synchronous>, transform_indices = @transform_5, window_bounds = array<i64: 512, 256>}, {pipeline_mode = #tpu.pipeline_mode<synchronous>, transform_indices = @transform_6, window_bounds = array<i64: 1, 256>}, {pipeline_mode = #tpu.pipeline_mode<synchronous>, transform_indices = @transform_7, window_bounds = array<i64: 256, 128>}, {pipeline_mode = #tpu.pipeline_mode<synchronous>, transform_indices = @transform_8, window_bounds = array<i64: 1, 128>}, {transform_indices = @transform_9, window_bounds = array<i64: 8, 128>}]} {
    %c0 = arith.constant 0 : index
    %c0_0 = arith.constant 0 : index
    %0 = vector.load %arg1[%c0, %c0_0] : memref<8x128xbf16, #tpu.memory_space<vmem>>, vector<8x128xbf16>
    %c0_1 = arith.constant 0 : index
    %c0_2 = arith.constant 0 : index
    %1 = vector.load %arg2[%c0_1, %c0_2] : memref<128x1024xbf16, #tpu.memory_space<vmem>>, vector<128x1024xbf16>
    %cst = arith.constant dense<0.000000e+00> : vector<8x1024xf32>
    %2 = tpu.matmul %0, %1, %cst {dimension_numbers = #tpu.dot_dimension_numbers<[1], [0], [0], [1], [0, 0, 1, 1], [], []>} : vector<8x128xbf16>, vector<128x1024xbf16>, vector<8x1024xf32> -> vector<8x1024xf32>
    %c0_3 = arith.constant 0 : index
    %c0_4 = arith.constant 0 : index
    %3 = vector.load %arg3[%c0_3, %c0_4] : memref<1x1024xf32, #tpu.memory_space<vmem>>, vector<1x1024xf32>
    %4 = vector.broadcast %3 : vector<1x1024xf32> to vector<8x1024xf32>
    %5 = arith.addf %2, %4 : vector<8x1024xf32>
    %cst_5 = arith.constant 0.000000e+00 : f32
    %6 = vector.broadcast %cst_5 : f32 to vector<8x1024xf32>
    %7 = arith.maximumf %5, %6 : vector<8x1024xf32>
    %8 = arith.truncf %7 : vector<8x1024xf32> to vector<8x1024xbf16>
    %c0_6 = arith.constant 0 : index
    %c0_7 = arith.constant 0 : index
    %9 = vector.load %arg4[%c0_6, %c0_7] : memref<1024x512xbf16, #tpu.memory_space<vmem>>, vector<1024x512xbf16>
    %cst_8 = arith.constant dense<0.000000e+00> : vector<8x512xf32>
    %10 = tpu.matmul %8, %9, %cst_8 {dimension_numbers = #tpu.dot_dimension_numbers<[1], [0], [0], [1], [0, 0, 1, 1], [], []>} : vector<8x1024xbf16>, vector<1024x512xbf16>, vector<8x512xf32> -> vector<8x512xf32>
    %c0_9 = arith.constant 0 : index
    %c0_10 = arith.constant 0 : index
    %11 = vector.load %arg5[%c0_9, %c0_10] : memref<1x512xf32, #tpu.memory_space<vmem>>, vector<1x512xf32>
    %12 = vector.broadcast %11 : vector<1x512xf32> to vector<8x512xf32>
    %13 = arith.addf %10, %12 : vector<8x512xf32>
    %cst_11 = arith.constant 0.000000e+00 : f32
    %14 = vector.broadcast %cst_11 : f32 to vector<8x512xf32>
    %15 = arith.maximumf %13, %14 : vector<8x512xf32>
    %16 = arith.truncf %15 : vector<8x512xf32> to vector<8x512xbf16>
    %c0_12 = arith.constant 0 : index
    %c0_13 = arith.constant 0 : index
    %17 = vector.load %arg6[%c0_12, %c0_13] : memref<512x256xbf16, #tpu.memory_space<vmem>>, vector<512x256xbf16>
    %cst_14 = arith.constant dense<0.000000e+00> : vector<8x256xf32>
    %18 = tpu.matmul %16, %17, %cst_14 {dimension_numbers = #tpu.dot_dimension_numbers<[1], [0], [0], [1], [0, 0, 1, 1], [], []>} : vector<8x512xbf16>, vector<512x256xbf16>, vector<8x256xf32> -> vector<8x256xf32>
    %c0_15 = arith.constant 0 : index
    %c0_16 = arith.constant 0 : index
    %19 = vector.load %arg7[%c0_15, %c0_16] : memref<1x256xf32, #tpu.memory_space<vmem>>, vector<1x256xf32>
    %20 = vector.broadcast %19 : vector<1x256xf32> to vector<8x256xf32>
    %21 = arith.addf %18, %20 : vector<8x256xf32>
    %cst_17 = arith.constant 0.000000e+00 : f32
    %22 = vector.broadcast %cst_17 : f32 to vector<8x256xf32>
    %23 = arith.maximumf %21, %22 : vector<8x256xf32>
    %24 = arith.truncf %23 : vector<8x256xf32> to vector<8x256xbf16>
    %c0_18 = arith.constant 0 : index
    %c0_19 = arith.constant 0 : index
    %25 = vector.load %arg8[%c0_18, %c0_19] : memref<256x128xbf16, #tpu.memory_space<vmem>>, vector<256x128xbf16>
    %cst_20 = arith.constant dense<0.000000e+00> : vector<8x128xf32>
    %26 = tpu.matmul %24, %25, %cst_20 {dimension_numbers = #tpu.dot_dimension_numbers<[1], [0], [0], [1], [0, 0, 1, 1], [], []>} : vector<8x256xbf16>, vector<256x128xbf16>, vector<8x128xf32> -> vector<8x128xf32>
    %c0_21 = arith.constant 0 : index
    %c0_22 = arith.constant 0 : index
    %27 = vector.load %arg9[%c0_21, %c0_22] : memref<1x128xf32, #tpu.memory_space<vmem>>, vector<1x128xf32>
    %28 = vector.broadcast %27 : vector<1x128xf32> to vector<8x128xf32>
    %29 = arith.addf %26, %28 : vector<8x128xf32>
    %cst_23 = arith.constant dense<0xFF800000> : vector<8xf32>
    %30 = vector.multi_reduction <maximumf>, %29, %cst_23 [1] : vector<8x128xf32> to vector<8xf32>
    %31 = vector.shape_cast %30 : vector<8xf32> to vector<8x1xf32>
    %32 = vector.broadcast %31 : vector<8x1xf32> to vector<8x128xf32>
    %33 = arith.subf %29, %32 : vector<8x128xf32>
    %34 = math.exp %33 : vector<8x128xf32>
    %cst_24 = arith.constant dense<0.000000e+00> : vector<8xf32>
    %35 = vector.multi_reduction <add>, %34, %cst_24 [1] : vector<8x128xf32> to vector<8xf32>
    %36 = vector.shape_cast %35 : vector<8xf32> to vector<8x1xf32>
    %37 = math.log %36 : vector<8x1xf32>
    %38 = vector.broadcast %37 : vector<8x1xf32> to vector<8x128xf32>
    %39 = arith.subf %33, %38 : vector<8x128xf32>
    %c0_25 = arith.constant 0 : index
    %c0_26 = arith.constant 0 : index
    %40 = vector.load %arg10[%c0_25, %c0_26] : memref<8x128xf32, #tpu.memory_space<vmem>>, vector<8x128xf32>
    tpu.vector_store %arg10[%c0_25, %c0_26], %39 {strides = array<i32>} : memref<8x128xf32, #tpu.memory_space<vmem>>, vector<8x128xf32>,
    return
  }
  func.func @transform_0(%arg0: i32) -> (i32, i32) {
    %c0_i32 = arith.constant 0 : i32
    %c0_i32_0 = arith.constant 0 : i32
    return %arg0, %c0_i32 : i32, i32
  }
  func.func @transform_1(%arg0: i32) -> (i32, i32) {
    %c0_i32 = arith.constant 0 : i32
    %c0_i32_0 = arith.constant 0 : i32
    %c0_i32_1 = arith.constant 0 : i32
    return %c0_i32, %c0_i32_0 : i32, i32
  }
  func.func @transform_2(%arg0: i32) -> (i32, i32) {
    %c0_i32 = arith.constant 0 : i32
    %c0_i32_0 = arith.constant 0 : i32
    %c0_i32_1 = arith.constant 0 : i32
    return %c0_i32, %c0_i32_0 : i32, i32
  }
  func.func @transform_3(%arg0: i32) -> (i32, i32) {
    %c0_i32 = arith.constant 0 : i32
    %c0_i32_0 = arith.constant 0 : i32
    %c0_i32_1 = arith.constant 0 : i32
    return %c0_i32, %c0_i32_0 : i32, i32
  }
  func.func @transform_4(%arg0: i32) -> (i32, i32) {
    %c0_i32 = arith.constant 0 : i32
    %c0_i32_0 = arith.constant 0 : i32
    %c0_i32_1 = arith.constant 0 : i32
    return %c0_i32, %c0_i32_0 : i32, i32
  }
  func.func @transform_5(%arg0: i32) -> (i32, i32) {
    %c0_i32 = arith.constant 0 : i32
    %c0_i32_0 = arith.constant 0 : i32
    %c0_i32_1 = arith.constant 0 : i32
    return %c0_i32, %c0_i32_0 : i32, i32
  }
  func.func @transform_6(%arg0: i32) -> (i32, i32) {
    %c0_i32 = arith.constant 0 : i32
    %c0_i32_0 = arith.constant 0 : i32
    %c0_i32_1 = arith.constant 0 : i32
    return %c0_i32, %c0_i32_0 : i32, i32
  }
  func.func @transform_7(%arg0: i32) -> (i32, i32) {
    %c0_i32 = arith.constant 0 : i32
    %c0_i32_0 = arith.constant 0 : i32
    %c0_i32_1 = arith.constant 0 : i32
    return %c0_i32, %c0_i32_0 : i32, i32
  }
  func.func @transform_8(%arg0: i32) -> (i32, i32) {
    %c0_i32 = arith.constant 0 : i32
    %c0_i32_0 = arith.constant 0 : i32
    %c0_i32_1 = arith.constant 0 : i32
    return %c0_i32, %c0_i32_0 : i32, i32
  }
  func.func @transform_9(%arg0: i32) -> (i32, i32) {
    %c0_i32 = arith.constant 0 : i32
    %c0_i32_0 = arith.constant 0 : i32
    return %arg0, %c0_i32 : i32, i32
  }
}

module attributes {stable_mosaic.version = 11 : i64} {
  func.func @mlp_logsoftmax_kernel(%arg0: i32, %arg1: memref<8x128xbf16, #tpu.memory_space<vmem>>, %arg2: memref<128x1024xbf16, #tpu.memory_space<vmem>>, %arg3: memref<1x1024xf32, #tpu.memory_space<vmem>>, %arg4: memref<1024x512xbf16, #tpu.memory_space<vmem>>, %arg5: memref<1x512xf32, #tpu.memory_space<vmem>>, %arg6: memref<512x256xbf16, #tpu.memory_space<vmem>>, %arg7: memref<1x256xf32, #tpu.memory_space<vmem>>, %arg8: memref<256x128xbf16, #tpu.memory_space<vmem>>, %arg9: memref<1x128xf32, #tpu.memory_space<vmem>>, %arg10: memref<8x128xf32, #tpu.memory_space<vmem>>) attributes {dimension_semantics = [#tpu.dimension_semantics<parallel>], iteration_bounds = array<i64: 1>, scalar_prefetch = 0 : i64, scratch_operands = 0 : i64, tpu.core_type = #tpu.core_type<tc>, window_params = [{transform_indices = @transform_0, window_bounds = array<i64: 8, 128>}, {pipeline_mode = #tpu.pipeline_mode<synchronous>, transform_indices = @transform_1, window_bounds = array<i64: 128, 1024>}, {pipeline_mode = #tpu.pipeline_mode<synchronous>, transform_indices = @transform_2, window_bounds = array<i64: 1, 1024>}, {pipeline_mode = #tpu.pipeline_mode<synchronous>, transform_indices = @transform_3, window_bounds = array<i64: 1024, 512>}, {pipeline_mode = #tpu.pipeline_mode<synchronous>, transform_indices = @transform_4, window_bounds = array<i64: 1, 512>}, {pipeline_mode = #tpu.pipeline_mode<synchronous>, transform_indices = @transform_5, window_bounds = array<i64: 512, 256>}, {pipeline_mode = #tpu.pipeline_mode<synchronous>, transform_indices = @transform_6, window_bounds = array<i64: 1, 256>}, {pipeline_mode = #tpu.pipeline_mode<synchronous>, transform_indices = @transform_7, window_bounds = array<i64: 256, 128>}, {pipeline_mode = #tpu.pipeline_mode<synchronous>, transform_indices = @transform_8, window_bounds = array<i64: 1, 128>}, {transform_indices = @transform_9, window_bounds = array<i64: 8, 128>}]} {
    %c0 = arith.constant 0 : index
    %c0_0 = arith.constant 0 : index
    %0 = vector.load %arg1[%c0, %c0_0] : memref<8x128xbf16, #tpu.memory_space<vmem>>, vector<8x128xbf16>
    %c0_1 = arith.constant 0 : index
    %c0_2 = arith.constant 0 : index
    %1 = vector.load %arg2[%c0_1, %c0_2] : memref<128x1024xbf16, #tpu.memory_space<vmem>>, vector<128x1024xbf16>
    %cst = arith.constant dense<0.000000e+00> : vector<8x1024xf32>
    %2 = tpu.matmul %0, %1, %cst {dimension_numbers = #tpu.dot_dimension_numbers<[1], [0], [0], [1], [0, 0, 1, 1], [], []>} : vector<8x128xbf16>, vector<128x1024xbf16>, vector<8x1024xf32> -> vector<8x1024xf32>
    %c0_3 = arith.constant 0 : index
    %c0_4 = arith.constant 0 : index
    %3 = vector.load %arg3[%c0_3, %c0_4] : memref<1x1024xf32, #tpu.memory_space<vmem>>, vector<1x1024xf32>
    %4 = vector.broadcast %3 : vector<1x1024xf32> to vector<8x1024xf32>
    %5 = arith.addf %2, %4 : vector<8x1024xf32>
    %cst_5 = arith.constant 0.000000e+00 : f32
    %6 = vector.broadcast %cst_5 : f32 to vector<8x1024xf32>
    %7 = arith.maximumf %5, %6 : vector<8x1024xf32>
    %8 = arith.truncf %7 : vector<8x1024xf32> to vector<8x1024xbf16>
    %c0_6 = arith.constant 0 : index
    %c0_7 = arith.constant 0 : index
    %9 = vector.load %arg4[%c0_6, %c0_7] : memref<1024x512xbf16, #tpu.memory_space<vmem>>, vector<1024x512xbf16>
    %cst_8 = arith.constant dense<0.000000e+00> : vector<8x512xf32>
    %10 = tpu.matmul %8, %9, %cst_8 {dimension_numbers = #tpu.dot_dimension_numbers<[1], [0], [0], [1], [0, 0, 1, 1], [], []>} : vector<8x1024xbf16>, vector<1024x512xbf16>, vector<8x512xf32> -> vector<8x512xf32>
    %c0_9 = arith.constant 0 : index
    %c0_10 = arith.constant 0 : index
    %11 = vector.load %arg5[%c0_9, %c0_10] : memref<1x512xf32, #tpu.memory_space<vmem>>, vector<1x512xf32>
    %12 = vector.broadcast %11 : vector<1x512xf32> to vector<8x512xf32>
    %13 = arith.addf %10, %12 : vector<8x512xf32>
    %cst_11 = arith.constant 0.000000e+00 : f32
    %14 = vector.broadcast %cst_11 : f32 to vector<8x512xf32>
    %15 = arith.maximumf %13, %14 : vector<8x512xf32>
    %16 = arith.truncf %15 : vector<8x512xf32> to vector<8x512xbf16>
    %c0_12 = arith.constant 0 : index
    %c0_13 = arith.constant 0 : index
    %17 = vector.load %arg6[%c0_12, %c0_13] : memref<512x256xbf16, #tpu.memory_space<vmem>>, vector<512x256xbf16>
    %cst_14 = arith.constant dense<0.000000e+00> : vector<8x256xf32>
    %18 = tpu.matmul %16, %17, %cst_14 {dimension_numbers = #tpu.dot_dimension_numbers<[1], [0], [0], [1], [0, 0, 1, 1], [], []>} : vector<8x512xbf16>, vector<512x256xbf16>, vector<8x256xf32> -> vector<8x256xf32>
    %c0_15 = arith.constant 0 : index
    %c0_16 = arith.constant 0 : index
    %19 = vector.load %arg7[%c0_15, %c0_16] : memref<1x256xf32, #tpu.memory_space<vmem>>, vector<1x256xf32>
    %20 = vector.broadcast %19 : vector<1x256xf32> to vector<8x256xf32>
    %21 = arith.addf %18, %20 : vector<8x256xf32>
    %cst_17 = arith.constant 0.000000e+00 : f32
    %22 = vector.broadcast %cst_17 : f32 to vector<8x256xf32>
    %23 = arith.maximumf %21, %22 : vector<8x256xf32>
    %24 = arith.truncf %23 : vector<8x256xf32> to vector<8x256xbf16>
    %c0_18 = arith.constant 0 : index
    %c0_19 = arith.constant 0 : index
    %25 = vector.load %arg8[%c0_18, %c0_19] : memref<256x128xbf16, #tpu.memory_space<vmem>>, vector<256x128xbf16>
    %cst_20 = arith.constant dense<0.000000e+00> : vector<8x128xf32>
    %26 = tpu.matmul %24, %25, %cst_20 {dimension_numbers = #tpu.dot_dimension_numbers<[1], [0], [0], [1], [0, 0, 1, 1], [], []>} : vector<8x256xbf16>, vector<256x128xbf16>, vector<8x128xf32> -> vector<8x128xf32>
    %c0_21 = arith.constant 0 : index
    %c0_22 = arith.constant 0 : index
    %27 = vector.load %arg9[%c0_21, %c0_22] : memref<1x128xf32, #tpu.memory_space<vmem>>, vector<1x128xf32>
    %28 = vector.broadcast %27 : vector<1x128xf32> to vector<8x128xf32>
    %29 = arith.addf %26, %28 : vector<8x128xf32>
    %cst_23 = arith.constant dense<0xFF800000> : vector<8xf32>
    %30 = vector.multi_reduction <maximumf>, %29, %cst_23 [1] : vector<8x128xf32> to vector<8xf32>
    %31 = vector.shape_cast %30 : vector<8xf32> to vector<8x1xf32>
    %32 = vector.broadcast %31 : vector<8x1xf32> to vector<8x128xf32>
    %33 = arith.subf %29, %32 : vector<8x128xf32>
    %34 = math.exp %33 : vector<8x128xf32>
    %cst_24 = arith.constant dense<0.000000e+00> : vector<8xf32>
    %35 = vector.multi_reduction <add>, %34, %cst_24 [1] : vector<8x128xf32> to vector<8xf32>
    %36 = vector.shape_cast %35 : vector<8xf32> to vector<8x1xf32>
    %37 = math.log %36 : vector<8x1xf32>
    %38 = vector.broadcast %37 : vector<8x1xf32> to vector<8x128xf32>
    %39 = arith.subf %33, %38 : vector<8x128xf32>
    %c0_25 = arith.constant 0 : index
    %c0_26 = arith.constant 0 : index
    %40 = vector.load %arg10[%c0_25, %c0_26] : memref<8x128xf32, #tpu.memory_space<vmem>>, vector<8x128xf32>
    tpu.vector_store %arg10[%c0_25, %c0_26], %39 {strides = array<i32>} : memref<8x128xf32, #tpu.memory_space<vmem>>, vector<8x128xf32>,
    return
  }
  func.func @transform_0(%arg0: i32) -> (i32, i32) {
    %c0_i32 = arith.constant 0 : i32
    %c0_i32_0 = arith.constant 0 : i32
    return %arg0, %c0_i32 : i32, i32
  }
  func.func @transform_1(%arg0: i32) -> (i32, i32) {
    %c0_i32 = arith.constant 0 : i32
    %c0_i32_0 = arith.constant 0 : i32
    %c0_i32_1 = arith.constant 0 : i32
    return %c0_i32, %c0_i32_0 : i32, i32
  }
  func.func @transform_2(%arg0: i32) -> (i32, i32) {
    %c0_i32 = arith.constant 0 : i32
    %c0_i32_0 = arith.constant 0 : i32
    %c0_i32_1 = arith.constant 0 : i32
    return %c0_i32, %c0_i32_0 : i32, i32
  }
  func.func @transform_3(%arg0: i32) -> (i32, i32) {
    %c0_i32 = arith.constant 0 : i32
    %c0_i32_0 = arith.constant 0 : i32
    %c0_i32_1 = arith.constant 0 : i32
    return %c0_i32, %c0_i32_0 : i32, i32
  }
  func.func @transform_4(%arg0: i32) -> (i32, i32) {
    %c0_i32 = arith.constant 0 : i32
    %c0_i32_0 = arith.constant 0 : i32
    %c0_i32_1 = arith.constant 0 : i32
    return %c0_i32, %c0_i32_0 : i32, i32
  }
  func.func @transform_5(%arg0: i32) -> (i32, i32) {
    %c0_i32 = arith.constant 0 : i32
    %c0_i32_0 = arith.constant 0 : i32
    %c0_i32_1 = arith.constant 0 : i32
    return %c0_i32, %c0_i32_0 : i32, i32
  }
  func.func @transform_6(%arg0: i32) -> (i32, i32) {
    %c0_i32 = arith.constant 0 : i32
    %c0_i32_0 = arith.constant 0 : i32
    %c0_i32_1 = arith.constant 0 : i32
    return %c0_i32, %c0_i32_0 : i32, i32
  }
  func.func @transform_7(%arg0: i32) -> (i32, i32) {
    %c0_i32 = arith.constant 0 : i32
    %c0_i32_0 = arith.constant 0 : i32
    %c0_i32_1 = arith.constant 0 : i32
    return %c0_i32, %c0_i32_0 : i32, i32
  }
  func.func @transform_8(%arg0: i32) -> (i32, i32) {
    %c0_i32 = arith.constant 0 : i32
    %c0_i32_0 = arith.constant 0 : i32
    %c0_i32_1 = arith.constant 0 : i32
    return %c0_i32, %c0_i32_0 : i32, i32
  }
  func.func @transform_9(%arg0: i32) -> (i32, i32) {
    %c0_i32 = arith.constant 0 : i32
    %c0_i32_0 = arith.constant 0 : i32
    return %arg0, %c0_i32 : i32, i32
  }
}

</mosaic_0001>

<llo_original>
// kernel: nn_arch_forward.1
$region0: #{nn_arch_forward.1}
  #allocation0 [shape = 'u32[]', space=smem, size = 0x4, offset = 0x4, fixed_abs, tag = 'smem constant byte address 0x4 - core index']
  #allocation1 [shape = 'u32[72,128]{1,0:T(1,128)}', space=vmem, size = 0x9000, scoped, tag = 'internal scratch']
  %s0 = inlined_call_operand.vmem [shape: bf16[8,128], index: 0, kind: input, shape index: {}]
  %s1 = inlined_call_operand.vmem [shape: bf16[128,1024], index: 1, kind: input, shape index: {}]
  %s2 = inlined_call_operand.vmem [shape: f32[1,1024], index: 2, kind: input, shape index: {}]
  %s3 = inlined_call_operand.vmem [shape: bf16[1024,512], index: 3, kind: input, shape index: {}]
  %s4 = inlined_call_operand.vmem [shape: f32[1,512], index: 4, kind: input, shape index: {}]
  %s5 = inlined_call_operand.vmem [shape: bf16[512,256], index: 5, kind: input, shape index: {}]
  %s6 = inlined_call_operand.vmem [shape: f32[1,256], index: 6, kind: input, shape index: {}]
  %s7 = inlined_call_operand.vmem [shape: bf16[256,128], index: 7, kind: input, shape index: {}]
  %s8 = inlined_call_operand.vmem [shape: f32[1,128], index: 8, kind: input, shape index: {}]
  %s9 = inlined_call_operand.hbm [shape: f32[8,128], index: 9, kind: output, shape index: {}]
  %s10 = sld [smem:[#allocation0]]
  $region46: #{nn_arch_forward.1} parent=0
    _
  %s12 = ssub.s32 1, %s10
  %s13 = scalar_select 0, %s12, %s10
  $region1: #{nn_arch_forward.1} parent=0
    #allocation2 [shape = 'u8[4096]{0}', space=vmem, size = 0x1000, scoped, tag = 'output window, operand 0, single buffered']
    #allocation3 [shape = 's32[1]{0}', space=sflag, size = 0x4, scoped, tag = 'scoped memory for nn_arch_forward.1']
    %14 = vsyncpa [#allocation3], 0
    // Predicated region
    $region2: #{nn_arch_forward.1} parent=1 // pred_check
      _
    $region3: #{nn_arch_forward.1} parent=1 // pred_check_branch
      %16 = sbr.rel (0) target = $region5
    $region4: #{nn_arch_forward.1} parent=1 // pred_region
      _
    $region5: #{nn_arch_forward.1} parent=1 // pred_fallthru
      _
    // Predicated region
    $region6: #{nn_arch_forward.1} parent=1 // pred_check
      _
    $region7: #{nn_arch_forward.1} parent=1 // pred_check_branch
      %18 = sbr.rel (0) target = $region9
    $region8: #{nn_arch_forward.1} parent=1 // pred_region
      _
    $region9: #{nn_arch_forward.1} parent=1 // pred_fallthru
      _
    // Predicated region
    $region10: #{nn_arch_forward.1} parent=1 // pred_check
      _
    $region11: #{nn_arch_forward.1} parent=1 // pred_check_branch
      %20 = sbr.rel (0) target = $region13
    $region12: #{nn_arch_forward.1} parent=1 // pred_region
      _
    $region13: #{nn_arch_forward.1} parent=1 // pred_fallthru
      _
    // Predicated region
    $region14: #{nn_arch_forward.1} parent=1 // pred_check
      _
    $region15: #{nn_arch_forward.1} parent=1 // pred_check_branch
      %22 = sbr.rel (0) target = $region17
    $region16: #{nn_arch_forward.1} parent=1 // pred_region
      _
    $region17: #{nn_arch_forward.1} parent=1 // pred_fallthru
      _
    // Predicated region
    $region18: #{nn_arch_forward.1} parent=1 // pred_check
      _
    $region19: #{nn_arch_forward.1} parent=1 // pred_check_branch
      %24 = sbr.rel (0) target = $region21
    $region20: #{nn_arch_forward.1} parent=1 // pred_region
      _
    $region21: #{nn_arch_forward.1} parent=1 // pred_fallthru
      _
    // Predicated region
    $region22: #{nn_arch_forward.1} parent=1 // pred_check
      _
    $region23: #{nn_arch_forward.1} parent=1 // pred_check_branch
      %26 = sbr.rel (0) target = $region25
    $region24: #{nn_arch_forward.1} parent=1 // pred_region
      _
    $region25: #{nn_arch_forward.1} parent=1 // pred_fallthru
      _
    // Predicated region
    $region26: #{nn_arch_forward.1} parent=1 // pred_check
      _
    $region27: #{nn_arch_forward.1} parent=1 // pred_check_branch
      %28 = sbr.rel (0) target = $region29
    $region28: #{nn_arch_forward.1} parent=1 // pred_region
      _
    $region29: #{nn_arch_forward.1} parent=1 // pred_fallthru
      _
    // Predicated region
    $region30: #{nn_arch_forward.1} parent=1 // pred_check
      _
    $region31: #{nn_arch_forward.1} parent=1 // pred_check_branch
      %30 = sbr.rel (0) target = $region33
    $region32: #{nn_arch_forward.1} parent=1 // pred_region
      _
    $region33: #{nn_arch_forward.1} parent=1 // pred_fallthru
      _
    // Predicated region
    $region34: #{nn_arch_forward.1} parent=1 // pred_check
      _
    $region35: #{nn_arch_forward.1} parent=1 // pred_check_branch
      %32 = sbr.rel (0) target = $region37
    $region36: #{nn_arch_forward.1} parent=1 // pred_region
      _
    $region37: #{nn_arch_forward.1} parent=1 // pred_fallthru
      _
    %v33 = vld [vmem:[%s0] sm:$0xf]
    %v34 = vld [vmem:[%s1] sm:$0xff]
    %v35 = vld [vmem:[%s1 + $0x8] sm:$0xff]
    %v36 = vld [vmem:[%s1 + $0x10] sm:$0xff]
    %v37 = vld [vmem:[%s1 + $0x18] sm:$0xff]
    %v38 = vld [vmem:[%s1 + $0x20] sm:$0xff]
    %v39 = vld [vmem:[%s1 + $0x28] sm:$0xff]
    %v40 = vld [vmem:[%s1 + $0x30] sm:$0xff]
    %v41 = vld [vmem:[%s1 + $0x38] sm:$0xff]
    %v42 = vld [vmem:[%s1 + $0x40] sm:$0xff]
    %v43 = vld [vmem:[%s1 + $0x48] sm:$0xff]
    %v44 = vld [vmem:[%s1 + $0x50] sm:$0xff]
    %v45 = vld [vmem:[%s1 + $0x58] sm:$0xff]
    %v46 = vld [vmem:[%s1 + $0x60] sm:$0xff]
    %v47 = vld [vmem:[%s1 + $0x68] sm:$0xff]
    %v48 = vld [vmem:[%s1 + $0x70] sm:$0xff]
    %v49 = vld [vmem:[%s1 + $0x78] sm:$0xff]
    %v50 = vld [vmem:[%s1 + $0x80] sm:$0xff]
    %v51 = vld [vmem:[%s1 + $0x88] sm:$0xff]
    %v52 = vld [vmem:[%s1 + $0x90] sm:$0xff]
    %v53 = vld [vmem:[%s1 + $0x98] sm:$0xff]
    %v54 = vld [vmem:[%s1 + $0xa0] sm:$0xff]
    %v55 = vld [vmem:[%s1 + $0xa8] sm:$0xff]
    %v56 = vld [vmem:[%s1 + $0xb0] sm:$0xff]
    %v57 = vld [vmem:[%s1 + $0xb8] sm:$0xff]
    %v58 = vld [vmem:[%s1 + $0xc0] sm:$0xff]
    %v59 = vld [vmem:[%s1 + $0xc8] sm:$0xff]
    %v60 = vld [vmem:[%s1 + $0xd0] sm:$0xff]
    %v61 = vld [vmem:[%s1 + $0xd8] sm:$0xff]
    %v62 = vld [vmem:[%s1 + $0xe0] sm:$0xff]
    %v63 = vld [vmem:[%s1 + $0xe8] sm:$0xff]
    %v64 = vld [vmem:[%s1 + $0xf0] sm:$0xff]
    %v65 = vld [vmem:[%s1 + $0xf8] sm:$0xff]
    %v66 = vld [vmem:[%s1 + $0x100] sm:$0xff]
    %v67 = vld [vmem:[%s1 + $0x108] sm:$0xff]
    %v68 = vld [vmem:[%s1 + $0x110] sm:$0xff]
    %v69 = vld [vmem:[%s1 + $0x118] sm:$0xff]
    %v70 = vld [vmem:[%s1 + $0x120] sm:$0xff]
    %v71 = vld [vmem:[%s1 + $0x128] sm:$0xff]
    %v72 = vld [vmem:[%s1 + $0x130] sm:$0xff]
    %v73 = vld [vmem:[%s1 + $0x138] sm:$0xff]
    %v74 = vld [vmem:[%s1 + $0x140] sm:$0xff]
    %v75 = vld [vmem:[%s1 + $0x148] sm:$0xff]
    %v76 = vld [vmem:[%s1 + $0x150] sm:$0xff]
    %v77 = vld [vmem:[%s1 + $0x158] sm:$0xff]
    %v78 = vld [vmem:[%s1 + $0x160] sm:$0xff]
    %v79 = vld [vmem:[%s1 + $0x168] sm:$0xff]
    %v80 = vld [vmem:[%s1 + $0x170] sm:$0xff]
    %v81 = vld [vmem:[%s1 + $0x178] sm:$0xff]
    %v82 = vld [vmem:[%s1 + $0x180] sm:$0xff]
    %v83 = vld [vmem:[%s1 + $0x188] sm:$0xff]
    %v84 = vld [vmem:[%s1 + $0x190] sm:$0xff]
    %v85 = vld [vmem:[%s1 + $0x198] sm:$0xff]
    %v86 = vld [vmem:[%s1 + $0x1a0] sm:$0xff]
    %v87 = vld [vmem:[%s1 + $0x1a8] sm:$0xff]
    %v88 = vld [vmem:[%s1 + $0x1b0] sm:$0xff]
    %v89 = vld [vmem:[%s1 + $0x1b8] sm:$0xff]
    %v90 = vld [vmem:[%s1 + $0x1c0] sm:$0xff]
    %v91 = vld [vmem:[%s1 + $0x1c8] sm:$0xff]
    %v92 = vld [vmem:[%s1 + $0x1d0] sm:$0xff]
    %v93 = vld [vmem:[%s1 + $0x1d8] sm:$0xff]
    %v94 = vld [vmem:[%s1 + $0x1e0] sm:$0xff]
    %v95 = vld [vmem:[%s1 + $0x1e8] sm:$0xff]
    %v96 = vld [vmem:[%s1 + $0x1f0] sm:$0xff]
    %v97 = vld [vmem:[%s1 + $0x1f8] sm:$0xff]
    %v98 = vld [vmem:[%s2] sm:$0xff]
    %v100 = vperm.slane %v98, 0
    %v101 = vperm.slane %v98, 1
    %v102 = vperm.slane %v98, 2
    %v103 = vperm.slane %v98, 3
    %v104 = vperm.slane %v98, 4
    %v105 = vperm.slane %v98, 5
    %v106 = vperm.slane %v98, 6
    %v107 = vperm.slane %v98, 7
    %v180 = vunpack.c.l.b16 %v34
    %v181 = vunpack.c.h.b16 %v34
    %v182 = vunpack.c.l.b16 %v35
    %v183 = vunpack.c.h.b16 %v35
    %v184 = vunpack.c.l.b16 %v36
    %v185 = vunpack.c.h.b16 %v36
    %v186 = vunpack.c.l.b16 %v37
    %v187 = vunpack.c.h.b16 %v37
    %v188 = vunpack.c.l.b16 %v38
    %v189 = vunpack.c.h.b16 %v38
    %v190 = vunpack.c.l.b16 %v39
    %v191 = vunpack.c.h.b16 %v39
    %v192 = vunpack.c.l.b16 %v40
    %v193 = vunpack.c.h.b16 %v40
    %v194 = vunpack.c.l.b16 %v41
    %v195 = vunpack.c.h.b16 %v41
    %v196 = vunpack.c.l.b16 %v42
    %v197 = vunpack.c.h.b16 %v42
    %v198 = vunpack.c.l.b16 %v43
    %v199 = vunpack.c.h.b16 %v43
    %v200 = vunpack.c.l.b16 %v44
    %v201 = vunpack.c.h.b16 %v44
    %v202 = vunpack.c.l.b16 %v45
    %v203 = vunpack.c.h.b16 %v45
    %v204 = vunpack.c.l.b16 %v46
    %v205 = vunpack.c.h.b16 %v46
    %v206 = vunpack.c.l.b16 %v47
    %v207 = vunpack.c.h.b16 %v47
    %v208 = vunpack.c.l.b16 %v48
    %v209 = vunpack.c.h.b16 %v48
    %v210 = vunpack.c.l.b16 %v49
    %v211 = vunpack.c.h.b16 %v49
    %v212 = vunpack.c.l.b16 %v50
    %v213 = vunpack.c.h.b16 %v50
    %v214 = vunpack.c.l.b16 %v51
    %v215 = vunpack.c.h.b16 %v51
    %v216 = vunpack.c.l.b16 %v52
    %v217 = vunpack.c.h.b16 %v52
    %v218 = vunpack.c.l.b16 %v53
    %v219 = vunpack.c.h.b16 %v53
    %v220 = vunpack.c.l.b16 %v54
    %v221 = vunpack.c.h.b16 %v54
    %v222 = vunpack.c.l.b16 %v55
    %v223 = vunpack.c.h.b16 %v55
    %v224 = vunpack.c.l.b16 %v56
    %v225 = vunpack.c.h.b16 %v56
    %v226 = vunpack.c.l.b16 %v57
    %v227 = vunpack.c.h.b16 %v57
    %v228 = vunpack.c.l.b16 %v58
    %v229 = vunpack.c.h.b16 %v58
    %v230 = vunpack.c.l.b16 %v59
    %v231 = vunpack.c.h.b16 %v59
    %v232 = vunpack.c.l.b16 %v60
    %v233 = vunpack.c.h.b16 %v60
    %v234 = vunpack.c.l.b16 %v61
    %v235 = vunpack.c.h.b16 %v61
    %v236 = vunpack.c.l.b16 %v62
    %v237 = vunpack.c.h.b16 %v62
    %v238 = vunpack.c.l.b16 %v63
    %v239 = vunpack.c.h.b16 %v63
    %v240 = vunpack.c.l.b16 %v64
    %v241 = vunpack.c.h.b16 %v64
    %v242 = vunpack.c.l.b16 %v65
    %v243 = vunpack.c.h.b16 %v65
    %v244 = vunpack.c.l.b16 %v66
    %v245 = vunpack.c.h.b16 %v66
    %v246 = vunpack.c.l.b16 %v67
    %v247 = vunpack.c.h.b16 %v67
    %v248 = vunpack.c.l.b16 %v68
    %v249 = vunpack.c.h.b16 %v68
    %v250 = vunpack.c.l.b16 %v69
    %v251 = vunpack.c.h.b16 %v69
    %v252 = vunpack.c.l.b16 %v70
    %v253 = vunpack.c.h.b16 %v70
    %v254 = vunpack.c.l.b16 %v71
    %v255 = vunpack.c.h.b16 %v71
    %v256 = vunpack.c.l.b16 %v72
    %v257 = vunpack.c.h.b16 %v72
    %v258 = vunpack.c.l.b16 %v73
    %v259 = vunpack.c.h.b16 %v73
    %v260 = vunpack.c.l.b16 %v74
    %v261 = vunpack.c.h.b16 %v74
    %v262 = vunpack.c.l.b16 %v75
    %v263 = vunpack.c.h.b16 %v75
    %v264 = vunpack.c.l.b16 %v76
    %v265 = vunpack.c.h.b16 %v76
    %v266 = vunpack.c.l.b16 %v77
    %v267 = vunpack.c.h.b16 %v77
    %v268 = vunpack.c.l.b16 %v78
    %v269 = vunpack.c.h.b16 %v78
    %v270 = vunpack.c.l.b16 %v79
    %v271 = vunpack.c.h.b16 %v79
    %v272 = vunpack.c.l.b16 %v80
    %v273 = vunpack.c.h.b16 %v80
    %v274 = vunpack.c.l.b16 %v81
    %v275 = vunpack.c.h.b16 %v81
    %v276 = vunpack.c.l.b16 %v82
    %v277 = vunpack.c.h.b16 %v82
    %v278 = vunpack.c.l.b16 %v83
    %v279 = vunpack.c.h.b16 %v83
    %v280 = vunpack.c.l.b16 %v84
    %v281 = vunpack.c.h.b16 %v84
    %v282 = vunpack.c.l.b16 %v85
    %v283 = vunpack.c.h.b16 %v85
    %v284 = vunpack.c.l.b16 %v86
    %v285 = vunpack.c.h.b16 %v86
    %v286 = vunpack.c.l.b16 %v87
    %v287 = vunpack.c.h.b16 %v87
    %v288 = vunpack.c.l.b16 %v88
    %v289 = vunpack.c.h.b16 %v88
    %v290 = vunpack.c.l.b16 %v89
    %v291 = vunpack.c.h.b16 %v89
    %v292 = vunpack.c.l.b16 %v90
    %v293 = vunpack.c.h.b16 %v90
    %v294 = vunpack.c.l.b16 %v91
    %v295 = vunpack.c.h.b16 %v91
    %v296 = vunpack.c.l.b16 %v92
    %v297 = vunpack.c.h.b16 %v92
    %v298 = vunpack.c.l.b16 %v93
    %v299 = vunpack.c.h.b16 %v93
    %v300 = vunpack.c.l.b16 %v94
    %v301 = vunpack.c.h.b16 %v94
    %v302 = vunpack.c.l.b16 %v95
    %v303 = vunpack.c.h.b16 %v95
    %v304 = vunpack.c.l.b16 %v96
    %v305 = vunpack.c.h.b16 %v96
    %v306 = vunpack.c.l.b16 %v97
    %v307 = vunpack.c.h.b16 %v97
    %v308 = vpack.c.b16 %v188, %v180
    %v309 = vpack.c.b16 %v189, %v181
    %v310 = vpack.c.b16 %v190, %v182
    %v311 = vpack.c.b16 %v191, %v183
    %v312 = vpack.c.b16 %v192, %v184
    %v313 = vpack.c.b16 %v193, %v185
    %v314 = vpack.c.b16 %v194, %v186
    %v315 = vpack.c.b16 %v195, %v187
    %v316 = vpack.c.b16 %v204, %v196
    %v317 = vpack.c.b16 %v205, %v197
    %v318 = vpack.c.b16 %v206, %v198
    %v319 = vpack.c.b16 %v207, %v199
    %v320 = vpack.c.b16 %v208, %v200
    %v321 = vpack.c.b16 %v209, %v201
    %v322 = vpack.c.b16 %v210, %v202
    %v323 = vpack.c.b16 %v211, %v203
    %v324 = vpack.c.b16 %v220, %v212
    %v325 = vpack.c.b16 %v221, %v213
    %v326 = vpack.c.b16 %v222, %v214
    %v327 = vpack.c.b16 %v223, %v215
    %v328 = vpack.c.b16 %v224, %v216
    %v329 = vpack.c.b16 %v225, %v217
    %v330 = vpack.c.b16 %v226, %v218
    %v331 = vpack.c.b16 %v227, %v219
    %v332 = vpack.c.b16 %v236, %v228
    %v333 = vpack.c.b16 %v237, %v229
    %v334 = vpack.c.b16 %v238, %v230
    %v335 = vpack.c.b16 %v239, %v231
    %v336 = vpack.c.b16 %v240, %v232
    %v337 = vpack.c.b16 %v241, %v233
    %v338 = vpack.c.b16 %v242, %v234
    %v339 = vpack.c.b16 %v243, %v235
    %v340 = vpack.c.b16 %v252, %v244
    %v341 = vpack.c.b16 %v253, %v245
    %v342 = vpack.c.b16 %v254, %v246
    %v343 = vpack.c.b16 %v255, %v247
    %v344 = vpack.c.b16 %v256, %v248
    %v345 = vpack.c.b16 %v257, %v249
    %v346 = vpack.c.b16 %v258, %v250
    %v347 = vpack.c.b16 %v259, %v251
    %v348 = vpack.c.b16 %v268, %v260
    %v349 = vpack.c.b16 %v269, %v261
    %v350 = vpack.c.b16 %v270, %v262
    %v351 = vpack.c.b16 %v271, %v263
    %v352 = vpack.c.b16 %v272, %v264
    %v353 = vpack.c.b16 %v273, %v265
    %v354 = vpack.c.b16 %v274, %v266
    %v355 = vpack.c.b16 %v275, %v267
    %v356 = vpack.c.b16 %v284, %v276
    %v357 = vpack.c.b16 %v285, %v277
    %v358 = vpack.c.b16 %v286, %v278
    %v359 = vpack.c.b16 %v287, %v279
    %v360 = vpack.c.b16 %v288, %v280
    %v361 = vpack.c.b16 %v289, %v281
    %v362 = vpack.c.b16 %v290, %v282
    %v363 = vpack.c.b16 %v291, %v283
    %v364 = vpack.c.b16 %v300, %v292
    %v365 = vpack.c.b16 %v301, %v293
    %v366 = vpack.c.b16 %v302, %v294
    %v367 = vpack.c.b16 %v303, %v295
    %v368 = vpack.c.b16 %v304, %v296
    %v369 = vpack.c.b16 %v305, %v297
    %v370 = vpack.c.b16 %v306, %v298
    %v371 = vpack.c.b16 %v307, %v299
    %436 = vmatpush.bf16.msra.mxu0 %v364
    %437 = vmatpush.bf16.msra.mxu0 %v356
    %438 = vmatpush.bf16.msra.mxu0 %v348
    %439 = vmatpush.bf16.msra.mxu0 %v340
    %440 = vmatpush.bf16.msra.mxu0 %v332
    %441 = vmatpush.bf16.msra.mxu0 %v324
    %442 = vmatpush.bf16.msra.mxu0 %v316
    %443 = vmatpush.bf16.msra.mxu0 %v308
    %444 = vmatmul.bf16.gmra.mxu0 %v33
    %v445 = vpop.f32.mrf.mxu0
    %v446 = vadd.f32 %v100, %v445
    %v447 = vpop.f32.mrf.mxu0
    %448 = vdwg.mxu0
    %449 = vmatpush.bf16.msra.mxu0 %v365
    %450 = vmatpush.bf16.msra.mxu0 %v357
    %451 = vmatpush.bf16.msra.mxu0 %v349
    %452 = vmatpush.bf16.msra.mxu0 %v341
    %453 = vmatpush.bf16.msra.mxu0 %v333
    %454 = vmatpush.bf16.msra.mxu0 %v325
    %455 = vmatpush.bf16.msra.mxu0 %v317
    %456 = vmatpush.bf16.msra.mxu0 %v309
    %457 = vmatmul.bf16.gmra.mxu0 %v33
    %v458 = vpop.f32.mrf.mxu0
    %v459 = vadd.f32 %v101, %v458
    %v460 = vpop.f32.mrf.mxu0
    %461 = vdwg.mxu0
    %462 = vmatpush.bf16.msra.mxu0 %v366
    %463 = vmatpush.bf16.msra.mxu0 %v358
    %464 = vmatpush.bf16.msra.mxu0 %v350
    %465 = vmatpush.bf16.msra.mxu0 %v342
    %466 = vmatpush.bf16.msra.mxu0 %v334
    %467 = vmatpush.bf16.msra.mxu0 %v326
    %468 = vmatpush.bf16.msra.mxu0 %v318
    %469 = vmatpush.bf16.msra.mxu0 %v310
    %470 = vmatmul.bf16.gmra.mxu0 %v33
    %v471 = vpop.f32.mrf.mxu0
    %v472 = vadd.f32 %v102, %v471
    %v473 = vpop.f32.mrf.mxu0
    %474 = vdwg.mxu0
    %475 = vmatpush.bf16.msra.mxu0 %v367
    %476 = vmatpush.bf16.msra.mxu0 %v359
    %477 = vmatpush.bf16.msra.mxu0 %v351
    %478 = vmatpush.bf16.msra.mxu0 %v343
    %479 = vmatpush.bf16.msra.mxu0 %v335
    %480 = vmatpush.bf16.msra.mxu0 %v327
    %481 = vmatpush.bf16.msra.mxu0 %v319
    %482 = vmatpush.bf16.msra.mxu0 %v311
    %483 = vmatmul.bf16.gmra.mxu0 %v33
    %v484 = vpop.f32.mrf.mxu0
    %v485 = vadd.f32 %v103, %v484
    %v486 = vpop.f32.mrf.mxu0
    %487 = vdwg.mxu0
    %488 = vmatpush.bf16.msra.mxu0 %v368
    %489 = vmatpush.bf16.msra.mxu0 %v360
    %490 = vmatpush.bf16.msra.mxu0 %v352
    %491 = vmatpush.bf16.msra.mxu0 %v344
    %492 = vmatpush.bf16.msra.mxu0 %v336
    %493 = vmatpush.bf16.msra.mxu0 %v328
    %494 = vmatpush.bf16.msra.mxu0 %v320
    %495 = vmatpush.bf16.msra.mxu0 %v312
    %496 = vmatmul.bf16.gmra.mxu0 %v33
    %v497 = vpop.f32.mrf.mxu0
    %v498 = vadd.f32 %v104, %v497
    %v499 = vpop.f32.mrf.mxu0
    %500 = vdwg.mxu0
    %501 = vmatpush.bf16.msra.mxu0 %v369
    %502 = vmatpush.bf16.msra.mxu0 %v361
    %503 = vmatpush.bf16.msra.mxu0 %v353
    %504 = vmatpush.bf16.msra.mxu0 %v345
    %505 = vmatpush.bf16.msra.mxu0 %v337
    %506 = vmatpush.bf16.msra.mxu0 %v329
    %507 = vmatpush.bf16.msra.mxu0 %v321
    %508 = vmatpush.bf16.msra.mxu0 %v313
    %509 = vmatmul.bf16.gmra.mxu0 %v33
    %v510 = vpop.f32.mrf.mxu0
    %v511 = vadd.f32 %v105, %v510
    %v512 = vpop.f32.mrf.mxu0
    %513 = vdwg.mxu0
    %514 = vmatpush.bf16.msra.mxu0 %v370
    %515 = vmatpush.bf16.msra.mxu0 %v362
    %516 = vmatpush.bf16.msra.mxu0 %v354
    %517 = vmatpush.bf16.msra.mxu0 %v346
    %518 = vmatpush.bf16.msra.mxu0 %v338
    %519 = vmatpush.bf16.msra.mxu0 %v330
    %520 = vmatpush.bf16.msra.mxu0 %v322
    %521 = vmatpush.bf16.msra.mxu0 %v314
    %522 = vmatmul.bf16.gmra.mxu0 %v33
    %v523 = vpop.f32.mrf.mxu0
    %v524 = vadd.f32 %v106, %v523
    %v525 = vpop.f32.mrf.mxu0
    %526 = vdwg.mxu0
    %527 = vmatpush.bf16.msra.mxu0 %v371
    %528 = vmatpush.bf16.msra.mxu0 %v363
    %529 = vmatpush.bf16.msra.mxu0 %v355
    %530 = vmatpush.bf16.msra.mxu0 %v347
    %531 = vmatpush.bf16.msra.mxu0 %v339
    %532 = vmatpush.bf16.msra.mxu0 %v331
    %533 = vmatpush.bf16.msra.mxu0 %v323
    %534 = vmatpush.bf16.msra.mxu0 %v315
    %535 = vmatmul.bf16.gmra.mxu0 %v33
    %v536 = vpop.f32.mrf.mxu0
    %v537 = vadd.f32 %v107, %v536
    %v538 = vpop.f32.mrf.mxu0
    %539 = vdwg.mxu0
    %v540 = vmax.f32 %v446, 0.0
    %v541 = vmax.f32 %v459, 0.0
    %v542 = vmax.f32 %v472, 0.0
    %v543 = vmax.f32 %v485, 0.0
    %v544 = vmax.f32 %v498, 0.0
    %v545 = vmax.f32 %v511, 0.0
    %v546 = vmax.f32 %v524, 0.0
    %v547 = vmax.f32 %v537, 0.0
    %v548 = vpack.c.bf16 %v540, %v540
    %v549 = vpack.c.bf16 %v541, %v541
    %v550 = vpack.c.bf16 %v542, %v542
    %v551 = vpack.c.bf16 %v543, %v543
    %v552 = vpack.c.bf16 %v544, %v544
    %v553 = vpack.c.bf16 %v545, %v545
    %v554 = vpack.c.bf16 %v546, %v546
    %v555 = vpack.c.bf16 %v547, %v547
    %v556 = vld [vmem:[%s3] sm:$0xff]
    %v557 = vld [vmem:[%s3 + $0x8] sm:$0xff]
    %v558 = vld [vmem:[%s3 + $0x10] sm:$0xff]
    %v559 = vld [vmem:[%s3 + $0x18] sm:$0xff]
    %v560 = vld [vmem:[%s3 + $0x20] sm:$0xff]
    %v561 = vld [vmem:[%s3 + $0x28] sm:$0xff]
    %v562 = vld [vmem:[%s3 + $0x30] sm:$0xff]
    %v563 = vld [vmem:[%s3 + $0x38] sm:$0xff]
    %v564 = vld [vmem:[%s3 + $0x40] sm:$0xff]
    %v565 = vld [vmem:[%s3 + $0x48] sm:$0xff]
    %v566 = vld [vmem:[%s3 + $0x50] sm:$0xff]
    %v567 = vld [vmem:[%s3 + $0x58] sm:$0xff]
    %v568 = vld [vmem:[%s3 + $0x60] sm:$0xff]
    %v569 = vld [vmem:[%s3 + $0x68] sm:$0xff]
    %v570 = vld [vmem:[%s3 + $0x70] sm:$0xff]
    %v571 = vld [vmem:[%s3 + $0x78] sm:$0xff]
    %v572 = vld [vmem:[%s3 + $0x80] sm:$0xff]
    %v573 = vld [vmem:[%s3 + $0x88] sm:$0xff]
    %v574 = vld [vmem:[%s3 + $0x90] sm:$0xff]
    %v575 = vld [vmem:[%s3 + $0x98] sm:$0xff]
    %v576 = vld [vmem:[%s3 + $0xa0] sm:$0xff]
    %v577 = vld [vmem:[%s3 + $0xa8] sm:$0xff]
    %v578 = vld [vmem:[%s3 + $0xb0] sm:$0xff]
    %v579 = vld [vmem:[%s3 + $0xb8] sm:$0xff]
    %v580 = vld [vmem:[%s3 + $0xc0] sm:$0xff]
    %v581 = vld [vmem:[%s3 + $0xc8] sm:$0xff]
    %v582 = vld [vmem:[%s3 + $0xd0] sm:$0xff]
    %v583 = vld [vmem:[%s3 + $0xd8] sm:$0xff]
    %v584 = vld [vmem:[%s3 + $0xe0] sm:$0xff]
    %v585 = vld [vmem:[%s3 + $0xe8] sm:$0xff]
    %v586 = vld [vmem:[%s3 + $0xf0] sm:$0xff]
    %v587 = vld [vmem:[%s3 + $0xf8] sm:$0xff]
    %v588 = vld [vmem:[%s3 + $0x100] sm:$0xff]
    %v589 = vld [vmem:[%s3 + $0x108] sm:$0xff]
    %v590 = vld [vmem:[%s3 + $0x110] sm:$0xff]
    %v591 = vld [vmem:[%s3 + $0x118] sm:$0xff]
    %v592 = vld [vmem:[%s3 + $0x120] sm:$0xff]
    %v593 = vld [vmem:[%s3 + $0x128] sm:$0xff]
    %v594 = vld [vmem:[%s3 + $0x130] sm:$0xff]
    %v595 = vld [vmem:[%s3 + $0x138] sm:$0xff]
    %v596 = vld [vmem:[%s3 + $0x140] sm:$0xff]
    %v597 = vld [vmem:[%s3 + $0x148] sm:$0xff]
    %v598 = vld [vmem:[%s3 + $0x150] sm:$0xff]
    %v599 = vld [vmem:[%s3 + $0x158] sm:$0xff]
    %v600 = vld [vmem:[%s3 + $0x160] sm:$0xff]
    %v601 = vld [vmem:[%s3 + $0x168] sm:$0xff]
    %v602 = vld [vmem:[%s3 + $0x170] sm:$0xff]
    %v603 = vld [vmem:[%s3 + $0x178] sm:$0xff]
    %v604 = vld [vmem:[%s3 + $0x180] sm:$0xff]
    %v605 = vld [vmem:[%s3 + $0x188] sm:$0xff]
    %v606 = vld [vmem:[%s3 + $0x190] sm:$0xff]
    %v607 = vld [vmem:[%s3 + $0x198] sm:$0xff]
    %v608 = vld [vmem:[%s3 + $0x1a0] sm:$0xff]
    %v609 = vld [vmem:[%s3 + $0x1a8] sm:$0xff]
    %v610 = vld [vmem:[%s3 + $0x1b0] sm:$0xff]
    %v611 = vld [vmem:[%s3 + $0x1b8] sm:$0xff]
    %v612 = vld [vmem:[%s3 + $0x1c0] sm:$0xff]
    %v613 = vld [vmem:[%s3 + $0x1c8] sm:$0xff]
    %v614 = vld [vmem:[%s3 + $0x1d0] sm:$0xff]
    %v615 = vld [vmem:[%s3 + $0x1d8] sm:$0xff]
    %v616 = vld [vmem:[%s3 + $0x1e0] sm:$0xff]
    %v617 = vld [vmem:[%s3 + $0x1e8] sm:$0xff]
    %v618 = vld [vmem:[%s3 + $0x1f0] sm:$0xff]
    %v619 = vld [vmem:[%s3 + $0x1f8] sm:$0xff]
    %v620 = vld [vmem:[%s3 + $0x200] sm:$0xff]
    %v621 = vld [vmem:[%s3 + $0x208] sm:$0xff]
    %v622 = vld [vmem:[%s3 + $0x210] sm:$0xff]
    %v623 = vld [vmem:[%s3 + $0x218] sm:$0xff]
    %v624 = vld [vmem:[%s3 + $0x220] sm:$0xff]
    %v625 = vld [vmem:[%s3 + $0x228] sm:$0xff]
    %v626 = vld [vmem:[%s3 + $0x230] sm:$0xff]
    %v627 = vld [vmem:[%s3 + $0x238] sm:$0xff]
    %v628 = vld [vmem:[%s3 + $0x240] sm:$0xff]
    %v629 = vld [vmem:[%s3 + $0x248] sm:$0xff]
    %v630 = vld [vmem:[%s3 + $0x250] sm:$0xff]
    %v631 = vld [vmem:[%s3 + $0x258] sm:$0xff]
    %v632 = vld [vmem:[%s3 + $0x260] sm:$0xff]
    %v633 = vld [vmem:[%s3 + $0x268] sm:$0xff]
    %v634 = vld [vmem:[%s3 + $0x270] sm:$0xff]
    %v635 = vld [vmem:[%s3 + $0x278] sm:$0xff]
    %v636 = vld [vmem:[%s3 + $0x280] sm:$0xff]
    %v637 = vld [vmem:[%s3 + $0x288] sm:$0xff]
    %v638 = vld [vmem:[%s3 + $0x290] sm:$0xff]
    %v639 = vld [vmem:[%s3 + $0x298] sm:$0xff]
    %v640 = vld [vmem:[%s3 + $0x2a0] sm:$0xff]
    %v641 = vld [vmem:[%s3 + $0x2a8] sm:$0xff]
    %v642 = vld [vmem:[%s3 + $0x2b0] sm:$0xff]
    %v643 = vld [vmem:[%s3 + $0x2b8] sm:$0xff]
    %v644 = vld [vmem:[%s3 + $0x2c0] sm:$0xff]
    %v645 = vld [vmem:[%s3 + $0x2c8] sm:$0xff]
    %v646 = vld [vmem:[%s3 + $0x2d0] sm:$0xff]
    %v647 = vld [vmem:[%s3 + $0x2d8] sm:$0xff]
    %v648 = vld [vmem:[%s3 + $0x2e0] sm:$0xff]
    %v649 = vld [vmem:[%s3 + $0x2e8] sm:$0xff]
    %v650 = vld [vmem:[%s3 + $0x2f0] sm:$0xff]
    %v651 = vld [vmem:[%s3 + $0x2f8] sm:$0xff]
    %v652 = vld [vmem:[%s3 + $0x300] sm:$0xff]
    %v653 = vld [vmem:[%s3 + $0x308] sm:$0xff]
    %v654 = vld [vmem:[%s3 + $0x310] sm:$0xff]
    %v655 = vld [vmem:[%s3 + $0x318] sm:$0xff]
    %v656 = vld [vmem:[%s3 + $0x320] sm:$0xff]
    %v657 = vld [vmem:[%s3 + $0x328] sm:$0xff]
    %v658 = vld [vmem:[%s3 + $0x330] sm:$0xff]
    %v659 = vld [vmem:[%s3 + $0x338] sm:$0xff]
    %v660 = vld [vmem:[%s3 + $0x340] sm:$0xff]
    %v661 = vld [vmem:[%s3 + $0x348] sm:$0xff]
    %v662 = vld [vmem:[%s3 + $0x350] sm:$0xff]
    %v663 = vld [vmem:[%s3 + $0x358] sm:$0xff]
    %v664 = vld [vmem:[%s3 + $0x360] sm:$0xff]
    %v665 = vld [vmem:[%s3 + $0x368] sm:$0xff]
    %v666 = vld [vmem:[%s3 + $0x370] sm:$0xff]
    %v667 = vld [vmem:[%s3 + $0x378] sm:$0xff]
    %v668 = vld [vmem:[%s3 + $0x380] sm:$0xff]
    %v669 = vld [vmem:[%s3 + $0x388] sm:$0xff]
    %v670 = vld [vmem:[%s3 + $0x390] sm:$0xff]
    %v671 = vld [vmem:[%s3 + $0x398] sm:$0xff]
    %v672 = vld [vmem:[%s3 + $0x3a0] sm:$0xff]
    %v673 = vld [vmem:[%s3 + $0x3a8] sm:$0xff]
    %v674 = vld [vmem:[%s3 + $0x3b0] sm:$0xff]
    %v675 = vld [vmem:[%s3 + $0x3b8] sm:$0xff]
    %v676 = vld [vmem:[%s3 + $0x3c0] sm:$0xff]
    %v677 = vld [vmem:[%s3 + $0x3c8] sm:$0xff]
    %v678 = vld [vmem:[%s3 + $0x3d0] sm:$0xff]
    %v679 = vld [vmem:[%s3 + $0x3d8] sm:$0xff]
    %v680 = vld [vmem:[%s3 + $0x3e0] sm:$0xff]
    %v681 = vld [vmem:[%s3 + $0x3e8] sm:$0xff]
    %v682 = vld [vmem:[%s3 + $0x3f0] sm:$0xff]
    %v683 = vld [vmem:[%s3 + $0x3f8] sm:$0xff]
    %v684 = vld [vmem:[%s3 + $0x400] sm:$0xff]
    %v685 = vld [vmem:[%s3 + $0x408] sm:$0xff]
    %v686 = vld [vmem:[%s3 + $0x410] sm:$0xff]
    %v687 = vld [vmem:[%s3 + $0x418] sm:$0xff]
    %v688 = vld [vmem:[%s3 + $0x420] sm:$0xff]
    %v689 = vld [vmem:[%s3 + $0x428] sm:$0xff]
    %v690 = vld [vmem:[%s3 + $0x430] sm:$0xff]
    %v691 = vld [vmem:[%s3 + $0x438] sm:$0xff]
    %v692 = vld [vmem:[%s3 + $0x440] sm:$0xff]
    %v693 = vld [vmem:[%s3 + $0x448] sm:$0xff]
    %v694 = vld [vmem:[%s3 + $0x450] sm:$0xff]
    %v695 = vld [vmem:[%s3 + $0x458] sm:$0xff]
    %v696 = vld [vmem:[%s3 + $0x460] sm:$0xff]
    %v697 = vld [vmem:[%s3 + $0x468] sm:$0xff]
    %v698 = vld [vmem:[%s3 + $0x470] sm:$0xff]
    %v699 = vld [vmem:[%s3 + $0x478] sm:$0xff]
    %v700 = vld [vmem:[%s3 + $0x480] sm:$0xff]
    %v701 = vld [vmem:[%s3 + $0x488] sm:$0xff]
    %v702 = vld [vmem:[%s3 + $0x490] sm:$0xff]
    %v703 = vld [vmem:[%s3 + $0x498] sm:$0xff]
    %v704 = vld [vmem:[%s3 + $0x4a0] sm:$0xff]
    %v705 = vld [vmem:[%s3 + $0x4a8] sm:$0xff]
    %v706 = vld [vmem:[%s3 + $0x4b0] sm:$0xff]
    %v707 = vld [vmem:[%s3 + $0x4b8] sm:$0xff]
    %v708 = vld [vmem:[%s3 + $0x4c0] sm:$0xff]
    %v709 = vld [vmem:[%s3 + $0x4c8] sm:$0xff]
    %v710 = vld [vmem:[%s3 + $0x4d0] sm:$0xff]
    %v711 = vld [vmem:[%s3 + $0x4d8] sm:$0xff]
    %v712 = vld [vmem:[%s3 + $0x4e0] sm:$0xff]
    %v713 = vld [vmem:[%s3 + $0x4e8] sm:$0xff]
    %v714 = vld [vmem:[%s3 + $0x4f0] sm:$0xff]
    %v715 = vld [vmem:[%s3 + $0x4f8] sm:$0xff]
    %v716 = vld [vmem:[%s3 + $0x500] sm:$0xff]
    %v717 = vld [vmem:[%s3 + $0x508] sm:$0xff]
    %v718 = vld [vmem:[%s3 + $0x510] sm:$0xff]
    %v719 = vld [vmem:[%s3 + $0x518] sm:$0xff]
    %v720 = vld [vmem:[%s3 + $0x520] sm:$0xff]
    %v721 = vld [vmem:[%s3 + $0x528] sm:$0xff]
    %v722 = vld [vmem:[%s3 + $0x530] sm:$0xff]
    %v723 = vld [vmem:[%s3 + $0x538] sm:$0xff]
    %v724 = vld [vmem:[%s3 + $0x540] sm:$0xff]
    %v725 = vld [vmem:[%s3 + $0x548] sm:$0xff]
    %v726 = vld [vmem:[%s3 + $0x550] sm:$0xff]
    %v727 = vld [vmem:[%s3 + $0x558] sm:$0xff]
    %v728 = vld [vmem:[%s3 + $0x560] sm:$0xff]
    %v729 = vld [vmem:[%s3 + $0x568] sm:$0xff]
    %v730 = vld [vmem:[%s3 + $0x570] sm:$0xff]
    %v731 = vld [vmem:[%s3 + $0x578] sm:$0xff]
    %v732 = vld [vmem:[%s3 + $0x580] sm:$0xff]
    %v733 = vld [vmem:[%s3 + $0x588] sm:$0xff]
    %v734 = vld [vmem:[%s3 + $0x590] sm:$0xff]
    %v735 = vld [vmem:[%s3 + $0x598] sm:$0xff]
    %v736 = vld [vmem:[%s3 + $0x5a0] sm:$0xff]
    %v737 = vld [vmem:[%s3 + $0x5a8] sm:$0xff]
    %v738 = vld [vmem:[%s3 + $0x5b0] sm:$0xff]
    %v739 = vld [vmem:[%s3 + $0x5b8] sm:$0xff]
    %v740 = vld [vmem:[%s3 + $0x5c0] sm:$0xff]
    %v741 = vld [vmem:[%s3 + $0x5c8] sm:$0xff]
    %v742 = vld [vmem:[%s3 + $0x5d0] sm:$0xff]
    %v743 = vld [vmem:[%s3 + $0x5d8] sm:$0xff]
    %v744 = vld [vmem:[%s3 + $0x5e0] sm:$0xff]
    %v745 = vld [vmem:[%s3 + $0x5e8] sm:$0xff]
    %v746 = vld [vmem:[%s3 + $0x5f0] sm:$0xff]
    %v747 = vld [vmem:[%s3 + $0x5f8] sm:$0xff]
    %v748 = vld [vmem:[%s3 + $0x600] sm:$0xff]
    %v749 = vld [vmem:[%s3 + $0x608] sm:$0xff]
    %v750 = vld [vmem:[%s3 + $0x610] sm:$0xff]
    %v751 = vld [vmem:[%s3 + $0x618] sm:$0xff]
    %v752 = vld [vmem:[%s3 + $0x620] sm:$0xff]
    %v753 = vld [vmem:[%s3 + $0x628] sm:$0xff]
    %v754 = vld [vmem:[%s3 + $0x630] sm:$0xff]
    %v755 = vld [vmem:[%s3 + $0x638] sm:$0xff]
    %v756 = vld [vmem:[%s3 + $0x640] sm:$0xff]
    %v757 = vld [vmem:[%s3 + $0x648] sm:$0xff]
    %v758 = vld [vmem:[%s3 + $0x650] sm:$0xff]
    %v759 = vld [vmem:[%s3 + $0x658] sm:$0xff]
    %v760 = vld [vmem:[%s3 + $0x660] sm:$0xff]
    %v761 = vld [vmem:[%s3 + $0x668] sm:$0xff]
    %v762 = vld [vmem:[%s3 + $0x670] sm:$0xff]
    %v763 = vld [vmem:[%s3 + $0x678] sm:$0xff]
    %v764 = vld [vmem:[%s3 + $0x680] sm:$0xff]
    %v765 = vld [vmem:[%s3 + $0x688] sm:$0xff]
    %v766 = vld [vmem:[%s3 + $0x690] sm:$0xff]
    %v767 = vld [vmem:[%s3 + $0x698] sm:$0xff]
    %v768 = vld [vmem:[%s3 + $0x6a0] sm:$0xff]
    %v769 = vld [vmem:[%s3 + $0x6a8] sm:$0xff]
    %v770 = vld [vmem:[%s3 + $0x6b0] sm:$0xff]
    %v771 = vld [vmem:[%s3 + $0x6b8] sm:$0xff]
    %v772 = vld [vmem:[%s3 + $0x6c0] sm:$0xff]
    %v773 = vld [vmem:[%s3 + $0x6c8] sm:$0xff]
    %v774 = vld [vmem:[%s3 + $0x6d0] sm:$0xff]
    %v775 = vld [vmem:[%s3 + $0x6d8] sm:$0xff]
    %v776 = vld [vmem:[%s3 + $0x6e0] sm:$0xff]
    %v777 = vld [vmem:[%s3 + $0x6e8] sm:$0xff]
    %v778 = vld [vmem:[%s3 + $0x6f0] sm:$0xff]
    %v779 = vld [vmem:[%s3 + $0x6f8] sm:$0xff]
    %v780 = vld [vmem:[%s3 + $0x700] sm:$0xff]
    %v781 = vld [vmem:[%s3 + $0x708] sm:$0xff]
    %v782 = vld [vmem:[%s3 + $0x710] sm:$0xff]
    %v783 = vld [vmem:[%s3 + $0x718] sm:$0xff]
    %v784 = vld [vmem:[%s3 + $0x720] sm:$0xff]
    %v785 = vld [vmem:[%s3 + $0x728] sm:$0xff]
    %v786 = vld [vmem:[%s3 + $0x730] sm:$0xff]
    %v787 = vld [vmem:[%s3 + $0x738] sm:$0xff]
    %v788 = vld [vmem:[%s3 + $0x740] sm:$0xff]
    %v789 = vld [vmem:[%s3 + $0x748] sm:$0xff]
    %v790 = vld [vmem:[%s3 + $0x750] sm:$0xff]
    %v791 = vld [vmem:[%s3 + $0x758] sm:$0xff]
    %v792 = vld [vmem:[%s3 + $0x760] sm:$0xff]
    %v793 = vld [vmem:[%s3 + $0x768] sm:$0xff]
    %v794 = vld [vmem:[%s3 + $0x770] sm:$0xff]
    %v795 = vld [vmem:[%s3 + $0x778] sm:$0xff]
    %v796 = vld [vmem:[%s3 + $0x780] sm:$0xff]
    %v797 = vld [vmem:[%s3 + $0x788] sm:$0xff]
    %v798 = vld [vmem:[%s3 + $0x790] sm:$0xff]
    %v799 = vld [vmem:[%s3 + $0x798] sm:$0xff]
    %v800 = vld [vmem:[%s3 + $0x7a0] sm:$0xff]
    %v801 = vld [vmem:[%s3 + $0x7a8] sm:$0xff]
    %v802 = vld [vmem:[%s3 + $0x7b0] sm:$0xff]
    %v803 = vld [vmem:[%s3 + $0x7b8] sm:$0xff]
    %v804 = vld [vmem:[%s3 + $0x7c0] sm:$0xff]
    %v805 = vld [vmem:[%s3 + $0x7c8] sm:$0xff]
    %v806 = vld [vmem:[%s3 + $0x7d0] sm:$0xff]
    %v807 = vld [vmem:[%s3 + $0x7d8] sm:$0xff]
    %v808 = vld [vmem:[%s3 + $0x7e0] sm:$0xff]
    %v809 = vld [vmem:[%s3 + $0x7e8] sm:$0xff]
    %v810 = vld [vmem:[%s3 + $0x7f0] sm:$0xff]
    %v811 = vld [vmem:[%s3 + $0x7f8] sm:$0xff]
    %v812 = vld [vmem:[%s4] sm:$0xf]
    %v814 = vperm.slane %v812, 0
    %v815 = vperm.slane %v812, 1
    %v816 = vperm.slane %v812, 2
    %v817 = vperm.slane %v812, 3
    %v1078 = vunpack.c.l.b16 %v556
    %v1079 = vunpack.c.h.b16 %v556
    %v1080 = vunpack.c.l.b16 %v557
    %v1081 = vunpack.c.h.b16 %v557
    %v1082 = vunpack.c.l.b16 %v558
    %v1083 = vunpack.c.h.b16 %v558
    %v1084 = vunpack.c.l.b16 %v559
    %v1085 = vunpack.c.h.b16 %v559
    %v1086 = vunpack.c.l.b16 %v560
    %v1087 = vunpack.c.h.b16 %v560
    %v1088 = vunpack.c.l.b16 %v561
    %v1089 = vunpack.c.h.b16 %v561
    %v1090 = vunpack.c.l.b16 %v562
    %v1091 = vunpack.c.h.b16 %v562
    %v1092 = vunpack.c.l.b16 %v563
    %v1093 = vunpack.c.h.b16 %v563
    %v1094 = vunpack.c.l.b16 %v564
    %v1095 = vunpack.c.h.b16 %v564
    %v1096 = vunpack.c.l.b16 %v565
    %v1097 = vunpack.c.h.b16 %v565
    %v1098 = vunpack.c.l.b16 %v566
    %v1099 = vunpack.c.h.b16 %v566
    %v1100 = vunpack.c.l.b16 %v567
    %v1101 = vunpack.c.h.b16 %v567
    %v1102 = vunpack.c.l.b16 %v568
    %v1103 = vunpack.c.h.b16 %v568
    %v1104 = vunpack.c.l.b16 %v569
    %v1105 = vunpack.c.h.b16 %v569
    %v1106 = vunpack.c.l.b16 %v570
    %v1107 = vunpack.c.h.b16 %v570
    %v1108 = vunpack.c.l.b16 %v571
    %v1109 = vunpack.c.h.b16 %v571
    %v1110 = vunpack.c.l.b16 %v572
    %v1111 = vunpack.c.h.b16 %v572
    %v1112 = vunpack.c.l.b16 %v573
    %v1113 = vunpack.c.h.b16 %v573
    %v1114 = vunpack.c.l.b16 %v574
    %v1115 = vunpack.c.h.b16 %v574
    %v1116 = vunpack.c.l.b16 %v575
    %v1117 = vunpack.c.h.b16 %v575
    %v1118 = vunpack.c.l.b16 %v576
    %v1119 = vunpack.c.h.b16 %v576
    %v1120 = vunpack.c.l.b16 %v577
    %v1121 = vunpack.c.h.b16 %v577
    %v1122 = vunpack.c.l.b16 %v578
    %v1123 = vunpack.c.h.b16 %v578
    %v1124 = vunpack.c.l.b16 %v579
    %v1125 = vunpack.c.h.b16 %v579
    %v1126 = vunpack.c.l.b16 %v580
    %v1127 = vunpack.c.h.b16 %v580
    %v1128 = vunpack.c.l.b16 %v581
    %v1129 = vunpack.c.h.b16 %v581
    %v1130 = vunpack.c.l.b16 %v582
    %v1131 = vunpack.c.h.b16 %v582
    %v1132 = vunpack.c.l.b16 %v583
    %v1133 = vunpack.c.h.b16 %v583
    %v1134 = vunpack.c.l.b16 %v584
    %v1135 = vunpack.c.h.b16 %v584
    %v1136 = vunpack.c.l.b16 %v585
    %v1137 = vunpack.c.h.b16 %v585
    %v1138 = vunpack.c.l.b16 %v586
    %v1139 = vunpack.c.h.b16 %v586
    %v1140 = vunpack.c.l.b16 %v587
    %v1141 = vunpack.c.h.b16 %v587
    %v1142 = vunpack.c.l.b16 %v588
    %v1143 = vunpack.c.h.b16 %v588
    %v1144 = vunpack.c.l.b16 %v589
    %v1145 = vunpack.c.h.b16 %v589
    %v1146 = vunpack.c.l.b16 %v590
    %v1147 = vunpack.c.h.b16 %v590
    %v1148 = vunpack.c.l.b16 %v591
    %v1149 = vunpack.c.h.b16 %v591
    %v1150 = vunpack.c.l.b16 %v592
    %v1151 = vunpack.c.h.b16 %v592
    %v1152 = vunpack.c.l.b16 %v593
    %v1153 = vunpack.c.h.b16 %v593
    %v1154 = vunpack.c.l.b16 %v594
    %v1155 = vunpack.c.h.b16 %v594
    %v1156 = vunpack.c.l.b16 %v595
    %v1157 = vunpack.c.h.b16 %v595
    %v1158 = vunpack.c.l.b16 %v596
    %v1159 = vunpack.c.h.b16 %v596
    %v1160 = vunpack.c.l.b16 %v597
    %v1161 = vunpack.c.h.b16 %v597
    %v1162 = vunpack.c.l.b16 %v598
    %v1163 = vunpack.c.h.b16 %v598
    %v1164 = vunpack.c.l.b16 %v599
    %v1165 = vunpack.c.h.b16 %v599
    %v1166 = vunpack.c.l.b16 %v600
    %v1167 = vunpack.c.h.b16 %v600
    %v1168 = vunpack.c.l.b16 %v601
    %v1169 = vunpack.c.h.b16 %v601
    %v1170 = vunpack.c.l.b16 %v602
    %v1171 = vunpack.c.h.b16 %v602
    %v1172 = vunpack.c.l.b16 %v603
    %v1173 = vunpack.c.h.b16 %v603
    %v1174 = vunpack.c.l.b16 %v604
    %v1175 = vunpack.c.h.b16 %v604
    %v1176 = vunpack.c.l.b16 %v605
    %v1177 = vunpack.c.h.b16 %v605
    %v1178 = vunpack.c.l.b16 %v606
    %v1179 = vunpack.c.h.b16 %v606
    %v1180 = vunpack.c.l.b16 %v607
    %v1181 = vunpack.c.h.b16 %v607
    %v1182 = vunpack.c.l.b16 %v608
    %v1183 = vunpack.c.h.b16 %v608
    %v1184 = vunpack.c.l.b16 %v609
    %v1185 = vunpack.c.h.b16 %v609
    %v1186 = vunpack.c.l.b16 %v610
    %v1187 = vunpack.c.h.b16 %v610
    %v1188 = vunpack.c.l.b16 %v611
    %v1189 = vunpack.c.h.b16 %v611
    %v1190 = vunpack.c.l.b16 %v612
    %v1191 = vunpack.c.h.b16 %v612
    %v1192 = vunpack.c.l.b16 %v613
    %v1193 = vunpack.c.h.b16 %v613
    %v1194 = vunpack.c.l.b16 %v614
    %v1195 = vunpack.c.h.b16 %v614
    %v1196 = vunpack.c.l.b16 %v615
    %v1197 = vunpack.c.h.b16 %v615
    %v1198 = vunpack.c.l.b16 %v616
    %v1199 = vunpack.c.h.b16 %v616
    %v1200 = vunpack.c.l.b16 %v617
    %v1201 = vunpack.c.h.b16 %v617
    %v1202 = vunpack.c.l.b16 %v618
    %v1203 = vunpack.c.h.b16 %v618
    %v1204 = vunpack.c.l.b16 %v619
    %v1205 = vunpack.c.h.b16 %v619
    %v1206 = vunpack.c.l.b16 %v620
    %v1207 = vunpack.c.h.b16 %v620
    %v1208 = vunpack.c.l.b16 %v621
    %v1209 = vunpack.c.h.b16 %v621
    %v1210 = vunpack.c.l.b16 %v622
    %v1211 = vunpack.c.h.b16 %v622
    %v1212 = vunpack.c.l.b16 %v623
    %v1213 = vunpack.c.h.b16 %v623
    %v1214 = vunpack.c.l.b16 %v624
    %v1215 = vunpack.c.h.b16 %v624
    %v1216 = vunpack.c.l.b16 %v625
    %v1217 = vunpack.c.h.b16 %v625
    %v1218 = vunpack.c.l.b16 %v626
    %v1219 = vunpack.c.h.b16 %v626
    %v1220 = vunpack.c.l.b16 %v627
    %v1221 = vunpack.c.h.b16 %v627
    %v1222 = vunpack.c.l.b16 %v628
    %v1223 = vunpack.c.h.b16 %v628
    %v1224 = vunpack.c.l.b16 %v629
    %v1225 = vunpack.c.h.b16 %v629
    %v1226 = vunpack.c.l.b16 %v630
    %v1227 = vunpack.c.h.b16 %v630
    %v1228 = vunpack.c.l.b16 %v631
    %v1229 = vunpack.c.h.b16 %v631
    %v1230 = vunpack.c.l.b16 %v632
    %v1231 = vunpack.c.h.b16 %v632
    %v1232 = vunpack.c.l.b16 %v633
    %v1233 = vunpack.c.h.b16 %v633
    %v1234 = vunpack.c.l.b16 %v634
    %v1235 = vunpack.c.h.b16 %v634
    %v1236 = vunpack.c.l.b16 %v635
    %v1237 = vunpack.c.h.b16 %v635
    %v1238 = vunpack.c.l.b16 %v636
    %v1239 = vunpack.c.h.b16 %v636
    %v1240 = vunpack.c.l.b16 %v637
    %v1241 = vunpack.c.h.b16 %v637
    %v1242 = vunpack.c.l.b16 %v638
    %v1243 = vunpack.c.h.b16 %v638
    %v1244 = vunpack.c.l.b16 %v639
    %v1245 = vunpack.c.h.b16 %v639
    %v1246 = vunpack.c.l.b16 %v640
    %v1247 = vunpack.c.h.b16 %v640
    %v1248 = vunpack.c.l.b16 %v641
    %v1249 = vunpack.c.h.b16 %v641
    %v1250 = vunpack.c.l.b16 %v642
    %v1251 = vunpack.c.h.b16 %v642
    %v1252 = vunpack.c.l.b16 %v643
    %v1253 = vunpack.c.h.b16 %v643
    %v1254 = vunpack.c.l.b16 %v644
    %v1255 = vunpack.c.h.b16 %v644
    %v1256 = vunpack.c.l.b16 %v645
    %v1257 = vunpack.c.h.b16 %v645
    %v1258 = vunpack.c.l.b16 %v646
    %v1259 = vunpack.c.h.b16 %v646
    %v1260 = vunpack.c.l.b16 %v647
    %v1261 = vunpack.c.h.b16 %v647
    %v1262 = vunpack.c.l.b16 %v648
    %v1263 = vunpack.c.h.b16 %v648
    %v1264 = vunpack.c.l.b16 %v649
    %v1265 = vunpack.c.h.b16 %v649
    %v1266 = vunpack.c.l.b16 %v650
    %v1267 = vunpack.c.h.b16 %v650
    %v1268 = vunpack.c.l.b16 %v651
    %v1269 = vunpack.c.h.b16 %v651
    %v1270 = vunpack.c.l.b16 %v652
    %v1271 = vunpack.c.h.b16 %v652
    %v1272 = vunpack.c.l.b16 %v653
    %v1273 = vunpack.c.h.b16 %v653
    %v1274 = vunpack.c.l.b16 %v654
    %v1275 = vunpack.c.h.b16 %v654
    %v1276 = vunpack.c.l.b16 %v655
    %v1277 = vunpack.c.h.b16 %v655
    %v1278 = vunpack.c.l.b16 %v656
    %v1279 = vunpack.c.h.b16 %v656
    %v1280 = vunpack.c.l.b16 %v657
    %v1281 = vunpack.c.h.b16 %v657
    %v1282 = vunpack.c.l.b16 %v658
    %v1283 = vunpack.c.h.b16 %v658
    %v1284 = vunpack.c.l.b16 %v659
    %v1285 = vunpack.c.h.b16 %v659
    %v1286 = vunpack.c.l.b16 %v660
    %v1287 = vunpack.c.h.b16 %v660
    %v1288 = vunpack.c.l.b16 %v661
    %v1289 = vunpack.c.h.b16 %v661
    %v1290 = vunpack.c.l.b16 %v662
    %v1291 = vunpack.c.h.b16 %v662
    %v1292 = vunpack.c.l.b16 %v663
    %v1293 = vunpack.c.h.b16 %v663
    %v1294 = vunpack.c.l.b16 %v664
    %v1295 = vunpack.c.h.b16 %v664
    %v1296 = vunpack.c.l.b16 %v665
    %v1297 = vunpack.c.h.b16 %v665
    %v1298 = vunpack.c.l.b16 %v666
    %v1299 = vunpack.c.h.b16 %v666
    %v1300 = vunpack.c.l.b16 %v667
    %v1301 = vunpack.c.h.b16 %v667
    %v1302 = vunpack.c.l.b16 %v668
    %v1303 = vunpack.c.h.b16 %v668
    %v1304 = vunpack.c.l.b16 %v669
    %v1305 = vunpack.c.h.b16 %v669
    %v1306 = vunpack.c.l.b16 %v670
    %v1307 = vunpack.c.h.b16 %v670
    %v1308 = vunpack.c.l.b16 %v671
    %v1309 = vunpack.c.h.b16 %v671
    %v1310 = vunpack.c.l.b16 %v672
    %v1311 = vunpack.c.h.b16 %v672
    %v1312 = vunpack.c.l.b16 %v673
    %v1313 = vunpack.c.h.b16 %v673
    %v1314 = vunpack.c.l.b16 %v674
    %v1315 = vunpack.c.h.b16 %v674
    %v1316 = vunpack.c.l.b16 %v675
    %v1317 = vunpack.c.h.b16 %v675
    %v1318 = vunpack.c.l.b16 %v676
    %v1319 = vunpack.c.h.b16 %v676
    %v1320 = vunpack.c.l.b16 %v677
    %v1321 = vunpack.c.h.b16 %v677
    %v1322 = vunpack.c.l.b16 %v678
    %v1323 = vunpack.c.h.b16 %v678
    %v1324 = vunpack.c.l.b16 %v679
    %v1325 = vunpack.c.h.b16 %v679
    %v1326 = vunpack.c.l.b16 %v680
    %v1327 = vunpack.c.h.b16 %v680
    %v1328 = vunpack.c.l.b16 %v681
    %v1329 = vunpack.c.h.b16 %v681
    %v1330 = vunpack.c.l.b16 %v682
    %v1331 = vunpack.c.h.b16 %v682
    %v1332 = vunpack.c.l.b16 %v683
    %v1333 = vunpack.c.h.b16 %v683
    %v1334 = vunpack.c.l.b16 %v684
    %v1335 = vunpack.c.h.b16 %v684
    %v1336 = vunpack.c.l.b16 %v685
    %v1337 = vunpack.c.h.b16 %v685
    %v1338 = vunpack.c.l.b16 %v686
    %v1339 = vunpack.c.h.b16 %v686
    %v1340 = vunpack.c.l.b16 %v687
    %v1341 = vunpack.c.h.b16 %v687
    %v1342 = vunpack.c.l.b16 %v688
    %v1343 = vunpack.c.h.b16 %v688
    %v1344 = vunpack.c.l.b16 %v689
    %v1345 = vunpack.c.h.b16 %v689
    %v1346 = vunpack.c.l.b16 %v690
    %v1347 = vunpack.c.h.b16 %v690
    %v1348 = vunpack.c.l.b16 %v691
    %v1349 = vunpack.c.h.b16 %v691
    %v1350 = vunpack.c.l.b16 %v692
    %v1351 = vunpack.c.h.b16 %v692
    %v1352 = vunpack.c.l.b16 %v693
    %v1353 = vunpack.c.h.b16 %v693
    %v1354 = vunpack.c.l.b16 %v694
    %v1355 = vunpack.c.h.b16 %v694
    %v1356 = vunpack.c.l.b16 %v695
    %v1357 = vunpack.c.h.b16 %v695
    %v1358 = vunpack.c.l.b16 %v696
    %v1359 = vunpack.c.h.b16 %v696
    %v1360 = vunpack.c.l.b16 %v697
    %v1361 = vunpack.c.h.b16 %v697
    %v1362 = vunpack.c.l.b16 %v698
    %v1363 = vunpack.c.h.b16 %v698
    %v1364 = vunpack.c.l.b16 %v699
    %v1365 = vunpack.c.h.b16 %v699
    %v1366 = vunpack.c.l.b16 %v700
    %v1367 = vunpack.c.h.b16 %v700
    %v1368 = vunpack.c.l.b16 %v701
    %v1369 = vunpack.c.h.b16 %v701
    %v1370 = vunpack.c.l.b16 %v702
    %v1371 = vunpack.c.h.b16 %v702
    %v1372 = vunpack.c.l.b16 %v703
    %v1373 = vunpack.c.h.b16 %v703
    %v1374 = vunpack.c.l.b16 %v704
    %v1375 = vunpack.c.h.b16 %v704
    %v1376 = vunpack.c.l.b16 %v705
    %v1377 = vunpack.c.h.b16 %v705
    %v1378 = vunpack.c.l.b16 %v706
    %v1379 = vunpack.c.h.b16 %v706
    %v1380 = vunpack.c.l.b16 %v707
    %v1381 = vunpack.c.h.b16 %v707
    %v1382 = vunpack.c.l.b16 %v708
    %v1383 = vunpack.c.h.b16 %v708
    %v1384 = vunpack.c.l.b16 %v709
    %v1385 = vunpack.c.h.b16 %v709
    %v1386 = vunpack.c.l.b16 %v710
    %v1387 = vunpack.c.h.b16 %v710
    %v1388 = vunpack.c.l.b16 %v711
    %v1389 = vunpack.c.h.b16 %v711
    %v1390 = vunpack.c.l.b16 %v712
    %v1391 = vunpack.c.h.b16 %v712
    %v1392 = vunpack.c.l.b16 %v713
    %v1393 = vunpack.c.h.b16 %v713
    %v1394 = vunpack.c.l.b16 %v714
    %v1395 = vunpack.c.h.b16 %v714
    %v1396 = vunpack.c.l.b16 %v715
    %v1397 = vunpack.c.h.b16 %v715
    %v1398 = vunpack.c.l.b16 %v716
    %v1399 = vunpack.c.h.b16 %v716
    %v1400 = vunpack.c.l.b16 %v717
    %v1401 = vunpack.c.h.b16 %v717
    %v1402 = vunpack.c.l.b16 %v718
    %v1403 = vunpack.c.h.b16 %v718
    %v1404 = vunpack.c.l.b16 %v719
    %v1405 = vunpack.c.h.b16 %v719
    %v1406 = vunpack.c.l.b16 %v720
    %v1407 = vunpack.c.h.b16 %v720
    %v1408 = vunpack.c.l.b16 %v721
    %v1409 = vunpack.c.h.b16 %v721
    %v1410 = vunpack.c.l.b16 %v722
    %v1411 = vunpack.c.h.b16 %v722
    %v1412 = vunpack.c.l.b16 %v723
    %v1413 = vunpack.c.h.b16 %v723
    %v1414 = vunpack.c.l.b16 %v724
    %v1415 = vunpack.c.h.b16 %v724
    %v1416 = vunpack.c.l.b16 %v725
    %v1417 = vunpack.c.h.b16 %v725
    %v1418 = vunpack.c.l.b16 %v726
    %v1419 = vunpack.c.h.b16 %v726
    %v1420 = vunpack.c.l.b16 %v727
    %v1421 = vunpack.c.h.b16 %v727
    %v1422 = vunpack.c.l.b16 %v728
    %v1423 = vunpack.c.h.b16 %v728
    %v1424 = vunpack.c.l.b16 %v729
    %v1425 = vunpack.c.h.b16 %v729
    %v1426 = vunpack.c.l.b16 %v730
    %v1427 = vunpack.c.h.b16 %v730
    %v1428 = vunpack.c.l.b16 %v731
    %v1429 = vunpack.c.h.b16 %v731
    %v1430 = vunpack.c.l.b16 %v732
    %v1431 = vunpack.c.h.b16 %v732
    %v1432 = vunpack.c.l.b16 %v733
    %v1433 = vunpack.c.h.b16 %v733
    %v1434 = vunpack.c.l.b16 %v734
    %v1435 = vunpack.c.h.b16 %v734
    %v1436 = vunpack.c.l.b16 %v735
    %v1437 = vunpack.c.h.b16 %v735
    %v1438 = vunpack.c.l.b16 %v736
    %v1439 = vunpack.c.h.b16 %v736
    %v1440 = vunpack.c.l.b16 %v737
    %v1441 = vunpack.c.h.b16 %v737
    %v1442 = vunpack.c.l.b16 %v738
    %v1443 = vunpack.c.h.b16 %v738
    %v1444 = vunpack.c.l.b16 %v739
    %v1445 = vunpack.c.h.b16 %v739
    %v1446 = vunpack.c.l.b16 %v740
    %v1447 = vunpack.c.h.b16 %v740
    %v1448 = vunpack.c.l.b16 %v741
    %v1449 = vunpack.c.h.b16 %v741
    %v1450 = vunpack.c.l.b16 %v742
    %v1451 = vunpack.c.h.b16 %v742
    %v1452 = vunpack.c.l.b16 %v743
    %v1453 = vunpack.c.h.b16 %v743
    %v1454 = vunpack.c.l.b16 %v744
    %v1455 = vunpack.c.h.b16 %v744
    %v1456 = vunpack.c.l.b16 %v745
    %v1457 = vunpack.c.h.b16 %v745
    %v1458 = vunpack.c.l.b16 %v746
    %v1459 = vunpack.c.h.b16 %v746
    %v1460 = vunpack.c.l.b16 %v747
    %v1461 = vunpack.c.h.b16 %v747
    %v1462 = vunpack.c.l.b16 %v748
    %v1463 = vunpack.c.h.b16 %v748
    %v1464 = vunpack.c.l.b16 %v749
    %v1465 = vunpack.c.h.b16 %v749
    %v1466 = vunpack.c.l.b16 %v750
    %v1467 = vunpack.c.h.b16 %v750
    %v1468 = vunpack.c.l.b16 %v751
    %v1469 = vunpack.c.h.b16 %v751
    %v1470 = vunpack.c.l.b16 %v752
    %v1471 = vunpack.c.h.b16 %v752
    %v1472 = vunpack.c.l.b16 %v753
    %v1473 = vunpack.c.h.b16 %v753
    %v1474 = vunpack.c.l.b16 %v754
    %v1475 = vunpack.c.h.b16 %v754
    %v1476 = vunpack.c.l.b16 %v755
    %v1477 = vunpack.c.h.b16 %v755
    %v1478 = vunpack.c.l.b16 %v756
    %v1479 = vunpack.c.h.b16 %v756
    %v1480 = vunpack.c.l.b16 %v757
    %v1481 = vunpack.c.h.b16 %v757
    %v1482 = vunpack.c.l.b16 %v758
    %v1483 = vunpack.c.h.b16 %v758
    %v1484 = vunpack.c.l.b16 %v759
    %v1485 = vunpack.c.h.b16 %v759
    %v1486 = vunpack.c.l.b16 %v760
    %v1487 = vunpack.c.h.b16 %v760
    %v1488 = vunpack.c.l.b16 %v761
    %v1489 = vunpack.c.h.b16 %v761
    %v1490 = vunpack.c.l.b16 %v762
    %v1491 = vunpack.c.h.b16 %v762
    %v1492 = vunpack.c.l.b16 %v763
    %v1493 = vunpack.c.h.b16 %v763
    %v1494 = vunpack.c.l.b16 %v764
    %v1495 = vunpack.c.h.b16 %v764
    %v1496 = vunpack.c.l.b16 %v765
    %v1497 = vunpack.c.h.b16 %v765
    %v1498 = vunpack.c.l.b16 %v766
    %v1499 = vunpack.c.h.b16 %v766
    %v1500 = vunpack.c.l.b16 %v767
    %v1501 = vunpack.c.h.b16 %v767
    %v1502 = vunpack.c.l.b16 %v768
    %v1503 = vunpack.c.h.b16 %v768
    %v1504 = vunpack.c.l.b16 %v769
    %v1505 = vunpack.c.h.b16 %v769
    %v1506 = vunpack.c.l.b16 %v770
    %v1507 = vunpack.c.h.b16 %v770
    %v1508 = vunpack.c.l.b16 %v771
    %v1509 = vunpack.c.h.b16 %v771
    %v1510 = vunpack.c.l.b16 %v772
    %v1511 = vunpack.c.h.b16 %v772
    %v1512 = vunpack.c.l.b16 %v773
    %v1513 = vunpack.c.h.b16 %v773
    %v1514 = vunpack.c.l.b16 %v774
    %v1515 = vunpack.c.h.b16 %v774
    %v1516 = vunpack.c.l.b16 %v775
    %v1517 = vunpack.c.h.b16 %v775
    %v1518 = vunpack.c.l.b16 %v776
    %v1519 = vunpack.c.h.b16 %v776
    %v1520 = vunpack.c.l.b16 %v777
    %v1521 = vunpack.c.h.b16 %v777
    %v1522 = vunpack.c.l.b16 %v778
    %v1523 = vunpack.c.h.b16 %v778
    %v1524 = vunpack.c.l.b16 %v779
    %v1525 = vunpack.c.h.b16 %v779
    %v1526 = vunpack.c.l.b16 %v780
    %v1527 = vunpack.c.h.b16 %v780
    %v1528 = vunpack.c.l.b16 %v781
    %v1529 = vunpack.c.h.b16 %v781
    %v1530 = vunpack.c.l.b16 %v782
    %v1531 = vunpack.c.h.b16 %v782
    %v1532 = vunpack.c.l.b16 %v783
    %v1533 = vunpack.c.h.b16 %v783
    %v1534 = vunpack.c.l.b16 %v784
    %v1535 = vunpack.c.h.b16 %v784
    %v1536 = vunpack.c.l.b16 %v785
    %v1537 = vunpack.c.h.b16 %v785
    %v1538 = vunpack.c.l.b16 %v786
    %v1539 = vunpack.c.h.b16 %v786
    %v1540 = vunpack.c.l.b16 %v787
    %v1541 = vunpack.c.h.b16 %v787
    %v1542 = vunpack.c.l.b16 %v788
    %v1543 = vunpack.c.h.b16 %v788
    %v1544 = vunpack.c.l.b16 %v789
    %v1545 = vunpack.c.h.b16 %v789
    %v1546 = vunpack.c.l.b16 %v790
    %v1547 = vunpack.c.h.b16 %v790
    %v1548 = vunpack.c.l.b16 %v791
    %v1549 = vunpack.c.h.b16 %v791
    %v1550 = vunpack.c.l.b16 %v792
    %v1551 = vunpack.c.h.b16 %v792
    %v1552 = vunpack.c.l.b16 %v793
    %v1553 = vunpack.c.h.b16 %v793
    %v1554 = vunpack.c.l.b16 %v794
    %v1555 = vunpack.c.h.b16 %v794
    %v1556 = vunpack.c.l.b16 %v795
    %v1557 = vunpack.c.h.b16 %v795
    %v1558 = vunpack.c.l.b16 %v796
    %v1559 = vunpack.c.h.b16 %v796
    %v1560 = vunpack.c.l.b16 %v797
    %v1561 = vunpack.c.h.b16 %v797
    %v1562 = vunpack.c.l.b16 %v798
    %v1563 = vunpack.c.h.b16 %v798
    %v1564 = vunpack.c.l.b16 %v799
    %v1565 = vunpack.c.h.b16 %v799
    %v1566 = vunpack.c.l.b16 %v800
    %v1567 = vunpack.c.h.b16 %v800
    %v1568 = vunpack.c.l.b16 %v801
    %v1569 = vunpack.c.h.b16 %v801
    %v1570 = vunpack.c.l.b16 %v802
    %v1571 = vunpack.c.h.b16 %v802
    %v1572 = vunpack.c.l.b16 %v803
    %v1573 = vunpack.c.h.b16 %v803
    %v1574 = vunpack.c.l.b16 %v804
    %v1575 = vunpack.c.h.b16 %v804
    %v1576 = vunpack.c.l.b16 %v805
    %v1577 = vunpack.c.h.b16 %v805
    %v1578 = vunpack.c.l.b16 %v806
    %v1579 = vunpack.c.h.b16 %v806
    %v1580 = vunpack.c.l.b16 %v807
    %v1581 = vunpack.c.h.b16 %v807
    %v1582 = vunpack.c.l.b16 %v808
    %v1583 = vunpack.c.h.b16 %v808
    %v1584 = vunpack.c.l.b16 %v809
    %v1585 = vunpack.c.h.b16 %v809
    %v1586 = vunpack.c.l.b16 %v810
    %v1587 = vunpack.c.h.b16 %v810
    %v1588 = vunpack.c.l.b16 %v811
    %v1589 = vunpack.c.h.b16 %v811
    %v1590 = vpack.c.b16 %v1082, %v1078
    %v1591 = vpack.c.b16 %v1083, %v1079
    %v1592 = vpack.c.b16 %v1084, %v1080
    %v1593 = vpack.c.b16 %v1085, %v1081
    %v1594 = vpack.c.b16 %v1090, %v1086
    %v1595 = vpack.c.b16 %v1091, %v1087
    %v1596 = vpack.c.b16 %v1092, %v1088
    %v1597 = vpack.c.b16 %v1093, %v1089
    %v1598 = vpack.c.b16 %v1098, %v1094
    %v1599 = vpack.c.b16 %v1099, %v1095
    %v1600 = vpack.c.b16 %v1100, %v1096
    %v1601 = vpack.c.b16 %v1101, %v1097
    %v1602 = vpack.c.b16 %v1106, %v1102
    %v1603 = vpack.c.b16 %v1107, %v1103
    %v1604 = vpack.c.b16 %v1108, %v1104
    %v1605 = vpack.c.b16 %v1109, %v1105
    %v1606 = vpack.c.b16 %v1114, %v1110
    %v1607 = vpack.c.b16 %v1115, %v1111
    %v1608 = vpack.c.b16 %v1116, %v1112
    %v1609 = vpack.c.b16 %v1117, %v1113
    %v1610 = vpack.c.b16 %v1122, %v1118
    %v1611 = vpack.c.b16 %v1123, %v1119
    %v1612 = vpack.c.b16 %v1124, %v1120
    %v1613 = vpack.c.b16 %v1125, %v1121
    %v1614 = vpack.c.b16 %v1130, %v1126
    %v1615 = vpack.c.b16 %v1131, %v1127
    %v1616 = vpack.c.b16 %v1132, %v1128
    %v1617 = vpack.c.b16 %v1133, %v1129
    %v1618 = vpack.c.b16 %v1138, %v1134
    %v1619 = vpack.c.b16 %v1139, %v1135
    %v1620 = vpack.c.b16 %v1140, %v1136
    %v1621 = vpack.c.b16 %v1141, %v1137
    %v1622 = vpack.c.b16 %v1146, %v1142
    %v1623 = vpack.c.b16 %v1147, %v1143
    %v1624 = vpack.c.b16 %v1148, %v1144
    %v1625 = vpack.c.b16 %v1149, %v1145
    %v1626 = vpack.c.b16 %v1154, %v1150
    %v1627 = vpack.c.b16 %v1155, %v1151
    %v1628 = vpack.c.b16 %v1156, %v1152
    %v1629 = vpack.c.b16 %v1157, %v1153
    %v1630 = vpack.c.b16 %v1162, %v1158
    %v1631 = vpack.c.b16 %v1163, %v1159
    %v1632 = vpack.c.b16 %v1164, %v1160
    %v1633 = vpack.c.b16 %v1165, %v1161
    %v1634 = vpack.c.b16 %v1170, %v1166
    %v1635 = vpack.c.b16 %v1171, %v1167
    %v1636 = vpack.c.b16 %v1172, %v1168
    %v1637 = vpack.c.b16 %v1173, %v1169
    %v1638 = vpack.c.b16 %v1178, %v1174
    %v1639 = vpack.c.b16 %v1179, %v1175
    %v1640 = vpack.c.b16 %v1180, %v1176
    %v1641 = vpack.c.b16 %v1181, %v1177
    %v1642 = vpack.c.b16 %v1186, %v1182
    %v1643 = vpack.c.b16 %v1187, %v1183
    %v1644 = vpack.c.b16 %v1188, %v1184
    %v1645 = vpack.c.b16 %v1189, %v1185
    %v1646 = vpack.c.b16 %v1194, %v1190
    %v1647 = vpack.c.b16 %v1195, %v1191
    %v1648 = vpack.c.b16 %v1196, %v1192
    %v1649 = vpack.c.b16 %v1197, %v1193
    %v1650 = vpack.c.b16 %v1202, %v1198
    %v1651 = vpack.c.b16 %v1203, %v1199
    %v1652 = vpack.c.b16 %v1204, %v1200
    %v1653 = vpack.c.b16 %v1205, %v1201
    %v1654 = vpack.c.b16 %v1210, %v1206
    %v1655 = vpack.c.b16 %v1211, %v1207
    %v1656 = vpack.c.b16 %v1212, %v1208
    %v1657 = vpack.c.b16 %v1213, %v1209
    %v1658 = vpack.c.b16 %v1218, %v1214
    %v1659 = vpack.c.b16 %v1219, %v1215
    %v1660 = vpack.c.b16 %v1220, %v1216
    %v1661 = vpack.c.b16 %v1221, %v1217
    %v1662 = vpack.c.b16 %v1226, %v1222
    %v1663 = vpack.c.b16 %v1227, %v1223
    %v1664 = vpack.c.b16 %v1228, %v1224
    %v1665 = vpack.c.b16 %v1229, %v1225
    %v1666 = vpack.c.b16 %v1234, %v1230
    %v1667 = vpack.c.b16 %v1235, %v1231
    %v1668 = vpack.c.b16 %v1236, %v1232
    %v1669 = vpack.c.b16 %v1237, %v1233
    %v1670 = vpack.c.b16 %v1242, %v1238
    %v1671 = vpack.c.b16 %v1243, %v1239
    %v1672 = vpack.c.b16 %v1244, %v1240
    %v1673 = vpack.c.b16 %v1245, %v1241
    %v1674 = vpack.c.b16 %v1250, %v1246
    %v1675 = vpack.c.b16 %v1251, %v1247
    %v1676 = vpack.c.b16 %v1252, %v1248
    %v1677 = vpack.c.b16 %v1253, %v1249
    %v1678 = vpack.c.b16 %v1258, %v1254
    %v1679 = vpack.c.b16 %v1259, %v1255
    %v1680 = vpack.c.b16 %v1260, %v1256
    %v1681 = vpack.c.b16 %v1261, %v1257
    %v1682 = vpack.c.b16 %v1266, %v1262
    %v1683 = vpack.c.b16 %v1267, %v1263
    %v1684 = vpack.c.b16 %v1268, %v1264
    %v1685 = vpack.c.b16 %v1269, %v1265
    %v1686 = vpack.c.b16 %v1274, %v1270
    %v1687 = vpack.c.b16 %v1275, %v1271
    %v1688 = vpack.c.b16 %v1276, %v1272
    %v1689 = vpack.c.b16 %v1277, %v1273
    %v1690 = vpack.c.b16 %v1282, %v1278
    %v1691 = vpack.c.b16 %v1283, %v1279
    %v1692 = vpack.c.b16 %v1284, %v1280
    %v1693 = vpack.c.b16 %v1285, %v1281
    %v1694 = vpack.c.b16 %v1290, %v1286
    %v1695 = vpack.c.b16 %v1291, %v1287
    %v1696 = vpack.c.b16 %v1292, %v1288
    %v1697 = vpack.c.b16 %v1293, %v1289
    %v1698 = vpack.c.b16 %v1298, %v1294
    %v1699 = vpack.c.b16 %v1299, %v1295
    %v1700 = vpack.c.b16 %v1300, %v1296
    %v1701 = vpack.c.b16 %v1301, %v1297
    %v1702 = vpack.c.b16 %v1306, %v1302
    %v1703 = vpack.c.b16 %v1307, %v1303
    %v1704 = vpack.c.b16 %v1308, %v1304
    %v1705 = vpack.c.b16 %v1309, %v1305
    %v1706 = vpack.c.b16 %v1314, %v1310
    %v1707 = vpack.c.b16 %v1315, %v1311
    %v1708 = vpack.c.b16 %v1316, %v1312
    %v1709 = vpack.c.b16 %v1317, %v1313
    %v1710 = vpack.c.b16 %v1322, %v1318
    %v1711 = vpack.c.b16 %v1323, %v1319
    %v1712 = vpack.c.b16 %v1324, %v1320
    %v1713 = vpack.c.b16 %v1325, %v1321
    %v1714 = vpack.c.b16 %v1330, %v1326
    %v1715 = vpack.c.b16 %v1331, %v1327
    %v1716 = vpack.c.b16 %v1332, %v1328
    %v1717 = vpack.c.b16 %v1333, %v1329
    %v1718 = vpack.c.b16 %v1338, %v1334
    %v1719 = vpack.c.b16 %v1339, %v1335
    %v1720 = vpack.c.b16 %v1340, %v1336
    %v1721 = vpack.c.b16 %v1341, %v1337
    %v1722 = vpack.c.b16 %v1346, %v1342
    %v1723 = vpack.c.b16 %v1347, %v1343
    %v1724 = vpack.c.b16 %v1348, %v1344
    %v1725 = vpack.c.b16 %v1349, %v1345
    %v1726 = vpack.c.b16 %v1354, %v1350
    %v1727 = vpack.c.b16 %v1355, %v1351
    %v1728 = vpack.c.b16 %v1356, %v1352
    %v1729 = vpack.c.b16 %v1357, %v1353
    %v1730 = vpack.c.b16 %v1362, %v1358
    %v1731 = vpack.c.b16 %v1363, %v1359
    %v1732 = vpack.c.b16 %v1364, %v1360
    %v1733 = vpack.c.b16 %v1365, %v1361
    %v1734 = vpack.c.b16 %v1370, %v1366
    %v1735 = vpack.c.b16 %v1371, %v1367
    %v1736 = vpack.c.b16 %v1372, %v1368
    %v1737 = vpack.c.b16 %v1373, %v1369
    %v1738 = vpack.c.b16 %v1378, %v1374
    %v1739 = vpack.c.b16 %v1379, %v1375
    %v1740 = vpack.c.b16 %v1380, %v1376
    %v1741 = vpack.c.b16 %v1381, %v1377
    %v1742 = vpack.c.b16 %v1386, %v1382
    %v1743 = vpack.c.b16 %v1387, %v1383
    %v1744 = vpack.c.b16 %v1388, %v1384
    %v1745 = vpack.c.b16 %v1389, %v1385
    %v1746 = vpack.c.b16 %v1394, %v1390
    %v1747 = vpack.c.b16 %v1395, %v1391
    %v1748 = vpack.c.b16 %v1396, %v1392
    %v1749 = vpack.c.b16 %v1397, %v1393
    %v1750 = vpack.c.b16 %v1402, %v1398
    %v1751 = vpack.c.b16 %v1403, %v1399
    %v1752 = vpack.c.b16 %v1404, %v1400
    %v1753 = vpack.c.b16 %v1405, %v1401
    %v1754 = vpack.c.b16 %v1410, %v1406
    %v1755 = vpack.c.b16 %v1411, %v1407
    %v1756 = vpack.c.b16 %v1412, %v1408
    %v1757 = vpack.c.b16 %v1413, %v1409
    %v1758 = vpack.c.b16 %v1418, %v1414
    %v1759 = vpack.c.b16 %v1419, %v1415
    %v1760 = vpack.c.b16 %v1420, %v1416
    %v1761 = vpack.c.b16 %v1421, %v1417
    %v1762 = vpack.c.b16 %v1426, %v1422
    %v1763 = vpack.c.b16 %v1427, %v1423
    %v1764 = vpack.c.b16 %v1428, %v1424
    %v1765 = vpack.c.b16 %v1429, %v1425
    %v1766 = vpack.c.b16 %v1434, %v1430
    %v1767 = vpack.c.b16 %v1435, %v1431
    %v1768 = vpack.c.b16 %v1436, %v1432
    %v1769 = vpack.c.b16 %v1437, %v1433
    %v1770 = vpack.c.b16 %v1442, %v1438
    %v1771 = vpack.c.b16 %v1443, %v1439
    %v1772 = vpack.c.b16 %v1444, %v1440
    %v1773 = vpack.c.b16 %v1445, %v1441
    %v1774 = vpack.c.b16 %v1450, %v1446
    %v1775 = vpack.c.b16 %v1451, %v1447
    %v1776 = vpack.c.b16 %v1452, %v1448
    %v1777 = vpack.c.b16 %v1453, %v1449
    %v1778 = vpack.c.b16 %v1458, %v1454
    %v1779 = vpack.c.b16 %v1459, %v1455
    %v1780 = vpack.c.b16 %v1460, %v1456
    %v1781 = vpack.c.b16 %v1461, %v1457
    %v1782 = vpack.c.b16 %v1466, %v1462
    %v1783 = vpack.c.b16 %v1467, %v1463
    %v1784 = vpack.c.b16 %v1468, %v1464
    %v1785 = vpack.c.b16 %v1469, %v1465
    %v1786 = vpack.c.b16 %v1474, %v1470
    %v1787 = vpack.c.b16 %v1475, %v1471
    %v1788 = vpack.c.b16 %v1476, %v1472
    %v1789 = vpack.c.b16 %v1477, %v1473
    %v1790 = vpack.c.b16 %v1482, %v1478
    %v1791 = vpack.c.b16 %v1483, %v1479
    %v1792 = vpack.c.b16 %v1484, %v1480
    %v1793 = vpack.c.b16 %v1485, %v1481
    %v1794 = vpack.c.b16 %v1490, %v1486
    %v1795 = vpack.c.b16 %v1491, %v1487
    %v1796 = vpack.c.b16 %v1492, %v1488
    %v1797 = vpack.c.b16 %v1493, %v1489
    %v1798 = vpack.c.b16 %v1498, %v1494
    %v1799 = vpack.c.b16 %v1499, %v1495
    %v1800 = vpack.c.b16 %v1500, %v1496
    %v1801 = vpack.c.b16 %v1501, %v1497
    %v1802 = vpack.c.b16 %v1506, %v1502
    %v1803 = vpack.c.b16 %v1507, %v1503
    %v1804 = vpack.c.b16 %v1508, %v1504
    %v1805 = vpack.c.b16 %v1509, %v1505
    %v1806 = vpack.c.b16 %v1514, %v1510
    %v1807 = vpack.c.b16 %v1515, %v1511
    %v1808 = vpack.c.b16 %v1516, %v1512
    %v1809 = vpack.c.b16 %v1517, %v1513
    %v1810 = vpack.c.b16 %v1522, %v1518
    %v1811 = vpack.c.b16 %v1523, %v1519
    %v1812 = vpack.c.b16 %v1524, %v1520
    %v1813 = vpack.c.b16 %v1525, %v1521
    %v1814 = vpack.c.b16 %v1530, %v1526
    %v1815 = vpack.c.b16 %v1531, %v1527
    %v1816 = vpack.c.b16 %v1532, %v1528
    %v1817 = vpack.c.b16 %v1533, %v1529
    %v1818 = vpack.c.b16 %v1538, %v1534
    %v1819 = vpack.c.b16 %v1539, %v1535
    %v1820 = vpack.c.b16 %v1540, %v1536
    %v1821 = vpack.c.b16 %v1541, %v1537
    %v1822 = vpack.c.b16 %v1546, %v1542
    %v1823 = vpack.c.b16 %v1547, %v1543
    %v1824 = vpack.c.b16 %v1548, %v1544
    %v1825 = vpack.c.b16 %v1549, %v1545
    %v1826 = vpack.c.b16 %v1554, %v1550
    %v1827 = vpack.c.b16 %v1555, %v1551
    %v1828 = vpack.c.b16 %v1556, %v1552
    %v1829 = vpack.c.b16 %v1557, %v1553
    %v1830 = vpack.c.b16 %v1562, %v1558
    %v1831 = vpack.c.b16 %v1563, %v1559
    %v1832 = vpack.c.b16 %v1564, %v1560
    %v1833 = vpack.c.b16 %v1565, %v1561
    %v1834 = vpack.c.b16 %v1570, %v1566
    %v1835 = vpack.c.b16 %v1571, %v1567
    %v1836 = vpack.c.b16 %v1572, %v1568
    %v1837 = vpack.c.b16 %v1573, %v1569
    %v1838 = vpack.c.b16 %v1578, %v1574
    %v1839 = vpack.c.b16 %v1579, %v1575
    %v1840 = vpack.c.b16 %v1580, %v1576
    %v1841 = vpack.c.b16 %v1581, %v1577
    %v1842 = vpack.c.b16 %v1586, %v1582
    %v1843 = vpack.c.b16 %v1587, %v1583
    %v1844 = vpack.c.b16 %v1588, %v1584
    %v1845 = vpack.c.b16 %v1589, %v1585
    %2102 = vmatpush.bf16.msra.mxu0 %v1618
    %2103 = vmatpush.bf16.msra.mxu0 %v1614
    %2104 = vmatpush.bf16.msra.mxu0 %v1610
    %2105 = vmatpush.bf16.msra.mxu0 %v1606
    %2106 = vmatpush.bf16.msra.mxu0 %v1602
    %2107 = vmatpush.bf16.msra.mxu0 %v1598
    %2108 = vmatpush.bf16.msra.mxu0 %v1594
    %2109 = vmatpush.bf16.msra.mxu0 %v1590
    %2110 = vmatmul.bf16.gmra.mxu0 %v548
    %v2111 = vpop.f32.mrf.mxu0
    %v2112 = vadd.f32 %v814, %v2111
    %v2113 = vpop.f32.mrf.mxu0
    %2114 = vdwg.mxu0
    %2115 = vmatpush.bf16.msra.mxu0 %v1650
    %2116 = vmatpush.bf16.msra.mxu0 %v1646
    %2117 = vmatpush.bf16.msra.mxu0 %v1642
    %2118 = vmatpush.bf16.msra.mxu0 %v1638
    %2119 = vmatpush.bf16.msra.mxu0 %v1634
    %2120 = vmatpush.bf16.msra.mxu0 %v1630
    %2121 = vmatpush.bf16.msra.mxu0 %v1626
    %2122 = vmatpush.bf16.msra.mxu0 %v1622
    %2123 = vmatmul.bf16.gmra.mxu0 %v549
    %v2124 = vpop.f32.mrf.mxu0
    %v2125 = vadd.f32 %v2112, %v2124
    %v2126 = vpop.f32.mrf.mxu0
    %2127 = vdwg.mxu0
    %2128 = vmatpush.bf16.msra.mxu0 %v1682
    %2129 = vmatpush.bf16.msra.mxu0 %v1678
    %2130 = vmatpush.bf16.msra.mxu0 %v1674
    %2131 = vmatpush.bf16.msra.mxu0 %v1670
    %2132 = vmatpush.bf16.msra.mxu0 %v1666
    %2133 = vmatpush.bf16.msra.mxu0 %v1662
    %2134 = vmatpush.bf16.msra.mxu0 %v1658
    %2135 = vmatpush.bf16.msra.mxu0 %v1654
    %2136 = vmatmul.bf16.gmra.mxu0 %v550
    %v2137 = vpop.f32.mrf.mxu0
    %v2138 = vadd.f32 %v2125, %v2137
    %v2139 = vpop.f32.mrf.mxu0
    %2140 = vdwg.mxu0
    %2141 = vmatpush.bf16.msra.mxu0 %v1714
    %2142 = vmatpush.bf16.msra.mxu0 %v1710
    %2143 = vmatpush.bf16.msra.mxu0 %v1706
    %2144 = vmatpush.bf16.msra.mxu0 %v1702
    %2145 = vmatpush.bf16.msra.mxu0 %v1698
    %2146 = vmatpush.bf16.msra.mxu0 %v1694
    %2147 = vmatpush.bf16.msra.mxu0 %v1690
    %2148 = vmatpush.bf16.msra.mxu0 %v1686
    %2149 = vmatmul.bf16.gmra.mxu0 %v551
    %v2150 = vpop.f32.mrf.mxu0
    %v2151 = vadd.f32 %v2138, %v2150
    %v2152 = vpop.f32.mrf.mxu0
    %2153 = vdwg.mxu0
    %2154 = vmatpush.bf16.msra.mxu0 %v1746
    %2155 = vmatpush.bf16.msra.mxu0 %v1742
    %2156 = vmatpush.bf16.msra.mxu0 %v1738
    %2157 = vmatpush.bf16.msra.mxu0 %v1734
    %2158 = vmatpush.bf16.msra.mxu0 %v1730
    %2159 = vmatpush.bf16.msra.mxu0 %v1726
    %2160 = vmatpush.bf16.msra.mxu0 %v1722
    %2161 = vmatpush.bf16.msra.mxu0 %v1718
    %2162 = vmatmul.bf16.gmra.mxu0 %v552
    %v2163 = vpop.f32.mrf.mxu0
    %v2164 = vadd.f32 %v2151, %v2163
    %v2165 = vpop.f32.mrf.mxu0
    %2166 = vdwg.mxu0
    %2167 = vmatpush.bf16.msra.mxu0 %v1778
    %2168 = vmatpush.bf16.msra.mxu0 %v1774
    %2169 = vmatpush.bf16.msra.mxu0 %v1770
    %2170 = vmatpush.bf16.msra.mxu0 %v1766
    %2171 = vmatpush.bf16.msra.mxu0 %v1762
    %2172 = vmatpush.bf16.msra.mxu0 %v1758
    %2173 = vmatpush.bf16.msra.mxu0 %v1754
    %2174 = vmatpush.bf16.msra.mxu0 %v1750
    %2175 = vmatmul.bf16.gmra.mxu0 %v553
    %v2176 = vpop.f32.mrf.mxu0
    %v2177 = vadd.f32 %v2164, %v2176
    %v2178 = vpop.f32.mrf.mxu0
    %2179 = vdwg.mxu0
    %2180 = vmatpush.bf16.msra.mxu0 %v1810
    %2181 = vmatpush.bf16.msra.mxu0 %v1806
    %2182 = vmatpush.bf16.msra.mxu0 %v1802
    %2183 = vmatpush.bf16.msra.mxu0 %v1798
    %2184 = vmatpush.bf16.msra.mxu0 %v1794
    %2185 = vmatpush.bf16.msra.mxu0 %v1790
    %2186 = vmatpush.bf16.msra.mxu0 %v1786
    %2187 = vmatpush.bf16.msra.mxu0 %v1782
    %2188 = vmatmul.bf16.gmra.mxu0 %v554
    %v2189 = vpop.f32.mrf.mxu0
    %v2190 = vadd.f32 %v2177, %v2189
    %v2191 = vpop.f32.mrf.mxu0
    %2192 = vdwg.mxu0
    %2193 = vmatpush.bf16.msra.mxu0 %v1842
    %2194 = vmatpush.bf16.msra.mxu0 %v1838
    %2195 = vmatpush.bf16.msra.mxu0 %v1834
    %2196 = vmatpush.bf16.msra.mxu0 %v1830
    %2197 = vmatpush.bf16.msra.mxu0 %v1826
    %2198 = vmatpush.bf16.msra.mxu0 %v1822
    %2199 = vmatpush.bf16.msra.mxu0 %v1818
    %2200 = vmatpush.bf16.msra.mxu0 %v1814
    %2201 = vmatmul.bf16.gmra.mxu0 %v555
    %v2202 = vpop.f32.mrf.mxu0
    %v2203 = vadd.f32 %v2190, %v2202
    %v2204 = vpop.f32.mrf.mxu0
    %2205 = vdwg.mxu0
    %2206 = vmatpush.bf16.msra.mxu0 %v1619
    %2207 = vmatpush.bf16.msra.mxu0 %v1615
    %2208 = vmatpush.bf16.msra.mxu0 %v1611
    %2209 = vmatpush.bf16.msra.mxu0 %v1607
    %2210 = vmatpush.bf16.msra.mxu0 %v1603
    %2211 = vmatpush.bf16.msra.mxu0 %v1599
    %2212 = vmatpush.bf16.msra.mxu0 %v1595
    %2213 = vmatpush.bf16.msra.mxu0 %v1591
    %2214 = vmatmul.bf16.gmra.mxu0 %v548
    %v2215 = vpop.f32.mrf.mxu0
    %v2216 = vadd.f32 %v815, %v2215
    %v2217 = vpop.f32.mrf.mxu0
    %2218 = vdwg.mxu0
    %2219 = vmatpush.bf16.msra.mxu0 %v1651
    %2220 = vmatpush.bf16.msra.mxu0 %v1647
    %2221 = vmatpush.bf16.msra.mxu0 %v1643
    %2222 = vmatpush.bf16.msra.mxu0 %v1639
    %2223 = vmatpush.bf16.msra.mxu0 %v1635
    %2224 = vmatpush.bf16.msra.mxu0 %v1631
    %2225 = vmatpush.bf16.msra.mxu0 %v1627
    %2226 = vmatpush.bf16.msra.mxu0 %v1623
    %2227 = vmatmul.bf16.gmra.mxu0 %v549
    %v2228 = vpop.f32.mrf.mxu0
    %v2229 = vadd.f32 %v2216, %v2228
    %v2230 = vpop.f32.mrf.mxu0
    %2231 = vdwg.mxu0
    %2232 = vmatpush.bf16.msra.mxu0 %v1683
    %2233 = vmatpush.bf16.msra.mxu0 %v1679
    %2234 = vmatpush.bf16.msra.mxu0 %v1675
    %2235 = vmatpush.bf16.msra.mxu0 %v1671
    %2236 = vmatpush.bf16.msra.mxu0 %v1667
    %2237 = vmatpush.bf16.msra.mxu0 %v1663
    %2238 = vmatpush.bf16.msra.mxu0 %v1659
    %2239 = vmatpush.bf16.msra.mxu0 %v1655
    %2240 = vmatmul.bf16.gmra.mxu0 %v550
    %v2241 = vpop.f32.mrf.mxu0
    %v2242 = vadd.f32 %v2229, %v2241
    %v2243 = vpop.f32.mrf.mxu0
    %2244 = vdwg.mxu0
    %2245 = vmatpush.bf16.msra.mxu0 %v1715
    %2246 = vmatpush.bf16.msra.mxu0 %v1711
    %2247 = vmatpush.bf16.msra.mxu0 %v1707
    %2248 = vmatpush.bf16.msra.mxu0 %v1703
    %2249 = vmatpush.bf16.msra.mxu0 %v1699
    %2250 = vmatpush.bf16.msra.mxu0 %v1695
    %2251 = vmatpush.bf16.msra.mxu0 %v1691
    %2252 = vmatpush.bf16.msra.mxu0 %v1687
    %2253 = vmatmul.bf16.gmra.mxu0 %v551
    %v2254 = vpop.f32.mrf.mxu0
    %v2255 = vadd.f32 %v2242, %v2254
    %v2256 = vpop.f32.mrf.mxu0
    %2257 = vdwg.mxu0
    %2258 = vmatpush.bf16.msra.mxu0 %v1747
    %2259 = vmatpush.bf16.msra.mxu0 %v1743
    %2260 = vmatpush.bf16.msra.mxu0 %v1739
    %2261 = vmatpush.bf16.msra.mxu0 %v1735
    %2262 = vmatpush.bf16.msra.mxu0 %v1731
    %2263 = vmatpush.bf16.msra.mxu0 %v1727
    %2264 = vmatpush.bf16.msra.mxu0 %v1723
    %2265 = vmatpush.bf16.msra.mxu0 %v1719
    %2266 = vmatmul.bf16.gmra.mxu0 %v552
    %v2267 = vpop.f32.mrf.mxu0
    %v2268 = vadd.f32 %v2255, %v2267
    %v2269 = vpop.f32.mrf.mxu0
    %2270 = vdwg.mxu0
    %2271 = vmatpush.bf16.msra.mxu0 %v1779
    %2272 = vmatpush.bf16.msra.mxu0 %v1775
    %2273 = vmatpush.bf16.msra.mxu0 %v1771
    %2274 = vmatpush.bf16.msra.mxu0 %v1767
    %2275 = vmatpush.bf16.msra.mxu0 %v1763
    %2276 = vmatpush.bf16.msra.mxu0 %v1759
    %2277 = vmatpush.bf16.msra.mxu0 %v1755
    %2278 = vmatpush.bf16.msra.mxu0 %v1751
    %2279 = vmatmul.bf16.gmra.mxu0 %v553
    %v2280 = vpop.f32.mrf.mxu0
    %v2281 = vadd.f32 %v2268, %v2280
    %v2282 = vpop.f32.mrf.mxu0
    %2283 = vdwg.mxu0
    %2284 = vmatpush.bf16.msra.mxu0 %v1811
    %2285 = vmatpush.bf16.msra.mxu0 %v1807
    %2286 = vmatpush.bf16.msra.mxu0 %v1803
    %2287 = vmatpush.bf16.msra.mxu0 %v1799
    %2288 = vmatpush.bf16.msra.mxu0 %v1795
    %2289 = vmatpush.bf16.msra.mxu0 %v1791
    %2290 = vmatpush.bf16.msra.mxu0 %v1787
    %2291 = vmatpush.bf16.msra.mxu0 %v1783
    %2292 = vmatmul.bf16.gmra.mxu0 %v554
    %v2293 = vpop.f32.mrf.mxu0
    %v2294 = vadd.f32 %v2281, %v2293
    %v2295 = vpop.f32.mrf.mxu0
    %2296 = vdwg.mxu0
    %2297 = vmatpush.bf16.msra.mxu0 %v1843
    %2298 = vmatpush.bf16.msra.mxu0 %v1839
    %2299 = vmatpush.bf16.msra.mxu0 %v1835
    %2300 = vmatpush.bf16.msra.mxu0 %v1831
    %2301 = vmatpush.bf16.msra.mxu0 %v1827
    %2302 = vmatpush.bf16.msra.mxu0 %v1823
    %2303 = vmatpush.bf16.msra.mxu0 %v1819
    %2304 = vmatpush.bf16.msra.mxu0 %v1815
    %2305 = vmatmul.bf16.gmra.mxu0 %v555
    %v2306 = vpop.f32.mrf.mxu0
    %v2307 = vadd.f32 %v2294, %v2306
    %v2308 = vpop.f32.mrf.mxu0
    %2309 = vdwg.mxu0
    %2310 = vmatpush.bf16.msra.mxu0 %v1620
    %2311 = vmatpush.bf16.msra.mxu0 %v1616
    %2312 = vmatpush.bf16.msra.mxu0 %v1612
    %2313 = vmatpush.bf16.msra.mxu0 %v1608
    %2314 = vmatpush.bf16.msra.mxu0 %v1604
    %2315 = vmatpush.bf16.msra.mxu0 %v1600
    %2316 = vmatpush.bf16.msra.mxu0 %v1596
    %2317 = vmatpush.bf16.msra.mxu0 %v1592
    %2318 = vmatmul.bf16.gmra.mxu0 %v548
    %v2319 = vpop.f32.mrf.mxu0
    %v2320 = vadd.f32 %v816, %v2319
    %v2321 = vpop.f32.mrf.mxu0
    %2322 = vdwg.mxu0
    %2323 = vmatpush.bf16.msra.mxu0 %v1652
    %2324 = vmatpush.bf16.msra.mxu0 %v1648
    %2325 = vmatpush.bf16.msra.mxu0 %v1644
    %2326 = vmatpush.bf16.msra.mxu0 %v1640
    %2327 = vmatpush.bf16.msra.mxu0 %v1636
    %2328 = vmatpush.bf16.msra.mxu0 %v1632
    %2329 = vmatpush.bf16.msra.mxu0 %v1628
    %2330 = vmatpush.bf16.msra.mxu0 %v1624
    %2331 = vmatmul.bf16.gmra.mxu0 %v549
    %v2332 = vpop.f32.mrf.mxu0
    %v2333 = vadd.f32 %v2320, %v2332
    %v2334 = vpop.f32.mrf.mxu0
    %2335 = vdwg.mxu0
    %2336 = vmatpush.bf16.msra.mxu0 %v1684
    %2337 = vmatpush.bf16.msra.mxu0 %v1680
    %2338 = vmatpush.bf16.msra.mxu0 %v1676
    %2339 = vmatpush.bf16.msra.mxu0 %v1672
    %2340 = vmatpush.bf16.msra.mxu0 %v1668
    %2341 = vmatpush.bf16.msra.mxu0 %v1664
    %2342 = vmatpush.bf16.msra.mxu0 %v1660
    %2343 = vmatpush.bf16.msra.mxu0 %v1656
    %2344 = vmatmul.bf16.gmra.mxu0 %v550
    %v2345 = vpop.f32.mrf.mxu0
    %v2346 = vadd.f32 %v2333, %v2345
    %v2347 = vpop.f32.mrf.mxu0
    %2348 = vdwg.mxu0
    %2349 = vmatpush.bf16.msra.mxu0 %v1716
    %2350 = vmatpush.bf16.msra.mxu0 %v1712
    %2351 = vmatpush.bf16.msra.mxu0 %v1708
    %2352 = vmatpush.bf16.msra.mxu0 %v1704
    %2353 = vmatpush.bf16.msra.mxu0 %v1700
    %2354 = vmatpush.bf16.msra.mxu0 %v1696
    %2355 = vmatpush.bf16.msra.mxu0 %v1692
    %2356 = vmatpush.bf16.msra.mxu0 %v1688
    %2357 = vmatmul.bf16.gmra.mxu0 %v551
    %v2358 = vpop.f32.mrf.mxu0
    %v2359 = vadd.f32 %v2346, %v2358
    %v2360 = vpop.f32.mrf.mxu0
    %2361 = vdwg.mxu0
    %2362 = vmatpush.bf16.msra.mxu0 %v1748
    %2363 = vmatpush.bf16.msra.mxu0 %v1744
    %2364 = vmatpush.bf16.msra.mxu0 %v1740
    %2365 = vmatpush.bf16.msra.mxu0 %v1736
    %2366 = vmatpush.bf16.msra.mxu0 %v1732
    %2367 = vmatpush.bf16.msra.mxu0 %v1728
    %2368 = vmatpush.bf16.msra.mxu0 %v1724
    %2369 = vmatpush.bf16.msra.mxu0 %v1720
    %2370 = vmatmul.bf16.gmra.mxu0 %v552
    %v2371 = vpop.f32.mrf.mxu0
    %v2372 = vadd.f32 %v2359, %v2371
    %v2373 = vpop.f32.mrf.mxu0
    %2374 = vdwg.mxu0
    %2375 = vmatpush.bf16.msra.mxu0 %v1780
    %2376 = vmatpush.bf16.msra.mxu0 %v1776
    %2377 = vmatpush.bf16.msra.mxu0 %v1772
    %2378 = vmatpush.bf16.msra.mxu0 %v1768
    %2379 = vmatpush.bf16.msra.mxu0 %v1764
    %2380 = vmatpush.bf16.msra.mxu0 %v1760
    %2381 = vmatpush.bf16.msra.mxu0 %v1756
    %2382 = vmatpush.bf16.msra.mxu0 %v1752
    %2383 = vmatmul.bf16.gmra.mxu0 %v553
    %v2384 = vpop.f32.mrf.mxu0
    %v2385 = vadd.f32 %v2372, %v2384
    %v2386 = vpop.f32.mrf.mxu0
    %2387 = vdwg.mxu0
    %2388 = vmatpush.bf16.msra.mxu0 %v1812
    %2389 = vmatpush.bf16.msra.mxu0 %v1808
    %2390 = vmatpush.bf16.msra.mxu0 %v1804
    %2391 = vmatpush.bf16.msra.mxu0 %v1800
    %2392 = vmatpush.bf16.msra.mxu0 %v1796
    %2393 = vmatpush.bf16.msra.mxu0 %v1792
    %2394 = vmatpush.bf16.msra.mxu0 %v1788
    %2395 = vmatpush.bf16.msra.mxu0 %v1784
    %2396 = vmatmul.bf16.gmra.mxu0 %v554
    %v2397 = vpop.f32.mrf.mxu0
    %v2398 = vadd.f32 %v2385, %v2397
    %v2399 = vpop.f32.mrf.mxu0
    %2400 = vdwg.mxu0
    %2401 = vmatpush.bf16.msra.mxu0 %v1844
    %2402 = vmatpush.bf16.msra.mxu0 %v1840
    %2403 = vmatpush.bf16.msra.mxu0 %v1836
    %2404 = vmatpush.bf16.msra.mxu0 %v1832
    %2405 = vmatpush.bf16.msra.mxu0 %v1828
    %2406 = vmatpush.bf16.msra.mxu0 %v1824
    %2407 = vmatpush.bf16.msra.mxu0 %v1820
    %2408 = vmatpush.bf16.msra.mxu0 %v1816
    %2409 = vmatmul.bf16.gmra.mxu0 %v555
    %v2410 = vpop.f32.mrf.mxu0
    %v2411 = vadd.f32 %v2398, %v2410
    %v2412 = vpop.f32.mrf.mxu0
    %2413 = vdwg.mxu0
    %2414 = vmatpush.bf16.msra.mxu0 %v1621
    %2415 = vmatpush.bf16.msra.mxu0 %v1617
    %2416 = vmatpush.bf16.msra.mxu0 %v1613
    %2417 = vmatpush.bf16.msra.mxu0 %v1609
    %2418 = vmatpush.bf16.msra.mxu0 %v1605
    %2419 = vmatpush.bf16.msra.mxu0 %v1601
    %2420 = vmatpush.bf16.msra.mxu0 %v1597
    %2421 = vmatpush.bf16.msra.mxu0 %v1593
    %2422 = vmatmul.bf16.gmra.mxu0 %v548
    %v2423 = vpop.f32.mrf.mxu0
    %v2424 = vadd.f32 %v817, %v2423
    %v2425 = vpop.f32.mrf.mxu0
    %2426 = vdwg.mxu0
    %2427 = vmatpush.bf16.msra.mxu0 %v1653
    %2428 = vmatpush.bf16.msra.mxu0 %v1649
    %2429 = vmatpush.bf16.msra.mxu0 %v1645
    %2430 = vmatpush.bf16.msra.mxu0 %v1641
    %2431 = vmatpush.bf16.msra.mxu0 %v1637
    %2432 = vmatpush.bf16.msra.mxu0 %v1633
    %2433 = vmatpush.bf16.msra.mxu0 %v1629
    %2434 = vmatpush.bf16.msra.mxu0 %v1625
    %2435 = vmatmul.bf16.gmra.mxu0 %v549
    %v2436 = vpop.f32.mrf.mxu0
    %v2437 = vadd.f32 %v2424, %v2436
    %v2438 = vpop.f32.mrf.mxu0
    %2439 = vdwg.mxu0
    %2440 = vmatpush.bf16.msra.mxu0 %v1685
    %2441 = vmatpush.bf16.msra.mxu0 %v1681
    %2442 = vmatpush.bf16.msra.mxu0 %v1677
    %2443 = vmatpush.bf16.msra.mxu0 %v1673
    %2444 = vmatpush.bf16.msra.mxu0 %v1669
    %2445 = vmatpush.bf16.msra.mxu0 %v1665
    %2446 = vmatpush.bf16.msra.mxu0 %v1661
    %2447 = vmatpush.bf16.msra.mxu0 %v1657
    %2448 = vmatmul.bf16.gmra.mxu0 %v550
    %v2449 = vpop.f32.mrf.mxu0
    %v2450 = vadd.f32 %v2437, %v2449
    %v2451 = vpop.f32.mrf.mxu0
    %2452 = vdwg.mxu0
    %2453 = vmatpush.bf16.msra.mxu0 %v1717
    %2454 = vmatpush.bf16.msra.mxu0 %v1713
    %2455 = vmatpush.bf16.msra.mxu0 %v1709
    %2456 = vmatpush.bf16.msra.mxu0 %v1705
    %2457 = vmatpush.bf16.msra.mxu0 %v1701
    %2458 = vmatpush.bf16.msra.mxu0 %v1697
    %2459 = vmatpush.bf16.msra.mxu0 %v1693
    %2460 = vmatpush.bf16.msra.mxu0 %v1689
    %2461 = vmatmul.bf16.gmra.mxu0 %v551
    %v2462 = vpop.f32.mrf.mxu0
    %v2463 = vadd.f32 %v2450, %v2462
    %v2464 = vpop.f32.mrf.mxu0
    %2465 = vdwg.mxu0
    %2466 = vmatpush.bf16.msra.mxu0 %v1749
    %2467 = vmatpush.bf16.msra.mxu0 %v1745
    %2468 = vmatpush.bf16.msra.mxu0 %v1741
    %2469 = vmatpush.bf16.msra.mxu0 %v1737
    %2470 = vmatpush.bf16.msra.mxu0 %v1733
    %2471 = vmatpush.bf16.msra.mxu0 %v1729
    %2472 = vmatpush.bf16.msra.mxu0 %v1725
    %2473 = vmatpush.bf16.msra.mxu0 %v1721
    %2474 = vmatmul.bf16.gmra.mxu0 %v552
    %v2475 = vpop.f32.mrf.mxu0
    %v2476 = vadd.f32 %v2463, %v2475
    %v2477 = vpop.f32.mrf.mxu0
    %2478 = vdwg.mxu0
    %2479 = vmatpush.bf16.msra.mxu0 %v1781
    %2480 = vmatpush.bf16.msra.mxu0 %v1777
    %2481 = vmatpush.bf16.msra.mxu0 %v1773
    %2482 = vmatpush.bf16.msra.mxu0 %v1769
    %2483 = vmatpush.bf16.msra.mxu0 %v1765
    %2484 = vmatpush.bf16.msra.mxu0 %v1761
    %2485 = vmatpush.bf16.msra.mxu0 %v1757
    %2486 = vmatpush.bf16.msra.mxu0 %v1753
    %2487 = vmatmul.bf16.gmra.mxu0 %v553
    %v2488 = vpop.f32.mrf.mxu0
    %v2489 = vadd.f32 %v2476, %v2488
    %v2490 = vpop.f32.mrf.mxu0
    %2491 = vdwg.mxu0
    %2492 = vmatpush.bf16.msra.mxu0 %v1813
    %2493 = vmatpush.bf16.msra.mxu0 %v1809
    %2494 = vmatpush.bf16.msra.mxu0 %v1805
    %2495 = vmatpush.bf16.msra.mxu0 %v1801
    %2496 = vmatpush.bf16.msra.mxu0 %v1797
    %2497 = vmatpush.bf16.msra.mxu0 %v1793
    %2498 = vmatpush.bf16.msra.mxu0 %v1789
    %2499 = vmatpush.bf16.msra.mxu0 %v1785
    %2500 = vmatmul.bf16.gmra.mxu0 %v554
    %v2501 = vpop.f32.mrf.mxu0
    %v2502 = vadd.f32 %v2489, %v2501
    %v2503 = vpop.f32.mrf.mxu0
    %2504 = vdwg.mxu0
    %2505 = vmatpush.bf16.msra.mxu0 %v1845
    %2506 = vmatpush.bf16.msra.mxu0 %v1841
    %2507 = vmatpush.bf16.msra.mxu0 %v1837
    %2508 = vmatpush.bf16.msra.mxu0 %v1833
    %2509 = vmatpush.bf16.msra.mxu0 %v1829
    %2510 = vmatpush.bf16.msra.mxu0 %v1825
    %2511 = vmatpush.bf16.msra.mxu0 %v1821
    %2512 = vmatpush.bf16.msra.mxu0 %v1817
    %2513 = vmatmul.bf16.gmra.mxu0 %v555
    %v2514 = vpop.f32.mrf.mxu0
    %v2515 = vadd.f32 %v2502, %v2514
    %v2516 = vpop.f32.mrf.mxu0
    %2517 = vdwg.mxu0
    %v2518 = vmax.f32 %v2203, 0.0
    %v2519 = vmax.f32 %v2307, 0.0
    %v2520 = vmax.f32 %v2411, 0.0
    %v2521 = vmax.f32 %v2515, 0.0
    %v2522 = vpack.c.bf16 %v2518, %v2518
    %v2523 = vpack.c.bf16 %v2519, %v2519
    %v2524 = vpack.c.bf16 %v2520, %v2520
    %v2525 = vpack.c.bf16 %v2521, %v2521
    %v2526 = vld [vmem:[%s5] sm:$0xff]
    %v2527 = vld [vmem:[%s5 + $0x8] sm:$0xff]
    %v2528 = vld [vmem:[%s5 + $0x10] sm:$0xff]
    %v2529 = vld [vmem:[%s5 + $0x18] sm:$0xff]
    %v2530 = vld [vmem:[%s5 + $0x20] sm:$0xff]
    %v2531 = vld [vmem:[%s5 + $0x28] sm:$0xff]
    %v2532 = vld [vmem:[%s5 + $0x30] sm:$0xff]
    %v2533 = vld [vmem:[%s5 + $0x38] sm:$0xff]
    %v2534 = vld [vmem:[%s5 + $0x40] sm:$0xff]
    %v2535 = vld [vmem:[%s5 + $0x48] sm:$0xff]
    %v2536 = vld [vmem:[%s5 + $0x50] sm:$0xff]
    %v2537 = vld [vmem:[%s5 + $0x58] sm:$0xff]
    %v2538 = vld [vmem:[%s5 + $0x60] sm:$0xff]
    %v2539 = vld [vmem:[%s5 + $0x68] sm:$0xff]
    %v2540 = vld [vmem:[%s5 + $0x70] sm:$0xff]
    %v2541 = vld [vmem:[%s5 + $0x78] sm:$0xff]
    %v2542 = vld [vmem:[%s5 + $0x80] sm:$0xff]
    %v2543 = vld [vmem:[%s5 + $0x88] sm:$0xff]
    %v2544 = vld [vmem:[%s5 + $0x90] sm:$0xff]
    %v2545 = vld [vmem:[%s5 + $0x98] sm:$0xff]
    %v2546 = vld [vmem:[%s5 + $0xa0] sm:$0xff]
    %v2547 = vld [vmem:[%s5 + $0xa8] sm:$0xff]
    %v2548 = vld [vmem:[%s5 + $0xb0] sm:$0xff]
    %v2549 = vld [vmem:[%s5 + $0xb8] sm:$0xff]
    %v2550 = vld [vmem:[%s5 + $0xc0] sm:$0xff]
    %v2551 = vld [vmem:[%s5 + $0xc8] sm:$0xff]
    %v2552 = vld [vmem:[%s5 + $0xd0] sm:$0xff]
    %v2553 = vld [vmem:[%s5 + $0xd8] sm:$0xff]
    %v2554 = vld [vmem:[%s5 + $0xe0] sm:$0xff]
    %v2555 = vld [vmem:[%s5 + $0xe8] sm:$0xff]
    %v2556 = vld [vmem:[%s5 + $0xf0] sm:$0xff]
    %v2557 = vld [vmem:[%s5 + $0xf8] sm:$0xff]
    %v2558 = vld [vmem:[%s5 + $0x100] sm:$0xff]
    %v2559 = vld [vmem:[%s5 + $0x108] sm:$0xff]
    %v2560 = vld [vmem:[%s5 + $0x110] sm:$0xff]
    %v2561 = vld [vmem:[%s5 + $0x118] sm:$0xff]
    %v2562 = vld [vmem:[%s5 + $0x120] sm:$0xff]
    %v2563 = vld [vmem:[%s5 + $0x128] sm:$0xff]
    %v2564 = vld [vmem:[%s5 + $0x130] sm:$0xff]
    %v2565 = vld [vmem:[%s5 + $0x138] sm:$0xff]
    %v2566 = vld [vmem:[%s5 + $0x140] sm:$0xff]
    %v2567 = vld [vmem:[%s5 + $0x148] sm:$0xff]
    %v2568 = vld [vmem:[%s5 + $0x150] sm:$0xff]
    %v2569 = vld [vmem:[%s5 + $0x158] sm:$0xff]
    %v2570 = vld [vmem:[%s5 + $0x160] sm:$0xff]
    %v2571 = vld [vmem:[%s5 + $0x168] sm:$0xff]
    %v2572 = vld [vmem:[%s5 + $0x170] sm:$0xff]
    %v2573 = vld [vmem:[%s5 + $0x178] sm:$0xff]
    %v2574 = vld [vmem:[%s5 + $0x180] sm:$0xff]
    %v2575 = vld [vmem:[%s5 + $0x188] sm:$0xff]
    %v2576 = vld [vmem:[%s5 + $0x190] sm:$0xff]
    %v2577 = vld [vmem:[%s5 + $0x198] sm:$0xff]
    %v2578 = vld [vmem:[%s5 + $0x1a0] sm:$0xff]
    %v2579 = vld [vmem:[%s5 + $0x1a8] sm:$0xff]
    %v2580 = vld [vmem:[%s5 + $0x1b0] sm:$0xff]
    %v2581 = vld [vmem:[%s5 + $0x1b8] sm:$0xff]
    %v2582 = vld [vmem:[%s5 + $0x1c0] sm:$0xff]
    %v2583 = vld [vmem:[%s5 + $0x1c8] sm:$0xff]
    %v2584 = vld [vmem:[%s5 + $0x1d0] sm:$0xff]
    %v2585 = vld [vmem:[%s5 + $0x1d8] sm:$0xff]
    %v2586 = vld [vmem:[%s5 + $0x1e0] sm:$0xff]
    %v2587 = vld [vmem:[%s5 + $0x1e8] sm:$0xff]
    %v2588 = vld [vmem:[%s5 + $0x1f0] sm:$0xff]
    %v2589 = vld [vmem:[%s5 + $0x1f8] sm:$0xff]
    %v2590 = vld [vmem:[%s6] sm:$0x3]
    %v2592 = vperm.slane %v2590, 0
    %v2593 = vperm.slane %v2590, 1
    %v2660 = vunpack.c.l.b16 %v2526
    %v2661 = vunpack.c.h.b16 %v2526
    %v2662 = vunpack.c.l.b16 %v2527
    %v2663 = vunpack.c.h.b16 %v2527
    %v2664 = vunpack.c.l.b16 %v2528
    %v2665 = vunpack.c.h.b16 %v2528
    %v2666 = vunpack.c.l.b16 %v2529
    %v2667 = vunpack.c.h.b16 %v2529
    %v2668 = vunpack.c.l.b16 %v2530
    %v2669 = vunpack.c.h.b16 %v2530
    %v2670 = vunpack.c.l.b16 %v2531
    %v2671 = vunpack.c.h.b16 %v2531
    %v2672 = vunpack.c.l.b16 %v2532
    %v2673 = vunpack.c.h.b16 %v2532
    %v2674 = vunpack.c.l.b16 %v2533
    %v2675 = vunpack.c.h.b16 %v2533
    %v2676 = vunpack.c.l.b16 %v2534
    %v2677 = vunpack.c.h.b16 %v2534
    %v2678 = vunpack.c.l.b16 %v2535
    %v2679 = vunpack.c.h.b16 %v2535
    %v2680 = vunpack.c.l.b16 %v2536
    %v2681 = vunpack.c.h.b16 %v2536
    %v2682 = vunpack.c.l.b16 %v2537
    %v2683 = vunpack.c.h.b16 %v2537
    %v2684 = vunpack.c.l.b16 %v2538
    %v2685 = vunpack.c.h.b16 %v2538
    %v2686 = vunpack.c.l.b16 %v2539
    %v2687 = vunpack.c.h.b16 %v2539
    %v2688 = vunpack.c.l.b16 %v2540
    %v2689 = vunpack.c.h.b16 %v2540
    %v2690 = vunpack.c.l.b16 %v2541
    %v2691 = vunpack.c.h.b16 %v2541
    %v2692 = vunpack.c.l.b16 %v2542
    %v2693 = vunpack.c.h.b16 %v2542
    %v2694 = vunpack.c.l.b16 %v2543
    %v2695 = vunpack.c.h.b16 %v2543
    %v2696 = vunpack.c.l.b16 %v2544
    %v2697 = vunpack.c.h.b16 %v2544
    %v2698 = vunpack.c.l.b16 %v2545
    %v2699 = vunpack.c.h.b16 %v2545
    %v2700 = vunpack.c.l.b16 %v2546
    %v2701 = vunpack.c.h.b16 %v2546
    %v2702 = vunpack.c.l.b16 %v2547
    %v2703 = vunpack.c.h.b16 %v2547
    %v2704 = vunpack.c.l.b16 %v2548
    %v2705 = vunpack.c.h.b16 %v2548
    %v2706 = vunpack.c.l.b16 %v2549
    %v2707 = vunpack.c.h.b16 %v2549
    %v2708 = vunpack.c.l.b16 %v2550
    %v2709 = vunpack.c.h.b16 %v2550
    %v2710 = vunpack.c.l.b16 %v2551
    %v2711 = vunpack.c.h.b16 %v2551
    %v2712 = vunpack.c.l.b16 %v2552
    %v2713 = vunpack.c.h.b16 %v2552
    %v2714 = vunpack.c.l.b16 %v2553
    %v2715 = vunpack.c.h.b16 %v2553
    %v2716 = vunpack.c.l.b16 %v2554
    %v2717 = vunpack.c.h.b16 %v2554
    %v2718 = vunpack.c.l.b16 %v2555
    %v2719 = vunpack.c.h.b16 %v2555
    %v2720 = vunpack.c.l.b16 %v2556
    %v2721 = vunpack.c.h.b16 %v2556
    %v2722 = vunpack.c.l.b16 %v2557
    %v2723 = vunpack.c.h.b16 %v2557
    %v2724 = vunpack.c.l.b16 %v2558
    %v2725 = vunpack.c.h.b16 %v2558
    %v2726 = vunpack.c.l.b16 %v2559
    %v2727 = vunpack.c.h.b16 %v2559
    %v2728 = vunpack.c.l.b16 %v2560
    %v2729 = vunpack.c.h.b16 %v2560
    %v2730 = vunpack.c.l.b16 %v2561
    %v2731 = vunpack.c.h.b16 %v2561
    %v2732 = vunpack.c.l.b16 %v2562
    %v2733 = vunpack.c.h.b16 %v2562
    %v2734 = vunpack.c.l.b16 %v2563
    %v2735 = vunpack.c.h.b16 %v2563
    %v2736 = vunpack.c.l.b16 %v2564
    %v2737 = vunpack.c.h.b16 %v2564
    %v2738 = vunpack.c.l.b16 %v2565
    %v2739 = vunpack.c.h.b16 %v2565
    %v2740 = vunpack.c.l.b16 %v2566
    %v2741 = vunpack.c.h.b16 %v2566
    %v2742 = vunpack.c.l.b16 %v2567
    %v2743 = vunpack.c.h.b16 %v2567
    %v2744 = vunpack.c.l.b16 %v2568
    %v2745 = vunpack.c.h.b16 %v2568
    %v2746 = vunpack.c.l.b16 %v2569
    %v2747 = vunpack.c.h.b16 %v2569
    %v2748 = vunpack.c.l.b16 %v2570
    %v2749 = vunpack.c.h.b16 %v2570
    %v2750 = vunpack.c.l.b16 %v2571
    %v2751 = vunpack.c.h.b16 %v2571
    %v2752 = vunpack.c.l.b16 %v2572
    %v2753 = vunpack.c.h.b16 %v2572
    %v2754 = vunpack.c.l.b16 %v2573
    %v2755 = vunpack.c.h.b16 %v2573
    %v2756 = vunpack.c.l.b16 %v2574
    %v2757 = vunpack.c.h.b16 %v2574
    %v2758 = vunpack.c.l.b16 %v2575
    %v2759 = vunpack.c.h.b16 %v2575
    %v2760 = vunpack.c.l.b16 %v2576
    %v2761 = vunpack.c.h.b16 %v2576
    %v2762 = vunpack.c.l.b16 %v2577
    %v2763 = vunpack.c.h.b16 %v2577
    %v2764 = vunpack.c.l.b16 %v2578
    %v2765 = vunpack.c.h.b16 %v2578
    %v2766 = vunpack.c.l.b16 %v2579
    %v2767 = vunpack.c.h.b16 %v2579
    %v2768 = vunpack.c.l.b16 %v2580
    %v2769 = vunpack.c.h.b16 %v2580
    %v2770 = vunpack.c.l.b16 %v2581
    %v2771 = vunpack.c.h.b16 %v2581
    %v2772 = vunpack.c.l.b16 %v2582
    %v2773 = vunpack.c.h.b16 %v2582
    %v2774 = vunpack.c.l.b16 %v2583
    %v2775 = vunpack.c.h.b16 %v2583
    %v2776 = vunpack.c.l.b16 %v2584
    %v2777 = vunpack.c.h.b16 %v2584
    %v2778 = vunpack.c.l.b16 %v2585
    %v2779 = vunpack.c.h.b16 %v2585
    %v2780 = vunpack.c.l.b16 %v2586
    %v2781 = vunpack.c.h.b16 %v2586
    %v2782 = vunpack.c.l.b16 %v2587
    %v2783 = vunpack.c.h.b16 %v2587
    %v2784 = vunpack.c.l.b16 %v2588
    %v2785 = vunpack.c.h.b16 %v2588
    %v2786 = vunpack.c.l.b16 %v2589
    %v2787 = vunpack.c.h.b16 %v2589
    %v2788 = vpack.c.b16 %v2662, %v2660
    %v2789 = vpack.c.b16 %v2663, %v2661
    %v2790 = vpack.c.b16 %v2666, %v2664
    %v2791 = vpack.c.b16 %v2667, %v2665
    %v2792 = vpack.c.b16 %v2670, %v2668
    %v2793 = vpack.c.b16 %v2671, %v2669
    %v2794 = vpack.c.b16 %v2674, %v2672
    %v2795 = vpack.c.b16 %v2675, %v2673
    %v2796 = vpack.c.b16 %v2678, %v2676
    %v2797 = vpack.c.b16 %v2679, %v2677
    %v2798 = vpack.c.b16 %v2682, %v2680
    %v2799 = vpack.c.b16 %v2683, %v2681
    %v2800 = vpack.c.b16 %v2686, %v2684
    %v2801 = vpack.c.b16 %v2687, %v2685
    %v2802 = vpack.c.b16 %v2690, %v2688
    %v2803 = vpack.c.b16 %v2691, %v2689
    %v2804 = vpack.c.b16 %v2694, %v2692
    %v2805 = vpack.c.b16 %v2695, %v2693
    %v2806 = vpack.c.b16 %v2698, %v2696
    %v2807 = vpack.c.b16 %v2699, %v2697
    %v2808 = vpack.c.b16 %v2702, %v2700
    %v2809 = vpack.c.b16 %v2703, %v2701
    %v2810 = vpack.c.b16 %v2706, %v2704
    %v2811 = vpack.c.b16 %v2707, %v2705
    %v2812 = vpack.c.b16 %v2710, %v2708
    %v2813 = vpack.c.b16 %v2711, %v2709
    %v2814 = vpack.c.b16 %v2714, %v2712
    %v2815 = vpack.c.b16 %v2715, %v2713
    %v2816 = vpack.c.b16 %v2718, %v2716
    %v2817 = vpack.c.b16 %v2719, %v2717
    %v2818 = vpack.c.b16 %v2722, %v2720
    %v2819 = vpack.c.b16 %v2723, %v2721
    %v2820 = vpack.c.b16 %v2726, %v2724
    %v2821 = vpack.c.b16 %v2727, %v2725
    %v2822 = vpack.c.b16 %v2730, %v2728
    %v2823 = vpack.c.b16 %v2731, %v2729
    %v2824 = vpack.c.b16 %v2734, %v2732
    %v2825 = vpack.c.b16 %v2735, %v2733
    %v2826 = vpack.c.b16 %v2738, %v2736
    %v2827 = vpack.c.b16 %v2739, %v2737
    %v2828 = vpack.c.b16 %v2742, %v2740
    %v2829 = vpack.c.b16 %v2743, %v2741
    %v2830 = vpack.c.b16 %v2746, %v2744
    %v2831 = vpack.c.b16 %v2747, %v2745
    %v2832 = vpack.c.b16 %v2750, %v2748
    %v2833 = vpack.c.b16 %v2751, %v2749
    %v2834 = vpack.c.b16 %v2754, %v2752
    %v2835 = vpack.c.b16 %v2755, %v2753
    %v2836 = vpack.c.b16 %v2758, %v2756
    %v2837 = vpack.c.b16 %v2759, %v2757
    %v2838 = vpack.c.b16 %v2762, %v2760
    %v2839 = vpack.c.b16 %v2763, %v2761
    %v2840 = vpack.c.b16 %v2766, %v2764
    %v2841 = vpack.c.b16 %v2767, %v2765
    %v2842 = vpack.c.b16 %v2770, %v2768
    %v2843 = vpack.c.b16 %v2771, %v2769
    %v2844 = vpack.c.b16 %v2774, %v2772
    %v2845 = vpack.c.b16 %v2775, %v2773
    %v2846 = vpack.c.b16 %v2778, %v2776
    %v2847 = vpack.c.b16 %v2779, %v2777
    %v2848 = vpack.c.b16 %v2782, %v2780
    %v2849 = vpack.c.b16 %v2783, %v2781
    %v2850 = vpack.c.b16 %v2786, %v2784
    %v2851 = vpack.c.b16 %v2787, %v2785
    %2916 = vmatpush.bf16.msra.mxu0 %v2802
    %2917 = vmatpush.bf16.msra.mxu0 %v2800
    %2918 = vmatpush.bf16.msra.mxu0 %v2798
    %2919 = vmatpush.bf16.msra.mxu0 %v2796
    %2920 = vmatpush.bf16.msra.mxu0 %v2794
    %2921 = vmatpush.bf16.msra.mxu0 %v2792
    %2922 = vmatpush.bf16.msra.mxu0 %v2790
    %2923 = vmatpush.bf16.msra.mxu0 %v2788
    %2924 = vmatmul.bf16.gmra.mxu0 %v2522
    %v2925 = vpop.f32.mrf.mxu0
    %v2926 = vadd.f32 %v2592, %v2925
    %v2927 = vpop.f32.mrf.mxu0
    %2928 = vdwg.mxu0
    %2929 = vmatpush.bf16.msra.mxu0 %v2818
    %2930 = vmatpush.bf16.msra.mxu0 %v2816
    %2931 = vmatpush.bf16.msra.mxu0 %v2814
    %2932 = vmatpush.bf16.msra.mxu0 %v2812
    %2933 = vmatpush.bf16.msra.mxu0 %v2810
    %2934 = vmatpush.bf16.msra.mxu0 %v2808
    %2935 = vmatpush.bf16.msra.mxu0 %v2806
    %2936 = vmatpush.bf16.msra.mxu0 %v2804
    %2937 = vmatmul.bf16.gmra.mxu0 %v2523
    %v2938 = vpop.f32.mrf.mxu0
    %v2939 = vadd.f32 %v2926, %v2938
    %v2940 = vpop.f32.mrf.mxu0
    %2941 = vdwg.mxu0
    %2942 = vmatpush.bf16.msra.mxu0 %v2834
    %2943 = vmatpush.bf16.msra.mxu0 %v2832
    %2944 = vmatpush.bf16.msra.mxu0 %v2830
    %2945 = vmatpush.bf16.msra.mxu0 %v2828
    %2946 = vmatpush.bf16.msra.mxu0 %v2826
    %2947 = vmatpush.bf16.msra.mxu0 %v2824
    %2948 = vmatpush.bf16.msra.mxu0 %v2822
    %2949 = vmatpush.bf16.msra.mxu0 %v2820
    %2950 = vmatmul.bf16.gmra.mxu0 %v2524
    %v2951 = vpop.f32.mrf.mxu0
    %v2952 = vadd.f32 %v2939, %v2951
    %v2953 = vpop.f32.mrf.mxu0
    %2954 = vdwg.mxu0
    %2955 = vmatpush.bf16.msra.mxu0 %v2850
    %2956 = vmatpush.bf16.msra.mxu0 %v2848
    %2957 = vmatpush.bf16.msra.mxu0 %v2846
    %2958 = vmatpush.bf16.msra.mxu0 %v2844
    %2959 = vmatpush.bf16.msra.mxu0 %v2842
    %2960 = vmatpush.bf16.msra.mxu0 %v2840
    %2961 = vmatpush.bf16.msra.mxu0 %v2838
    %2962 = vmatpush.bf16.msra.mxu0 %v2836
    %2963 = vmatmul.bf16.gmra.mxu0 %v2525
    %v2964 = vpop.f32.mrf.mxu0
    %v2965 = vadd.f32 %v2952, %v2964
    %v2966 = vpop.f32.mrf.mxu0
    %2967 = vdwg.mxu0
    %2968 = vmatpush.bf16.msra.mxu0 %v2803
    %2969 = vmatpush.bf16.msra.mxu0 %v2801
    %2970 = vmatpush.bf16.msra.mxu0 %v2799
    %2971 = vmatpush.bf16.msra.mxu0 %v2797
    %2972 = vmatpush.bf16.msra.mxu0 %v2795
    %2973 = vmatpush.bf16.msra.mxu0 %v2793
    %2974 = vmatpush.bf16.msra.mxu0 %v2791
    %2975 = vmatpush.bf16.msra.mxu0 %v2789
    %2976 = vmatmul.bf16.gmra.mxu0 %v2522
    %v2977 = vpop.f32.mrf.mxu0
    %v2978 = vadd.f32 %v2593, %v2977
    %v2979 = vpop.f32.mrf.mxu0
    %2980 = vdwg.mxu0
    %2981 = vmatpush.bf16.msra.mxu0 %v2819
    %2982 = vmatpush.bf16.msra.mxu0 %v2817
    %2983 = vmatpush.bf16.msra.mxu0 %v2815
    %2984 = vmatpush.bf16.msra.mxu0 %v2813
    %2985 = vmatpush.bf16.msra.mxu0 %v2811
    %2986 = vmatpush.bf16.msra.mxu0 %v2809
    %2987 = vmatpush.bf16.msra.mxu0 %v2807
    %2988 = vmatpush.bf16.msra.mxu0 %v2805
    %2989 = vmatmul.bf16.gmra.mxu0 %v2523
    %v2990 = vpop.f32.mrf.mxu0
    %v2991 = vadd.f32 %v2978, %v2990
    %v2992 = vpop.f32.mrf.mxu0
    %2993 = vdwg.mxu0
    %2994 = vmatpush.bf16.msra.mxu0 %v2835
    %2995 = vmatpush.bf16.msra.mxu0 %v2833
    %2996 = vmatpush.bf16.msra.mxu0 %v2831
    %2997 = vmatpush.bf16.msra.mxu0 %v2829
    %2998 = vmatpush.bf16.msra.mxu0 %v2827
    %2999 = vmatpush.bf16.msra.mxu0 %v2825
    %3000 = vmatpush.bf16.msra.mxu0 %v2823
    %3001 = vmatpush.bf16.msra.mxu0 %v2821
    %3002 = vmatmul.bf16.gmra.mxu0 %v2524
    %v3003 = vpop.f32.mrf.mxu0
    %v3004 = vadd.f32 %v2991, %v3003
    %v3005 = vpop.f32.mrf.mxu0
    %3006 = vdwg.mxu0
    %3007 = vmatpush.bf16.msra.mxu0 %v2851
    %3008 = vmatpush.bf16.msra.mxu0 %v2849
    %3009 = vmatpush.bf16.msra.mxu0 %v2847
    %3010 = vmatpush.bf16.msra.mxu0 %v2845
    %3011 = vmatpush.bf16.msra.mxu0 %v2843
    %3012 = vmatpush.bf16.msra.mxu0 %v2841
    %3013 = vmatpush.bf16.msra.mxu0 %v2839
    %3014 = vmatpush.bf16.msra.mxu0 %v2837
    %3015 = vmatmul.bf16.gmra.mxu0 %v2525
    %v3016 = vpop.f32.mrf.mxu0
    %v3017 = vadd.f32 %v3004, %v3016
    %v3018 = vpop.f32.mrf.mxu0
    %3019 = vdwg.mxu0
    %v3020 = vmax.f32 %v2965, 0.0
    %v3021 = vmax.f32 %v3017, 0.0
    %v3022 = vpack.c.bf16 %v3020, %v3020
    %v3023 = vpack.c.bf16 %v3021, %v3021
    %v3024 = vld [vmem:[%s7] sm:$0xf]
    %v3025 = vld [vmem:[%s7 + $0x4] sm:$0xf]
    %v3026 = vld [vmem:[%s7 + $0x8] sm:$0xf]
    %v3027 = vld [vmem:[%s7 + $0xc] sm:$0xf]
    %v3028 = vld [vmem:[%s7 + $0x10] sm:$0xf]
    %v3029 = vld [vmem:[%s7 + $0x14] sm:$0xf]
    %v3030 = vld [vmem:[%s7 + $0x18] sm:$0xf]
    %v3031 = vld [vmem:[%s7 + $0x1c] sm:$0xf]
    %v3032 = vld [vmem:[%s7 + $0x20] sm:$0xf]
    %v3033 = vld [vmem:[%s7 + $0x24] sm:$0xf]
    %v3034 = vld [vmem:[%s7 + $0x28] sm:$0xf]
    %v3035 = vld [vmem:[%s7 + $0x2c] sm:$0xf]
    %v3036 = vld [vmem:[%s7 + $0x30] sm:$0xf]
    %v3037 = vld [vmem:[%s7 + $0x34] sm:$0xf]
    %v3038 = vld [vmem:[%s7 + $0x38] sm:$0xf]
    %v3039 = vld [vmem:[%s7 + $0x3c] sm:$0xf]
    %v3040 = vld [vmem:[%s7 + $0x40] sm:$0xf]
    %v3041 = vld [vmem:[%s7 + $0x44] sm:$0xf]
    %v3042 = vld [vmem:[%s7 + $0x48] sm:$0xf]
    %v3043 = vld [vmem:[%s7 + $0x4c] sm:$0xf]
    %v3044 = vld [vmem:[%s7 + $0x50] sm:$0xf]
    %v3045 = vld [vmem:[%s7 + $0x54] sm:$0xf]
    %v3046 = vld [vmem:[%s7 + $0x58] sm:$0xf]
    %v3047 = vld [vmem:[%s7 + $0x5c] sm:$0xf]
    %v3048 = vld [vmem:[%s7 + $0x60] sm:$0xf]
    %v3049 = vld [vmem:[%s7 + $0x64] sm:$0xf]
    %v3050 = vld [vmem:[%s7 + $0x68] sm:$0xf]
    %v3051 = vld [vmem:[%s7 + $0x6c] sm:$0xf]
    %v3052 = vld [vmem:[%s7 + $0x70] sm:$0xf]
    %v3053 = vld [vmem:[%s7 + $0x74] sm:$0xf]
    %v3054 = vld [vmem:[%s7 + $0x78] sm:$0xf]
    %v3055 = vld [vmem:[%s7 + $0x7c] sm:$0xf]
    %v3056 = vld [vmem:[%s8] sm:$0x1]
    %v3058 = vperm.slane %v3056, 0
    %v3092 = vunpack.c.l.b16 %v3024
    %v3093 = vunpack.c.l.b16 %v3025
    %v3094 = vunpack.c.l.b16 %v3026
    %v3095 = vunpack.c.l.b16 %v3027
    %v3096 = vunpack.c.l.b16 %v3028
    %v3097 = vunpack.c.l.b16 %v3029
    %v3098 = vunpack.c.l.b16 %v3030
    %v3099 = vunpack.c.l.b16 %v3031
    %v3100 = vunpack.c.l.b16 %v3032
    %v3101 = vunpack.c.l.b16 %v3033
    %v3102 = vunpack.c.l.b16 %v3034
    %v3103 = vunpack.c.l.b16 %v3035
    %v3104 = vunpack.c.l.b16 %v3036
    %v3105 = vunpack.c.l.b16 %v3037
    %v3106 = vunpack.c.l.b16 %v3038
    %v3107 = vunpack.c.l.b16 %v3039
    %v3108 = vunpack.c.l.b16 %v3040
    %v3109 = vunpack.c.l.b16 %v3041
    %v3110 = vunpack.c.l.b16 %v3042
    %v3111 = vunpack.c.l.b16 %v3043
    %v3112 = vunpack.c.l.b16 %v3044
    %v3113 = vunpack.c.l.b16 %v3045
    %v3114 = vunpack.c.l.b16 %v3046
    %v3115 = vunpack.c.l.b16 %v3047
    %v3116 = vunpack.c.l.b16 %v3048
    %v3117 = vunpack.c.l.b16 %v3049
    %v3118 = vunpack.c.l.b16 %v3050
    %v3119 = vunpack.c.l.b16 %v3051
    %v3120 = vunpack.c.l.b16 %v3052
    %v3121 = vunpack.c.l.b16 %v3053
    %v3122 = vunpack.c.l.b16 %v3054
    %v3123 = vunpack.c.l.b16 %v3055
    %v3124 = vpack.c.b16 %v3093, %v3092
    %v3125 = vpack.c.b16 %v3095, %v3094
    %v3126 = vpack.c.b16 %v3097, %v3096
    %v3127 = vpack.c.b16 %v3099, %v3098
    %v3128 = vpack.c.b16 %v3101, %v3100
    %v3129 = vpack.c.b16 %v3103, %v3102
    %v3130 = vpack.c.b16 %v3105, %v3104
    %v3131 = vpack.c.b16 %v3107, %v3106
    %v3132 = vpack.c.b16 %v3109, %v3108
    %v3133 = vpack.c.b16 %v3111, %v3110
    %v3134 = vpack.c.b16 %v3113, %v3112
    %v3135 = vpack.c.b16 %v3115, %v3114
    %v3136 = vpack.c.b16 %v3117, %v3116
    %v3137 = vpack.c.b16 %v3119, %v3118
    %v3138 = vpack.c.b16 %v3121, %v3120
    %v3139 = vpack.c.b16 %v3123, %v3122
    %3156 = vmatpush.bf16.msra.mxu0 %v3131
    %3157 = vmatpush.bf16.msra.mxu0 %v3130
    %3158 = vmatpush.bf16.msra.mxu0 %v3129
    %3159 = vmatpush.bf16.msra.mxu0 %v3128
    %3160 = vmatpush.bf16.msra.mxu0 %v3127
    %3161 = vmatpush.bf16.msra.mxu0 %v3126
    %3162 = vmatpush.bf16.msra.mxu0 %v3125
    %3163 = vmatpush.bf16.msra.mxu0 %v3124
    %3164 = vmatmul.bf16.gmra.mxu0 %v3022
    %v3165 = vpop.f32.mrf.mxu0
    %v3166 = vadd.f32 %v3058, %v3165
    %v3167 = vpop.f32.mrf.mxu0
    %3168 = vdwg.mxu0
    %3169 = vmatpush.bf16.msra.mxu0 %v3139
    %3170 = vmatpush.bf16.msra.mxu0 %v3138
    %3171 = vmatpush.bf16.msra.mxu0 %v3137
    %3172 = vmatpush.bf16.msra.mxu0 %v3136
    %3173 = vmatpush.bf16.msra.mxu0 %v3135
    %3174 = vmatpush.bf16.msra.mxu0 %v3134
    %3175 = vmatpush.bf16.msra.mxu0 %v3133
    %3176 = vmatpush.bf16.msra.mxu0 %v3132
    %3177 = vmatmul.bf16.gmra.mxu0 %v3023
    %v3178 = vpop.f32.mrf.mxu0
    %v3179 = vadd.f32 %v3166, %v3178
    %v3180 = vpop.f32.mrf.mxu0
    %3181 = vdwg.mxu0
    %3182 = vmax.xlane.f32.xlu0 %v3179
    %v3183 = vpop.xlane.xlu0 %3182
    %v3184 = vsub.f32 %v3179, %v3183
    %v3185 = vmul.f32 %v3184, 1.442695
    %v3186 = vpow.pop %v3185
    %3187 = vadd.xlane.f32.xlu0 %v3186
    %v3188 = vpop.xlane.xlu0 %3187
    %v3189 = vlog2.pop %v3188
    %v3190 = vmul.f32 %v3189, 0.6931472
    %v3191 = vsub.f32 %v3184, %v3190
    %3192 = vst [vmem:[#allocation2] sm:$0xff] %v3191
    // Predicated region
    $region38: #{nn_arch_forward.1} parent=1 // pred_check
      _
    $region39: #{nn_arch_forward.1} parent=1 // pred_check_branch
      %3194 = sbr.rel (0) target = $region41
    $region40: #{nn_arch_forward.1} parent=1 // pred_region
      %3196 = vsyncadd [#allocation3], 0
      %s3198 = sshll.u32 [#allocation2], 4
      %s3199 = int_to_ptr.vmem [resolvable:$true] %s3198
      %s3200 = sshll.u32 %s9, 4
      %s3201 = int_to_ptr.hbm [resolvable:$true] %s3200
      %3203 = dma.vmem_to_hbm [thread:$0]  %s3199, 128, %s3201, [#allocation3]
    $region41: #{nn_arch_forward.1} parent=1 // pred_fallthru
      _
    // Predicated region
    $region42: #{nn_arch_forward.1} parent=1 // pred_check
      _
    $region43: #{nn_arch_forward.1} parent=1 // pred_check_branch
      %3205 = sbr.rel (0) target = $region45
    $region44: #{nn_arch_forward.1} parent=1 // pred_region
      %3207 = dma.done [#allocation3], 128
    $region45: #{nn_arch_forward.1} parent=1 // pred_fallthru
      _
    %3208 = vsyncpa [#allocation3], 1

// kernel: nn_arch_forward.1
$region0: #{nn_arch_forward.1}
  #allocation0 [shape = 'u32[]', space=smem, size = 0x4, offset = 0x4, fixed_abs, tag = 'smem constant byte address 0x4 - core index']
  #allocation1 [shape = 'u32[72,128]{1,0:T(1,128)}', space=vmem, size = 0x9000, scoped, tag = 'internal scratch']
  %s0 = inlined_call_operand.vmem [shape: bf16[8,128], index: 0, kind: input, shape index: {}]
  %s1 = inlined_call_operand.vmem [shape: bf16[128,1024], index: 1, kind: input, shape index: {}]
  %s2 = inlined_call_operand.vmem [shape: f32[1,1024], index: 2, kind: input, shape index: {}]
  %s3 = inlined_call_operand.vmem [shape: bf16[1024,512], index: 3, kind: input, shape index: {}]
  %s4 = inlined_call_operand.vmem [shape: f32[1,512], index: 4, kind: input, shape index: {}]
  %s5 = inlined_call_operand.vmem [shape: bf16[512,256], index: 5, kind: input, shape index: {}]
  %s6 = inlined_call_operand.vmem [shape: f32[1,256], index: 6, kind: input, shape index: {}]
  %s7 = inlined_call_operand.vmem [shape: bf16[256,128], index: 7, kind: input, shape index: {}]
  %s8 = inlined_call_operand.vmem [shape: f32[1,128], index: 8, kind: input, shape index: {}]
  %s9 = inlined_call_operand.hbm [shape: f32[8,128], index: 9, kind: output, shape index: {}]
  %s10 = sld [smem:[#allocation0]]
  $region46: #{nn_arch_forward.1} parent=0
    _
  %s12 = ssub.s32 1, %s10
  %s13 = scalar_select 0, %s12, %s10
  $region1: #{nn_arch_forward.1} parent=0
    #allocation2 [shape = 'u8[4096]{0}', space=vmem, size = 0x1000, scoped, tag = 'output window, operand 0, single buffered']
    #allocation3 [shape = 's32[1]{0}', space=sflag, size = 0x4, scoped, tag = 'scoped memory for nn_arch_forward.1']
    %14 = vsyncpa [#allocation3], 0
    // Predicated region
    $region2: #{nn_arch_forward.1} parent=1 // pred_check
      _
    $region3: #{nn_arch_forward.1} parent=1 // pred_check_branch
      %16 = sbr.rel (0) target = $region5
    $region4: #{nn_arch_forward.1} parent=1 // pred_region
      _
    $region5: #{nn_arch_forward.1} parent=1 // pred_fallthru
      _
    // Predicated region
    $region6: #{nn_arch_forward.1} parent=1 // pred_check
      _
    $region7: #{nn_arch_forward.1} parent=1 // pred_check_branch
      %18 = sbr.rel (0) target = $region9
    $region8: #{nn_arch_forward.1} parent=1 // pred_region
      _
    $region9: #{nn_arch_forward.1} parent=1 // pred_fallthru
      _
    // Predicated region
    $region10: #{nn_arch_forward.1} parent=1 // pred_check
      _
    $region11: #{nn_arch_forward.1} parent=1 // pred_check_branch
      %20 = sbr.rel (0) target = $region13
    $region12: #{nn_arch_forward.1} parent=1 // pred_region
      _
    $region13: #{nn_arch_forward.1} parent=1 // pred_fallthru
      _
    // Predicated region
    $region14: #{nn_arch_forward.1} parent=1 // pred_check
      _
    $region15: #{nn_arch_forward.1} parent=1 // pred_check_branch
      %22 = sbr.rel (0) target = $region17
    $region16: #{nn_arch_forward.1} parent=1 // pred_region
      _
    $region17: #{nn_arch_forward.1} parent=1 // pred_fallthru
      _
    // Predicated region
    $region18: #{nn_arch_forward.1} parent=1 // pred_check
      _
    $region19: #{nn_arch_forward.1} parent=1 // pred_check_branch
      %24 = sbr.rel (0) target = $region21
    $region20: #{nn_arch_forward.1} parent=1 // pred_region
      _
    $region21: #{nn_arch_forward.1} parent=1 // pred_fallthru
      _
    // Predicated region
    $region22: #{nn_arch_forward.1} parent=1 // pred_check
      _
    $region23: #{nn_arch_forward.1} parent=1 // pred_check_branch
      %26 = sbr.rel (0) target = $region25
    $region24: #{nn_arch_forward.1} parent=1 // pred_region
      _
    $region25: #{nn_arch_forward.1} parent=1 // pred_fallthru
      _
    // Predicated region
    $region26: #{nn_arch_forward.1} parent=1 // pred_check
      _
    $region27: #{nn_arch_forward.1} parent=1 // pred_check_branch
      %28 = sbr.rel (0) target = $region29
    $region28: #{nn_arch_forward.1} parent=1 // pred_region
      _
    $region29: #{nn_arch_forward.1} parent=1 // pred_fallthru
      _
    // Predicated region
    $region30: #{nn_arch_forward.1} parent=1 // pred_check
      _
    $region31: #{nn_arch_forward.1} parent=1 // pred_check_branch
      %30 = sbr.rel (0) target = $region33
    $region32: #{nn_arch_forward.1} parent=1 // pred_region
      _
    $region33: #{nn_arch_forward.1} parent=1 // pred_fallthru
      _
    // Predicated region
    $region34: #{nn_arch_forward.1} parent=1 // pred_check
      _
    $region35: #{nn_arch_forward.1} parent=1 // pred_check_branch
      %32 = sbr.rel (0) target = $region37
    $region36: #{nn_arch_forward.1} parent=1 // pred_region
      _
    $region37: #{nn_arch_forward.1} parent=1 // pred_fallthru
      _
    %v33 = vld [vmem:[%s0] sm:$0xf]
    %v34 = vld [vmem:[%s1] sm:$0xff]
    %v35 = vld [vmem:[%s1 + $0x8] sm:$0xff]
    %v36 = vld [vmem:[%s1 + $0x10] sm:$0xff]
    %v37 = vld [vmem:[%s1 + $0x18] sm:$0xff]
    %v38 = vld [vmem:[%s1 + $0x20] sm:$0xff]
    %v39 = vld [vmem:[%s1 + $0x28] sm:$0xff]
    %v40 = vld [vmem:[%s1 + $0x30] sm:$0xff]
    %v41 = vld [vmem:[%s1 + $0x38] sm:$0xff]
    %v42 = vld [vmem:[%s1 + $0x40] sm:$0xff]
    %v43 = vld [vmem:[%s1 + $0x48] sm:$0xff]
    %v44 = vld [vmem:[%s1 + $0x50] sm:$0xff]
    %v45 = vld [vmem:[%s1 + $0x58] sm:$0xff]
    %v46 = vld [vmem:[%s1 + $0x60] sm:$0xff]
    %v47 = vld [vmem:[%s1 + $0x68] sm:$0xff]
    %v48 = vld [vmem:[%s1 + $0x70] sm:$0xff]
    %v49 = vld [vmem:[%s1 + $0x78] sm:$0xff]
    %v50 = vld [vmem:[%s1 + $0x80] sm:$0xff]
    %v51 = vld [vmem:[%s1 + $0x88] sm:$0xff]
    %v52 = vld [vmem:[%s1 + $0x90] sm:$0xff]
    %v53 = vld [vmem:[%s1 + $0x98] sm:$0xff]
    %v54 = vld [vmem:[%s1 + $0xa0] sm:$0xff]
    %v55 = vld [vmem:[%s1 + $0xa8] sm:$0xff]
    %v56 = vld [vmem:[%s1 + $0xb0] sm:$0xff]
    %v57 = vld [vmem:[%s1 + $0xb8] sm:$0xff]
    %v58 = vld [vmem:[%s1 + $0xc0] sm:$0xff]
    %v59 = vld [vmem:[%s1 + $0xc8] sm:$0xff]
    %v60 = vld [vmem:[%s1 + $0xd0] sm:$0xff]
    %v61 = vld [vmem:[%s1 + $0xd8] sm:$0xff]
    %v62 = vld [vmem:[%s1 + $0xe0] sm:$0xff]
    %v63 = vld [vmem:[%s1 + $0xe8] sm:$0xff]
    %v64 = vld [vmem:[%s1 + $0xf0] sm:$0xff]
    %v65 = vld [vmem:[%s1 + $0xf8] sm:$0xff]
    %v66 = vld [vmem:[%s1 + $0x100] sm:$0xff]
    %v67 = vld [vmem:[%s1 + $0x108] sm:$0xff]
    %v68 = vld [vmem:[%s1 + $0x110] sm:$0xff]
    %v69 = vld [vmem:[%s1 + $0x118] sm:$0xff]
    %v70 = vld [vmem:[%s1 + $0x120] sm:$0xff]
    %v71 = vld [vmem:[%s1 + $0x128] sm:$0xff]
    %v72 = vld [vmem:[%s1 + $0x130] sm:$0xff]
    %v73 = vld [vmem:[%s1 + $0x138] sm:$0xff]
    %v74 = vld [vmem:[%s1 + $0x140] sm:$0xff]
    %v75 = vld [vmem:[%s1 + $0x148] sm:$0xff]
    %v76 = vld [vmem:[%s1 + $0x150] sm:$0xff]
    %v77 = vld [vmem:[%s1 + $0x158] sm:$0xff]
    %v78 = vld [vmem:[%s1 + $0x160] sm:$0xff]
    %v79 = vld [vmem:[%s1 + $0x168] sm:$0xff]
    %v80 = vld [vmem:[%s1 + $0x170] sm:$0xff]
    %v81 = vld [vmem:[%s1 + $0x178] sm:$0xff]
    %v82 = vld [vmem:[%s1 + $0x180] sm:$0xff]
    %v83 = vld [vmem:[%s1 + $0x188] sm:$0xff]
    %v84 = vld [vmem:[%s1 + $0x190] sm:$0xff]
    %v85 = vld [vmem:[%s1 + $0x198] sm:$0xff]
    %v86 = vld [vmem:[%s1 + $0x1a0] sm:$0xff]
    %v87 = vld [vmem:[%s1 + $0x1a8] sm:$0xff]
    %v88 = vld [vmem:[%s1 + $0x1b0] sm:$0xff]
    %v89 = vld [vmem:[%s1 + $0x1b8] sm:$0xff]
    %v90 = vld [vmem:[%s1 + $0x1c0] sm:$0xff]
    %v91 = vld [vmem:[%s1 + $0x1c8] sm:$0xff]
    %v92 = vld [vmem:[%s1 + $0x1d0] sm:$0xff]
    %v93 = vld [vmem:[%s1 + $0x1d8] sm:$0xff]
    %v94 = vld [vmem:[%s1 + $0x1e0] sm:$0xff]
    %v95 = vld [vmem:[%s1 + $0x1e8] sm:$0xff]
    %v96 = vld [vmem:[%s1 + $0x1f0] sm:$0xff]
    %v97 = vld [vmem:[%s1 + $0x1f8] sm:$0xff]
    %v98 = vld [vmem:[%s2] sm:$0xff]
    %v100 = vperm.slane %v98, 0
    %v101 = vperm.slane %v98, 1
    %v102 = vperm.slane %v98, 2
    %v103 = vperm.slane %v98, 3
    %v104 = vperm.slane %v98, 4
    %v105 = vperm.slane %v98, 5
    %v106 = vperm.slane %v98, 6
    %v107 = vperm.slane %v98, 7
    %v180 = vunpack.c.l.b16 %v34
    %v181 = vunpack.c.h.b16 %v34
    %v182 = vunpack.c.l.b16 %v35
    %v183 = vunpack.c.h.b16 %v35
    %v184 = vunpack.c.l.b16 %v36
    %v185 = vunpack.c.h.b16 %v36
    %v186 = vunpack.c.l.b16 %v37
    %v187 = vunpack.c.h.b16 %v37
    %v188 = vunpack.c.l.b16 %v38
    %v189 = vunpack.c.h.b16 %v38
    %v190 = vunpack.c.l.b16 %v39
    %v191 = vunpack.c.h.b16 %v39
    %v192 = vunpack.c.l.b16 %v40
    %v193 = vunpack.c.h.b16 %v40
    %v194 = vunpack.c.l.b16 %v41
    %v195 = vunpack.c.h.b16 %v41
    %v196 = vunpack.c.l.b16 %v42
    %v197 = vunpack.c.h.b16 %v42
    %v198 = vunpack.c.l.b16 %v43
    %v199 = vunpack.c.h.b16 %v43
    %v200 = vunpack.c.l.b16 %v44
    %v201 = vunpack.c.h.b16 %v44
    %v202 = vunpack.c.l.b16 %v45
    %v203 = vunpack.c.h.b16 %v45
    %v204 = vunpack.c.l.b16 %v46
    %v205 = vunpack.c.h.b16 %v46
    %v206 = vunpack.c.l.b16 %v47
    %v207 = vunpack.c.h.b16 %v47
    %v208 = vunpack.c.l.b16 %v48
    %v209 = vunpack.c.h.b16 %v48
    %v210 = vunpack.c.l.b16 %v49
    %v211 = vunpack.c.h.b16 %v49
    %v212 = vunpack.c.l.b16 %v50
    %v213 = vunpack.c.h.b16 %v50
    %v214 = vunpack.c.l.b16 %v51
    %v215 = vunpack.c.h.b16 %v51
    %v216 = vunpack.c.l.b16 %v52
    %v217 = vunpack.c.h.b16 %v52
    %v218 = vunpack.c.l.b16 %v53
    %v219 = vunpack.c.h.b16 %v53
    %v220 = vunpack.c.l.b16 %v54
    %v221 = vunpack.c.h.b16 %v54
    %v222 = vunpack.c.l.b16 %v55
    %v223 = vunpack.c.h.b16 %v55
    %v224 = vunpack.c.l.b16 %v56
    %v225 = vunpack.c.h.b16 %v56
    %v226 = vunpack.c.l.b16 %v57
    %v227 = vunpack.c.h.b16 %v57
    %v228 = vunpack.c.l.b16 %v58
    %v229 = vunpack.c.h.b16 %v58
    %v230 = vunpack.c.l.b16 %v59
    %v231 = vunpack.c.h.b16 %v59
    %v232 = vunpack.c.l.b16 %v60
    %v233 = vunpack.c.h.b16 %v60
    %v234 = vunpack.c.l.b16 %v61
    %v235 = vunpack.c.h.b16 %v61
    %v236 = vunpack.c.l.b16 %v62
    %v237 = vunpack.c.h.b16 %v62
    %v238 = vunpack.c.l.b16 %v63
    %v239 = vunpack.c.h.b16 %v63
    %v240 = vunpack.c.l.b16 %v64
    %v241 = vunpack.c.h.b16 %v64
    %v242 = vunpack.c.l.b16 %v65
    %v243 = vunpack.c.h.b16 %v65
    %v244 = vunpack.c.l.b16 %v66
    %v245 = vunpack.c.h.b16 %v66
    %v246 = vunpack.c.l.b16 %v67
    %v247 = vunpack.c.h.b16 %v67
    %v248 = vunpack.c.l.b16 %v68
    %v249 = vunpack.c.h.b16 %v68
    %v250 = vunpack.c.l.b16 %v69
    %v251 = vunpack.c.h.b16 %v69
    %v252 = vunpack.c.l.b16 %v70
    %v253 = vunpack.c.h.b16 %v70
    %v254 = vunpack.c.l.b16 %v71
    %v255 = vunpack.c.h.b16 %v71
    %v256 = vunpack.c.l.b16 %v72
    %v257 = vunpack.c.h.b16 %v72
    %v258 = vunpack.c.l.b16 %v73
    %v259 = vunpack.c.h.b16 %v73
    %v260 = vunpack.c.l.b16 %v74
    %v261 = vunpack.c.h.b16 %v74
    %v262 = vunpack.c.l.b16 %v75
    %v263 = vunpack.c.h.b16 %v75
    %v264 = vunpack.c.l.b16 %v76
    %v265 = vunpack.c.h.b16 %v76
    %v266 = vunpack.c.l.b16 %v77
    %v267 = vunpack.c.h.b16 %v77
    %v268 = vunpack.c.l.b16 %v78
    %v269 = vunpack.c.h.b16 %v78
    %v270 = vunpack.c.l.b16 %v79
    %v271 = vunpack.c.h.b16 %v79
    %v272 = vunpack.c.l.b16 %v80
    %v273 = vunpack.c.h.b16 %v80
    %v274 = vunpack.c.l.b16 %v81
    %v275 = vunpack.c.h.b16 %v81
    %v276 = vunpack.c.l.b16 %v82
    %v277 = vunpack.c.h.b16 %v82
    %v278 = vunpack.c.l.b16 %v83
    %v279 = vunpack.c.h.b16 %v83
    %v280 = vunpack.c.l.b16 %v84
    %v281 = vunpack.c.h.b16 %v84
    %v282 = vunpack.c.l.b16 %v85
    %v283 = vunpack.c.h.b16 %v85
    %v284 = vunpack.c.l.b16 %v86
    %v285 = vunpack.c.h.b16 %v86
    %v286 = vunpack.c.l.b16 %v87
    %v287 = vunpack.c.h.b16 %v87
    %v288 = vunpack.c.l.b16 %v88
    %v289 = vunpack.c.h.b16 %v88
    %v290 = vunpack.c.l.b16 %v89
    %v291 = vunpack.c.h.b16 %v89
    %v292 = vunpack.c.l.b16 %v90
    %v293 = vunpack.c.h.b16 %v90
    %v294 = vunpack.c.l.b16 %v91
    %v295 = vunpack.c.h.b16 %v91
    %v296 = vunpack.c.l.b16 %v92
    %v297 = vunpack.c.h.b16 %v92
    %v298 = vunpack.c.l.b16 %v93
    %v299 = vunpack.c.h.b16 %v93
    %v300 = vunpack.c.l.b16 %v94
    %v301 = vunpack.c.h.b16 %v94
    %v302 = vunpack.c.l.b16 %v95
    %v303 = vunpack.c.h.b16 %v95
    %v304 = vunpack.c.l.b16 %v96
    %v305 = vunpack.c.h.b16 %v96
    %v306 = vunpack.c.l.b16 %v97
    %v307 = vunpack.c.h.b16 %v97
    %v308 = vpack.c.b16 %v188, %v180
    %v309 = vpack.c.b16 %v189, %v181
    %v310 = vpack.c.b16 %v190, %v182
    %v311 = vpack.c.b16 %v191, %v183
    %v312 = vpack.c.b16 %v192, %v184
    %v313 = vpack.c.b16 %v193, %v185
    %v314 = vpack.c.b16 %v194, %v186
    %v315 = vpack.c.b16 %v195, %v187
    %v316 = vpack.c.b16 %v204, %v196
    %v317 = vpack.c.b16 %v205, %v197
    %v318 = vpack.c.b16 %v206, %v198
    %v319 = vpack.c.b16 %v207, %v199
    %v320 = vpack.c.b16 %v208, %v200
    %v321 = vpack.c.b16 %v209, %v201
    %v322 = vpack.c.b16 %v210, %v202
    %v323 = vpack.c.b16 %v211, %v203
    %v324 = vpack.c.b16 %v220, %v212
    %v325 = vpack.c.b16 %v221, %v213
    %v326 = vpack.c.b16 %v222, %v214
    %v327 = vpack.c.b16 %v223, %v215
    %v328 = vpack.c.b16 %v224, %v216
    %v329 = vpack.c.b16 %v225, %v217
    %v330 = vpack.c.b16 %v226, %v218
    %v331 = vpack.c.b16 %v227, %v219
    %v332 = vpack.c.b16 %v236, %v228
    %v333 = vpack.c.b16 %v237, %v229
    %v334 = vpack.c.b16 %v238, %v230
    %v335 = vpack.c.b16 %v239, %v231
    %v336 = vpack.c.b16 %v240, %v232
    %v337 = vpack.c.b16 %v241, %v233
    %v338 = vpack.c.b16 %v242, %v234
    %v339 = vpack.c.b16 %v243, %v235
    %v340 = vpack.c.b16 %v252, %v244
    %v341 = vpack.c.b16 %v253, %v245
    %v342 = vpack.c.b16 %v254, %v246
    %v343 = vpack.c.b16 %v255, %v247
    %v344 = vpack.c.b16 %v256, %v248
    %v345 = vpack.c.b16 %v257, %v249
    %v346 = vpack.c.b16 %v258, %v250
    %v347 = vpack.c.b16 %v259, %v251
    %v348 = vpack.c.b16 %v268, %v260
    %v349 = vpack.c.b16 %v269, %v261
    %v350 = vpack.c.b16 %v270, %v262
    %v351 = vpack.c.b16 %v271, %v263
    %v352 = vpack.c.b16 %v272, %v264
    %v353 = vpack.c.b16 %v273, %v265
    %v354 = vpack.c.b16 %v274, %v266
    %v355 = vpack.c.b16 %v275, %v267
    %v356 = vpack.c.b16 %v284, %v276
    %v357 = vpack.c.b16 %v285, %v277
    %v358 = vpack.c.b16 %v286, %v278
    %v359 = vpack.c.b16 %v287, %v279
    %v360 = vpack.c.b16 %v288, %v280
    %v361 = vpack.c.b16 %v289, %v281
    %v362 = vpack.c.b16 %v290, %v282
    %v363 = vpack.c.b16 %v291, %v283
    %v364 = vpack.c.b16 %v300, %v292
    %v365 = vpack.c.b16 %v301, %v293
    %v366 = vpack.c.b16 %v302, %v294
    %v367 = vpack.c.b16 %v303, %v295
    %v368 = vpack.c.b16 %v304, %v296
    %v369 = vpack.c.b16 %v305, %v297
    %v370 = vpack.c.b16 %v306, %v298
    %v371 = vpack.c.b16 %v307, %v299
    %436 = vmatpush.bf16.msra.mxu0 %v364
    %437 = vmatpush.bf16.msra.mxu0 %v356
    %438 = vmatpush.bf16.msra.mxu0 %v348
    %439 = vmatpush.bf16.msra.mxu0 %v340
    %440 = vmatpush.bf16.msra.mxu0 %v332
    %441 = vmatpush.bf16.msra.mxu0 %v324
    %442 = vmatpush.bf16.msra.mxu0 %v316
    %443 = vmatpush.bf16.msra.mxu0 %v308
    %444 = vmatmul.bf16.gmra.mxu0 %v33
    %v445 = vpop.f32.mrf.mxu0
    %v446 = vadd.f32 %v100, %v445
    %v447 = vpop.f32.mrf.mxu0
    %448 = vdwg.mxu0
    %449 = vmatpush.bf16.msra.mxu0 %v365
    %450 = vmatpush.bf16.msra.mxu0 %v357
    %451 = vmatpush.bf16.msra.mxu0 %v349
    %452 = vmatpush.bf16.msra.mxu0 %v341
    %453 = vmatpush.bf16.msra.mxu0 %v333
    %454 = vmatpush.bf16.msra.mxu0 %v325
    %455 = vmatpush.bf16.msra.mxu0 %v317
    %456 = vmatpush.bf16.msra.mxu0 %v309
    %457 = vmatmul.bf16.gmra.mxu0 %v33
    %v458 = vpop.f32.mrf.mxu0
    %v459 = vadd.f32 %v101, %v458
    %v460 = vpop.f32.mrf.mxu0
    %461 = vdwg.mxu0
    %462 = vmatpush.bf16.msra.mxu0 %v366
    %463 = vmatpush.bf16.msra.mxu0 %v358
    %464 = vmatpush.bf16.msra.mxu0 %v350
    %465 = vmatpush.bf16.msra.mxu0 %v342
    %466 = vmatpush.bf16.msra.mxu0 %v334
    %467 = vmatpush.bf16.msra.mxu0 %v326
    %468 = vmatpush.bf16.msra.mxu0 %v318
    %469 = vmatpush.bf16.msra.mxu0 %v310
    %470 = vmatmul.bf16.gmra.mxu0 %v33
    %v471 = vpop.f32.mrf.mxu0
    %v472 = vadd.f32 %v102, %v471
    %v473 = vpop.f32.mrf.mxu0
    %474 = vdwg.mxu0
    %475 = vmatpush.bf16.msra.mxu0 %v367
    %476 = vmatpush.bf16.msra.mxu0 %v359
    %477 = vmatpush.bf16.msra.mxu0 %v351
    %478 = vmatpush.bf16.msra.mxu0 %v343
    %479 = vmatpush.bf16.msra.mxu0 %v335
    %480 = vmatpush.bf16.msra.mxu0 %v327
    %481 = vmatpush.bf16.msra.mxu0 %v319
    %482 = vmatpush.bf16.msra.mxu0 %v311
    %483 = vmatmul.bf16.gmra.mxu0 %v33
    %v484 = vpop.f32.mrf.mxu0
    %v485 = vadd.f32 %v103, %v484
    %v486 = vpop.f32.mrf.mxu0
    %487 = vdwg.mxu0
    %488 = vmatpush.bf16.msra.mxu0 %v368
    %489 = vmatpush.bf16.msra.mxu0 %v360
    %490 = vmatpush.bf16.msra.mxu0 %v352
    %491 = vmatpush.bf16.msra.mxu0 %v344
    %492 = vmatpush.bf16.msra.mxu0 %v336
    %493 = vmatpush.bf16.msra.mxu0 %v328
    %494 = vmatpush.bf16.msra.mxu0 %v320
    %495 = vmatpush.bf16.msra.mxu0 %v312
    %496 = vmatmul.bf16.gmra.mxu0 %v33
    %v497 = vpop.f32.mrf.mxu0
    %v498 = vadd.f32 %v104, %v497
    %v499 = vpop.f32.mrf.mxu0
    %500 = vdwg.mxu0
    %501 = vmatpush.bf16.msra.mxu0 %v369
    %502 = vmatpush.bf16.msra.mxu0 %v361
    %503 = vmatpush.bf16.msra.mxu0 %v353
    %504 = vmatpush.bf16.msra.mxu0 %v345
    %505 = vmatpush.bf16.msra.mxu0 %v337
    %506 = vmatpush.bf16.msra.mxu0 %v329
    %507 = vmatpush.bf16.msra.mxu0 %v321
    %508 = vmatpush.bf16.msra.mxu0 %v313
    %509 = vmatmul.bf16.gmra.mxu0 %v33
    %v510 = vpop.f32.mrf.mxu0
    %v511 = vadd.f32 %v105, %v510
    %v512 = vpop.f32.mrf.mxu0
    %513 = vdwg.mxu0
    %514 = vmatpush.bf16.msra.mxu0 %v370
    %515 = vmatpush.bf16.msra.mxu0 %v362
    %516 = vmatpush.bf16.msra.mxu0 %v354
    %517 = vmatpush.bf16.msra.mxu0 %v346
    %518 = vmatpush.bf16.msra.mxu0 %v338
    %519 = vmatpush.bf16.msra.mxu0 %v330
    %520 = vmatpush.bf16.msra.mxu0 %v322
    %521 = vmatpush.bf16.msra.mxu0 %v314
    %522 = vmatmul.bf16.gmra.mxu0 %v33
    %v523 = vpop.f32.mrf.mxu0
    %v524 = vadd.f32 %v106, %v523
    %v525 = vpop.f32.mrf.mxu0
    %526 = vdwg.mxu0
    %527 = vmatpush.bf16.msra.mxu0 %v371
    %528 = vmatpush.bf16.msra.mxu0 %v363
    %529 = vmatpush.bf16.msra.mxu0 %v355
    %530 = vmatpush.bf16.msra.mxu0 %v347
    %531 = vmatpush.bf16.msra.mxu0 %v339
    %532 = vmatpush.bf16.msra.mxu0 %v331
    %533 = vmatpush.bf16.msra.mxu0 %v323
    %534 = vmatpush.bf16.msra.mxu0 %v315
    %535 = vmatmul.bf16.gmra.mxu0 %v33
    %v536 = vpop.f32.mrf.mxu0
    %v537 = vadd.f32 %v107, %v536
    %v538 = vpop.f32.mrf.mxu0
    %539 = vdwg.mxu0
    %v540 = vmax.f32 %v446, 0.0
    %v541 = vmax.f32 %v459, 0.0
    %v542 = vmax.f32 %v472, 0.0
    %v543 = vmax.f32 %v485, 0.0
    %v544 = vmax.f32 %v498, 0.0
    %v545 = vmax.f32 %v511, 0.0
    %v546 = vmax.f32 %v524, 0.0
    %v547 = vmax.f32 %v537, 0.0
    %v548 = vpack.c.bf16 %v540, %v540
    %v549 = vpack.c.bf16 %v541, %v541
    %v550 = vpack.c.bf16 %v542, %v542
    %v551 = vpack.c.bf16 %v543, %v543
    %v552 = vpack.c.bf16 %v544, %v544
    %v553 = vpack.c.bf16 %v545, %v545
    %v554 = vpack.c.bf16 %v546, %v546
    %v555 = vpack.c.bf16 %v547, %v547
    %v556 = vld [vmem:[%s3] sm:$0xff]
    %v557 = vld [vmem:[%s3 + $0x8] sm:$0xff]
    %v558 = vld [vmem:[%s3 + $0x10] sm:$0xff]
    %v559 = vld [vmem:[%s3 + $0x18] sm:$0xff]
    %v560 = vld [vmem:[%s3 + $0x20] sm:$0xff]
    %v561 = vld [vmem:[%s3 + $0x28] sm:$0xff]
    %v562 = vld [vmem:[%s3 + $0x30] sm:$0xff]
    %v563 = vld [vmem:[%s3 + $0x38] sm:$0xff]
    %v564 = vld [vmem:[%s3 + $0x40] sm:$0xff]
    %v565 = vld [vmem:[%s3 + $0x48] sm:$0xff]
    %v566 = vld [vmem:[%s3 + $0x50] sm:$0xff]
    %v567 = vld [vmem:[%s3 + $0x58] sm:$0xff]
    %v568 = vld [vmem:[%s3 + $0x60] sm:$0xff]
    %v569 = vld [vmem:[%s3 + $0x68] sm:$0xff]
    %v570 = vld [vmem:[%s3 + $0x70] sm:$0xff]
    %v571 = vld [vmem:[%s3 + $0x78] sm:$0xff]
    %v572 = vld [vmem:[%s3 + $0x80] sm:$0xff]
    %v573 = vld [vmem:[%s3 + $0x88] sm:$0xff]
    %v574 = vld [vmem:[%s3 + $0x90] sm:$0xff]
    %v575 = vld [vmem:[%s3 + $0x98] sm:$0xff]
    %v576 = vld [vmem:[%s3 + $0xa0] sm:$0xff]
    %v577 = vld [vmem:[%s3 + $0xa8] sm:$0xff]
    %v578 = vld [vmem:[%s3 + $0xb0] sm:$0xff]
    %v579 = vld [vmem:[%s3 + $0xb8] sm:$0xff]
    %v580 = vld [vmem:[%s3 + $0xc0] sm:$0xff]
    %v581 = vld [vmem:[%s3 + $0xc8] sm:$0xff]
    %v582 = vld [vmem:[%s3 + $0xd0] sm:$0xff]
    %v583 = vld [vmem:[%s3 + $0xd8] sm:$0xff]
    %v584 = vld [vmem:[%s3 + $0xe0] sm:$0xff]
    %v585 = vld [vmem:[%s3 + $0xe8] sm:$0xff]
    %v586 = vld [vmem:[%s3 + $0xf0] sm:$0xff]
    %v587 = vld [vmem:[%s3 + $0xf8] sm:$0xff]
    %v588 = vld [vmem:[%s3 + $0x100] sm:$0xff]
    %v589 = vld [vmem:[%s3 + $0x108] sm:$0xff]
    %v590 = vld [vmem:[%s3 + $0x110] sm:$0xff]
    %v591 = vld [vmem:[%s3 + $0x118] sm:$0xff]
    %v592 = vld [vmem:[%s3 + $0x120] sm:$0xff]
    %v593 = vld [vmem:[%s3 + $0x128] sm:$0xff]
    %v594 = vld [vmem:[%s3 + $0x130] sm:$0xff]
    %v595 = vld [vmem:[%s3 + $0x138] sm:$0xff]
    %v596 = vld [vmem:[%s3 + $0x140] sm:$0xff]
    %v597 = vld [vmem:[%s3 + $0x148] sm:$0xff]
    %v598 = vld [vmem:[%s3 + $0x150] sm:$0xff]
    %v599 = vld [vmem:[%s3 + $0x158] sm:$0xff]
    %v600 = vld [vmem:[%s3 + $0x160] sm:$0xff]
    %v601 = vld [vmem:[%s3 + $0x168] sm:$0xff]
    %v602 = vld [vmem:[%s3 + $0x170] sm:$0xff]
    %v603 = vld [vmem:[%s3 + $0x178] sm:$0xff]
    %v604 = vld [vmem:[%s3 + $0x180] sm:$0xff]
    %v605 = vld [vmem:[%s3 + $0x188] sm:$0xff]
    %v606 = vld [vmem:[%s3 + $0x190] sm:$0xff]
    %v607 = vld [vmem:[%s3 + $0x198] sm:$0xff]
    %v608 = vld [vmem:[%s3 + $0x1a0] sm:$0xff]
    %v609 = vld [vmem:[%s3 + $0x1a8] sm:$0xff]
    %v610 = vld [vmem:[%s3 + $0x1b0] sm:$0xff]
    %v611 = vld [vmem:[%s3 + $0x1b8] sm:$0xff]
    %v612 = vld [vmem:[%s3 + $0x1c0] sm:$0xff]
    %v613 = vld [vmem:[%s3 + $0x1c8] sm:$0xff]
    %v614 = vld [vmem:[%s3 + $0x1d0] sm:$0xff]
    %v615 = vld [vmem:[%s3 + $0x1d8] sm:$0xff]
    %v616 = vld [vmem:[%s3 + $0x1e0] sm:$0xff]
    %v617 = vld [vmem:[%s3 + $0x1e8] sm:$0xff]
    %v618 = vld [vmem:[%s3 + $0x1f0] sm:$0xff]
    %v619 = vld [vmem:[%s3 + $0x1f8] sm:$0xff]
    %v620 = vld [vmem:[%s3 + $0x200] sm:$0xff]
    %v621 = vld [vmem:[%s3 + $0x208] sm:$0xff]
    %v622 = vld [vmem:[%s3 + $0x210] sm:$0xff]
    %v623 = vld [vmem:[%s3 + $0x218] sm:$0xff]
    %v624 = vld [vmem:[%s3 + $0x220] sm:$0xff]
    %v625 = vld [vmem:[%s3 + $0x228] sm:$0xff]
    %v626 = vld [vmem:[%s3 + $0x230] sm:$0xff]
    %v627 = vld [vmem:[%s3 + $0x238] sm:$0xff]
    %v628 = vld [vmem:[%s3 + $0x240] sm:$0xff]
    %v629 = vld [vmem:[%s3 + $0x248] sm:$0xff]
    %v630 = vld [vmem:[%s3 + $0x250] sm:$0xff]
    %v631 = vld [vmem:[%s3 + $0x258] sm:$0xff]
    %v632 = vld [vmem:[%s3 + $0x260] sm:$0xff]
    %v633 = vld [vmem:[%s3 + $0x268] sm:$0xff]
    %v634 = vld [vmem:[%s3 + $0x270] sm:$0xff]
    %v635 = vld [vmem:[%s3 + $0x278] sm:$0xff]
    %v636 = vld [vmem:[%s3 + $0x280] sm:$0xff]
    %v637 = vld [vmem:[%s3 + $0x288] sm:$0xff]
    %v638 = vld [vmem:[%s3 + $0x290] sm:$0xff]
    %v639 = vld [vmem:[%s3 + $0x298] sm:$0xff]
    %v640 = vld [vmem:[%s3 + $0x2a0] sm:$0xff]
    %v641 = vld [vmem:[%s3 + $0x2a8] sm:$0xff]
    %v642 = vld [vmem:[%s3 + $0x2b0] sm:$0xff]
    %v643 = vld [vmem:[%s3 + $0x2b8] sm:$0xff]
    %v644 = vld [vmem:[%s3 + $0x2c0] sm:$0xff]
    %v645 = vld [vmem:[%s3 + $0x2c8] sm:$0xff]
    %v646 = vld [vmem:[%s3 + $0x2d0] sm:$0xff]
    %v647 = vld [vmem:[%s3 + $0x2d8] sm:$0xff]
    %v648 = vld [vmem:[%s3 + $0x2e0] sm:$0xff]
    %v649 = vld [vmem:[%s3 + $0x2e8] sm:$0xff]
    %v650 = vld [vmem:[%s3 + $0x2f0] sm:$0xff]
    %v651 = vld [vmem:[%s3 + $0x2f8] sm:$0xff]
    %v652 = vld [vmem:[%s3 + $0x300] sm:$0xff]
    %v653 = vld [vmem:[%s3 + $0x308] sm:$0xff]
    %v654 = vld [vmem:[%s3 + $0x310] sm:$0xff]
    %v655 = vld [vmem:[%s3 + $0x318] sm:$0xff]
    %v656 = vld [vmem:[%s3 + $0x320] sm:$0xff]
    %v657 = vld [vmem:[%s3 + $0x328] sm:$0xff]
    %v658 = vld [vmem:[%s3 + $0x330] sm:$0xff]
    %v659 = vld [vmem:[%s3 + $0x338] sm:$0xff]
    %v660 = vld [vmem:[%s3 + $0x340] sm:$0xff]
    %v661 = vld [vmem:[%s3 + $0x348] sm:$0xff]
    %v662 = vld [vmem:[%s3 + $0x350] sm:$0xff]
    %v663 = vld [vmem:[%s3 + $0x358] sm:$0xff]
    %v664 = vld [vmem:[%s3 + $0x360] sm:$0xff]
    %v665 = vld [vmem:[%s3 + $0x368] sm:$0xff]
    %v666 = vld [vmem:[%s3 + $0x370] sm:$0xff]
    %v667 = vld [vmem:[%s3 + $0x378] sm:$0xff]
    %v668 = vld [vmem:[%s3 + $0x380] sm:$0xff]
    %v669 = vld [vmem:[%s3 + $0x388] sm:$0xff]
    %v670 = vld [vmem:[%s3 + $0x390] sm:$0xff]
    %v671 = vld [vmem:[%s3 + $0x398] sm:$0xff]
    %v672 = vld [vmem:[%s3 + $0x3a0] sm:$0xff]
    %v673 = vld [vmem:[%s3 + $0x3a8] sm:$0xff]
    %v674 = vld [vmem:[%s3 + $0x3b0] sm:$0xff]
    %v675 = vld [vmem:[%s3 + $0x3b8] sm:$0xff]
    %v676 = vld [vmem:[%s3 + $0x3c0] sm:$0xff]
    %v677 = vld [vmem:[%s3 + $0x3c8] sm:$0xff]
    %v678 = vld [vmem:[%s3 + $0x3d0] sm:$0xff]
    %v679 = vld [vmem:[%s3 + $0x3d8] sm:$0xff]
    %v680 = vld [vmem:[%s3 + $0x3e0] sm:$0xff]
    %v681 = vld [vmem:[%s3 + $0x3e8] sm:$0xff]
    %v682 = vld [vmem:[%s3 + $0x3f0] sm:$0xff]
    %v683 = vld [vmem:[%s3 + $0x3f8] sm:$0xff]
    %v684 = vld [vmem:[%s3 + $0x400] sm:$0xff]
    %v685 = vld [vmem:[%s3 + $0x408] sm:$0xff]
    %v686 = vld [vmem:[%s3 + $0x410] sm:$0xff]
    %v687 = vld [vmem:[%s3 + $0x418] sm:$0xff]
    %v688 = vld [vmem:[%s3 + $0x420] sm:$0xff]
    %v689 = vld [vmem:[%s3 + $0x428] sm:$0xff]
    %v690 = vld [vmem:[%s3 + $0x430] sm:$0xff]
    %v691 = vld [vmem:[%s3 + $0x438] sm:$0xff]
    %v692 = vld [vmem:[%s3 + $0x440] sm:$0xff]
    %v693 = vld [vmem:[%s3 + $0x448] sm:$0xff]
    %v694 = vld [vmem:[%s3 + $0x450] sm:$0xff]
    %v695 = vld [vmem:[%s3 + $0x458] sm:$0xff]
    %v696 = vld [vmem:[%s3 + $0x460] sm:$0xff]
    %v697 = vld [vmem:[%s3 + $0x468] sm:$0xff]
    %v698 = vld [vmem:[%s3 + $0x470] sm:$0xff]
    %v699 = vld [vmem:[%s3 + $0x478] sm:$0xff]
    %v700 = vld [vmem:[%s3 + $0x480] sm:$0xff]
    %v701 = vld [vmem:[%s3 + $0x488] sm:$0xff]
    %v702 = vld [vmem:[%s3 + $0x490] sm:$0xff]
    %v703 = vld [vmem:[%s3 + $0x498] sm:$0xff]
    %v704 = vld [vmem:[%s3 + $0x4a0] sm:$0xff]
    %v705 = vld [vmem:[%s3 + $0x4a8] sm:$0xff]
    %v706 = vld [vmem:[%s3 + $0x4b0] sm:$0xff]
    %v707 = vld [vmem:[%s3 + $0x4b8] sm:$0xff]
    %v708 = vld [vmem:[%s3 + $0x4c0] sm:$0xff]
    %v709 = vld [vmem:[%s3 + $0x4c8] sm:$0xff]
    %v710 = vld [vmem:[%s3 + $0x4d0] sm:$0xff]
    %v711 = vld [vmem:[%s3 + $0x4d8] sm:$0xff]
    %v712 = vld [vmem:[%s3 + $0x4e0] sm:$0xff]
    %v713 = vld [vmem:[%s3 + $0x4e8] sm:$0xff]
    %v714 = vld [vmem:[%s3 + $0x4f0] sm:$0xff]
    %v715 = vld [vmem:[%s3 + $0x4f8] sm:$0xff]
    %v716 = vld [vmem:[%s3 + $0x500] sm:$0xff]
    %v717 = vld [vmem:[%s3 + $0x508] sm:$0xff]
    %v718 = vld [vmem:[%s3 + $0x510] sm:$0xff]
    %v719 = vld [vmem:[%s3 + $0x518] sm:$0xff]
    %v720 = vld [vmem:[%s3 + $0x520] sm:$0xff]
    %v721 = vld [vmem:[%s3 + $0x528] sm:$0xff]
    %v722 = vld [vmem:[%s3 + $0x530] sm:$0xff]
    %v723 = vld [vmem:[%s3 + $0x538] sm:$0xff]
    %v724 = vld [vmem:[%s3 + $0x540] sm:$0xff]
    %v725 = vld [vmem:[%s3 + $0x548] sm:$0xff]
    %v726 = vld [vmem:[%s3 + $0x550] sm:$0xff]
    %v727 = vld [vmem:[%s3 + $0x558] sm:$0xff]
    %v728 = vld [vmem:[%s3 + $0x560] sm:$0xff]
    %v729 = vld [vmem:[%s3 + $0x568] sm:$0xff]
    %v730 = vld [vmem:[%s3 + $0x570] sm:$0xff]
    %v731 = vld [vmem:[%s3 + $0x578] sm:$0xff]
    %v732 = vld [vmem:[%s3 + $0x580] sm:$0xff]
    %v733 = vld [vmem:[%s3 + $0x588] sm:$0xff]
    %v734 = vld [vmem:[%s3 + $0x590] sm:$0xff]
    %v735 = vld [vmem:[%s3 + $0x598] sm:$0xff]
    %v736 = vld [vmem:[%s3 + $0x5a0] sm:$0xff]
    %v737 = vld [vmem:[%s3 + $0x5a8] sm:$0xff]
    %v738 = vld [vmem:[%s3 + $0x5b0] sm:$0xff]
    %v739 = vld [vmem:[%s3 + $0x5b8] sm:$0xff]
    %v740 = vld [vmem:[%s3 + $0x5c0] sm:$0xff]
    %v741 = vld [vmem:[%s3 + $0x5c8] sm:$0xff]
    %v742 = vld [vmem:[%s3 + $0x5d0] sm:$0xff]
    %v743 = vld [vmem:[%s3 + $0x5d8] sm:$0xff]
    %v744 = vld [vmem:[%s3 + $0x5e0] sm:$0xff]
    %v745 = vld [vmem:[%s3 + $0x5e8] sm:$0xff]
    %v746 = vld [vmem:[%s3 + $0x5f0] sm:$0xff]
    %v747 = vld [vmem:[%s3 + $0x5f8] sm:$0xff]
    %v748 = vld [vmem:[%s3 + $0x600] sm:$0xff]
    %v749 = vld [vmem:[%s3 + $0x608] sm:$0xff]
    %v750 = vld [vmem:[%s3 + $0x610] sm:$0xff]
    %v751 = vld [vmem:[%s3 + $0x618] sm:$0xff]
    %v752 = vld [vmem:[%s3 + $0x620] sm:$0xff]
    %v753 = vld [vmem:[%s3 + $0x628] sm:$0xff]
    %v754 = vld [vmem:[%s3 + $0x630] sm:$0xff]
    %v755 = vld [vmem:[%s3 + $0x638] sm:$0xff]
    %v756 = vld [vmem:[%s3 + $0x640] sm:$0xff]
    %v757 = vld [vmem:[%s3 + $0x648] sm:$0xff]
    %v758 = vld [vmem:[%s3 + $0x650] sm:$0xff]
    %v759 = vld [vmem:[%s3 + $0x658] sm:$0xff]
    %v760 = vld [vmem:[%s3 + $0x660] sm:$0xff]
    %v761 = vld [vmem:[%s3 + $0x668] sm:$0xff]
    %v762 = vld [vmem:[%s3 + $0x670] sm:$0xff]
    %v763 = vld [vmem:[%s3 + $0x678] sm:$0xff]
    %v764 = vld [vmem:[%s3 + $0x680] sm:$0xff]
    %v765 = vld [vmem:[%s3 + $0x688] sm:$0xff]
    %v766 = vld [vmem:[%s3 + $0x690] sm:$0xff]
    %v767 = vld [vmem:[%s3 + $0x698] sm:$0xff]
    %v768 = vld [vmem:[%s3 + $0x6a0] sm:$0xff]
    %v769 = vld [vmem:[%s3 + $0x6a8] sm:$0xff]
    %v770 = vld [vmem:[%s3 + $0x6b0] sm:$0xff]
    %v771 = vld [vmem:[%s3 + $0x6b8] sm:$0xff]
    %v772 = vld [vmem:[%s3 + $0x6c0] sm:$0xff]
    %v773 = vld [vmem:[%s3 + $0x6c8] sm:$0xff]
    %v774 = vld [vmem:[%s3 + $0x6d0] sm:$0xff]
    %v775 = vld [vmem:[%s3 + $0x6d8] sm:$0xff]
    %v776 = vld [vmem:[%s3 + $0x6e0] sm:$0xff]
    %v777 = vld [vmem:[%s3 + $0x6e8] sm:$0xff]
    %v778 = vld [vmem:[%s3 + $0x6f0] sm:$0xff]
    %v779 = vld [vmem:[%s3 + $0x6f8] sm:$0xff]
    %v780 = vld [vmem:[%s3 + $0x700] sm:$0xff]
    %v781 = vld [vmem:[%s3 + $0x708] sm:$0xff]
    %v782 = vld [vmem:[%s3 + $0x710] sm:$0xff]
    %v783 = vld [vmem:[%s3 + $0x718] sm:$0xff]
    %v784 = vld [vmem:[%s3 + $0x720] sm:$0xff]
    %v785 = vld [vmem:[%s3 + $0x728] sm:$0xff]
    %v786 = vld [vmem:[%s3 + $0x730] sm:$0xff]
    %v787 = vld [vmem:[%s3 + $0x738] sm:$0xff]
    %v788 = vld [vmem:[%s3 + $0x740] sm:$0xff]
    %v789 = vld [vmem:[%s3 + $0x748] sm:$0xff]
    %v790 = vld [vmem:[%s3 + $0x750] sm:$0xff]
    %v791 = vld [vmem:[%s3 + $0x758] sm:$0xff]
    %v792 = vld [vmem:[%s3 + $0x760] sm:$0xff]
    %v793 = vld [vmem:[%s3 + $0x768] sm:$0xff]
    %v794 = vld [vmem:[%s3 + $0x770] sm:$0xff]
    %v795 = vld [vmem:[%s3 + $0x778] sm:$0xff]
    %v796 = vld [vmem:[%s3 + $0x780] sm:$0xff]
    %v797 = vld [vmem:[%s3 + $0x788] sm:$0xff]
    %v798 = vld [vmem:[%s3 + $0x790] sm:$0xff]
    %v799 = vld [vmem:[%s3 + $0x798] sm:$0xff]
    %v800 = vld [vmem:[%s3 + $0x7a0] sm:$0xff]
    %v801 = vld [vmem:[%s3 + $0x7a8] sm:$0xff]
    %v802 = vld [vmem:[%s3 + $0x7b0] sm:$0xff]
    %v803 = vld [vmem:[%s3 + $0x7b8] sm:$0xff]
    %v804 = vld [vmem:[%s3 + $0x7c0] sm:$0xff]
    %v805 = vld [vmem:[%s3 + $0x7c8] sm:$0xff]
    %v806 = vld [vmem:[%s3 + $0x7d0] sm:$0xff]
    %v807 = vld [vmem:[%s3 + $0x7d8] sm:$0xff]
    %v808 = vld [vmem:[%s3 + $0x7e0] sm:$0xff]
    %v809 = vld [vmem:[%s3 + $0x7e8] sm:$0xff]
    %v810 = vld [vmem:[%s3 + $0x7f0] sm:$0xff]
    %v811 = vld [vmem:[%s3 + $0x7f8] sm:$0xff]
    %v812 = vld [vmem:[%s4] sm:$0xf]
    %v814 = vperm.slane %v812, 0
    %v815 = vperm.slane %v812, 1
    %v816 = vperm.slane %v812, 2
    %v817 = vperm.slane %v812, 3
    %v1078 = vunpack.c.l.b16 %v556
    %v1079 = vunpack.c.h.b16 %v556
    %v1080 = vunpack.c.l.b16 %v557
    %v1081 = vunpack.c.h.b16 %v557
    %v1082 = vunpack.c.l.b16 %v558
    %v1083 = vunpack.c.h.b16 %v558
    %v1084 = vunpack.c.l.b16 %v559
    %v1085 = vunpack.c.h.b16 %v559
    %v1086 = vunpack.c.l.b16 %v560
    %v1087 = vunpack.c.h.b16 %v560
    %v1088 = vunpack.c.l.b16 %v561
    %v1089 = vunpack.c.h.b16 %v561
    %v1090 = vunpack.c.l.b16 %v562
    %v1091 = vunpack.c.h.b16 %v562
    %v1092 = vunpack.c.l.b16 %v563
    %v1093 = vunpack.c.h.b16 %v563
    %v1094 = vunpack.c.l.b16 %v564
    %v1095 = vunpack.c.h.b16 %v564
    %v1096 = vunpack.c.l.b16 %v565
    %v1097 = vunpack.c.h.b16 %v565
    %v1098 = vunpack.c.l.b16 %v566
    %v1099 = vunpack.c.h.b16 %v566
    %v1100 = vunpack.c.l.b16 %v567
    %v1101 = vunpack.c.h.b16 %v567
    %v1102 = vunpack.c.l.b16 %v568
    %v1103 = vunpack.c.h.b16 %v568
    %v1104 = vunpack.c.l.b16 %v569
    %v1105 = vunpack.c.h.b16 %v569
    %v1106 = vunpack.c.l.b16 %v570
    %v1107 = vunpack.c.h.b16 %v570
    %v1108 = vunpack.c.l.b16 %v571
    %v1109 = vunpack.c.h.b16 %v571
    %v1110 = vunpack.c.l.b16 %v572
    %v1111 = vunpack.c.h.b16 %v572
    %v1112 = vunpack.c.l.b16 %v573
    %v1113 = vunpack.c.h.b16 %v573
    %v1114 = vunpack.c.l.b16 %v574
    %v1115 = vunpack.c.h.b16 %v574
    %v1116 = vunpack.c.l.b16 %v575
    %v1117 = vunpack.c.h.b16 %v575
    %v1118 = vunpack.c.l.b16 %v576
    %v1119 = vunpack.c.h.b16 %v576
    %v1120 = vunpack.c.l.b16 %v577
    %v1121 = vunpack.c.h.b16 %v577
    %v1122 = vunpack.c.l.b16 %v578
    %v1123 = vunpack.c.h.b16 %v578
    %v1124 = vunpack.c.l.b16 %v579
    %v1125 = vunpack.c.h.b16 %v579
    %v1126 = vunpack.c.l.b16 %v580
    %v1127 = vunpack.c.h.b16 %v580
    %v1128 = vunpack.c.l.b16 %v581
    %v1129 = vunpack.c.h.b16 %v581
    %v1130 = vunpack.c.l.b16 %v582
    %v1131 = vunpack.c.h.b16 %v582
    %v1132 = vunpack.c.l.b16 %v583
    %v1133 = vunpack.c.h.b16 %v583
    %v1134 = vunpack.c.l.b16 %v584
    %v1135 = vunpack.c.h.b16 %v584
    %v1136 = vunpack.c.l.b16 %v585
    %v1137 = vunpack.c.h.b16 %v585
    %v1138 = vunpack.c.l.b16 %v586
    %v1139 = vunpack.c.h.b16 %v586
    %v1140 = vunpack.c.l.b16 %v587
    %v1141 = vunpack.c.h.b16 %v587
    %v1142 = vunpack.c.l.b16 %v588
    %v1143 = vunpack.c.h.b16 %v588
    %v1144 = vunpack.c.l.b16 %v589
    %v1145 = vunpack.c.h.b16 %v589
    %v1146 = vunpack.c.l.b16 %v590
    %v1147 = vunpack.c.h.b16 %v590
    %v1148 = vunpack.c.l.b16 %v591
    %v1149 = vunpack.c.h.b16 %v591
    %v1150 = vunpack.c.l.b16 %v592
    %v1151 = vunpack.c.h.b16 %v592
    %v1152 = vunpack.c.l.b16 %v593
    %v1153 = vunpack.c.h.b16 %v593
    %v1154 = vunpack.c.l.b16 %v594
    %v1155 = vunpack.c.h.b16 %v594
    %v1156 = vunpack.c.l.b16 %v595
    %v1157 = vunpack.c.h.b16 %v595
    %v1158 = vunpack.c.l.b16 %v596
    %v1159 = vunpack.c.h.b16 %v596
    %v1160 = vunpack.c.l.b16 %v597
    %v1161 = vunpack.c.h.b16 %v597
    %v1162 = vunpack.c.l.b16 %v598
    %v1163 = vunpack.c.h.b16 %v598
    %v1164 = vunpack.c.l.b16 %v599
    %v1165 = vunpack.c.h.b16 %v599
    %v1166 = vunpack.c.l.b16 %v600
    %v1167 = vunpack.c.h.b16 %v600
    %v1168 = vunpack.c.l.b16 %v601
    %v1169 = vunpack.c.h.b16 %v601
    %v1170 = vunpack.c.l.b16 %v602
    %v1171 = vunpack.c.h.b16 %v602
    %v1172 = vunpack.c.l.b16 %v603
    %v1173 = vunpack.c.h.b16 %v603
    %v1174 = vunpack.c.l.b16 %v604
    %v1175 = vunpack.c.h.b16 %v604
    %v1176 = vunpack.c.l.b16 %v605
    %v1177 = vunpack.c.h.b16 %v605
    %v1178 = vunpack.c.l.b16 %v606
    %v1179 = vunpack.c.h.b16 %v606
    %v1180 = vunpack.c.l.b16 %v607
    %v1181 = vunpack.c.h.b16 %v607
    %v1182 = vunpack.c.l.b16 %v608
    %v1183 = vunpack.c.h.b16 %v608
    %v1184 = vunpack.c.l.b16 %v609
    %v1185 = vunpack.c.h.b16 %v609
    %v1186 = vunpack.c.l.b16 %v610
    %v1187 = vunpack.c.h.b16 %v610
    %v1188 = vunpack.c.l.b16 %v611
    %v1189 = vunpack.c.h.b16 %v611
    %v1190 = vunpack.c.l.b16 %v612
    %v1191 = vunpack.c.h.b16 %v612
    %v1192 = vunpack.c.l.b16 %v613
    %v1193 = vunpack.c.h.b16 %v613
    %v1194 = vunpack.c.l.b16 %v614
    %v1195 = vunpack.c.h.b16 %v614
    %v1196 = vunpack.c.l.b16 %v615
    %v1197 = vunpack.c.h.b16 %v615
    %v1198 = vunpack.c.l.b16 %v616
    %v1199 = vunpack.c.h.b16 %v616
    %v1200 = vunpack.c.l.b16 %v617
    %v1201 = vunpack.c.h.b16 %v617
    %v1202 = vunpack.c.l.b16 %v618
    %v1203 = vunpack.c.h.b16 %v618
    %v1204 = vunpack.c.l.b16 %v619
    %v1205 = vunpack.c.h.b16 %v619
    %v1206 = vunpack.c.l.b16 %v620
    %v1207 = vunpack.c.h.b16 %v620
    %v1208 = vunpack.c.l.b16 %v621
    %v1209 = vunpack.c.h.b16 %v621
    %v1210 = vunpack.c.l.b16 %v622
    %v1211 = vunpack.c.h.b16 %v622
    %v1212 = vunpack.c.l.b16 %v623
    %v1213 = vunpack.c.h.b16 %v623
    %v1214 = vunpack.c.l.b16 %v624
    %v1215 = vunpack.c.h.b16 %v624
    %v1216 = vunpack.c.l.b16 %v625
    %v1217 = vunpack.c.h.b16 %v625
    %v1218 = vunpack.c.l.b16 %v626
    %v1219 = vunpack.c.h.b16 %v626
    %v1220 = vunpack.c.l.b16 %v627
    %v1221 = vunpack.c.h.b16 %v627
    %v1222 = vunpack.c.l.b16 %v628
    %v1223 = vunpack.c.h.b16 %v628
    %v1224 = vunpack.c.l.b16 %v629
    %v1225 = vunpack.c.h.b16 %v629
    %v1226 = vunpack.c.l.b16 %v630
    %v1227 = vunpack.c.h.b16 %v630
    %v1228 = vunpack.c.l.b16 %v631
    %v1229 = vunpack.c.h.b16 %v631
    %v1230 = vunpack.c.l.b16 %v632
    %v1231 = vunpack.c.h.b16 %v632
    %v1232 = vunpack.c.l.b16 %v633
    %v1233 = vunpack.c.h.b16 %v633
    %v1234 = vunpack.c.l.b16 %v634
    %v1235 = vunpack.c.h.b16 %v634
    %v1236 = vunpack.c.l.b16 %v635
    %v1237 = vunpack.c.h.b16 %v635
    %v1238 = vunpack.c.l.b16 %v636
    %v1239 = vunpack.c.h.b16 %v636
    %v1240 = vunpack.c.l.b16 %v637
    %v1241 = vunpack.c.h.b16 %v637
    %v1242 = vunpack.c.l.b16 %v638
    %v1243 = vunpack.c.h.b16 %v638
    %v1244 = vunpack.c.l.b16 %v639
    %v1245 = vunpack.c.h.b16 %v639
    %v1246 = vunpack.c.l.b16 %v640
    %v1247 = vunpack.c.h.b16 %v640
    %v1248 = vunpack.c.l.b16 %v641
    %v1249 = vunpack.c.h.b16 %v641
    %v1250 = vunpack.c.l.b16 %v642
    %v1251 = vunpack.c.h.b16 %v642
    %v1252 = vunpack.c.l.b16 %v643
    %v1253 = vunpack.c.h.b16 %v643
    %v1254 = vunpack.c.l.b16 %v644
    %v1255 = vunpack.c.h.b16 %v644
    %v1256 = vunpack.c.l.b16 %v645
    %v1257 = vunpack.c.h.b16 %v645
    %v1258 = vunpack.c.l.b16 %v646
    %v1259 = vunpack.c.h.b16 %v646
    %v1260 = vunpack.c.l.b16 %v647
    %v1261 = vunpack.c.h.b16 %v647
    %v1262 = vunpack.c.l.b16 %v648
    %v1263 = vunpack.c.h.b16 %v648
    %v1264 = vunpack.c.l.b16 %v649
    %v1265 = vunpack.c.h.b16 %v649
    %v1266 = vunpack.c.l.b16 %v650
    %v1267 = vunpack.c.h.b16 %v650
    %v1268 = vunpack.c.l.b16 %v651
    %v1269 = vunpack.c.h.b16 %v651
    %v1270 = vunpack.c.l.b16 %v652
    %v1271 = vunpack.c.h.b16 %v652
    %v1272 = vunpack.c.l.b16 %v653
    %v1273 = vunpack.c.h.b16 %v653
    %v1274 = vunpack.c.l.b16 %v654
    %v1275 = vunpack.c.h.b16 %v654
    %v1276 = vunpack.c.l.b16 %v655
    %v1277 = vunpack.c.h.b16 %v655
    %v1278 = vunpack.c.l.b16 %v656
    %v1279 = vunpack.c.h.b16 %v656
    %v1280 = vunpack.c.l.b16 %v657
    %v1281 = vunpack.c.h.b16 %v657
    %v1282 = vunpack.c.l.b16 %v658
    %v1283 = vunpack.c.h.b16 %v658
    %v1284 = vunpack.c.l.b16 %v659
    %v1285 = vunpack.c.h.b16 %v659
    %v1286 = vunpack.c.l.b16 %v660
    %v1287 = vunpack.c.h.b16 %v660
    %v1288 = vunpack.c.l.b16 %v661
    %v1289 = vunpack.c.h.b16 %v661
    %v1290 = vunpack.c.l.b16 %v662
    %v1291 = vunpack.c.h.b16 %v662
    %v1292 = vunpack.c.l.b16 %v663
    %v1293 = vunpack.c.h.b16 %v663
    %v1294 = vunpack.c.l.b16 %v664
    %v1295 = vunpack.c.h.b16 %v664
    %v1296 = vunpack.c.l.b16 %v665
    %v1297 = vunpack.c.h.b16 %v665
    %v1298 = vunpack.c.l.b16 %v666
    %v1299 = vunpack.c.h.b16 %v666
    %v1300 = vunpack.c.l.b16 %v667
    %v1301 = vunpack.c.h.b16 %v667
    %v1302 = vunpack.c.l.b16 %v668
    %v1303 = vunpack.c.h.b16 %v668
    %v1304 = vunpack.c.l.b16 %v669
    %v1305 = vunpack.c.h.b16 %v669
    %v1306 = vunpack.c.l.b16 %v670
    %v1307 = vunpack.c.h.b16 %v670
    %v1308 = vunpack.c.l.b16 %v671
    %v1309 = vunpack.c.h.b16 %v671
    %v1310 = vunpack.c.l.b16 %v672
    %v1311 = vunpack.c.h.b16 %v672
    %v1312 = vunpack.c.l.b16 %v673
    %v1313 = vunpack.c.h.b16 %v673
    %v1314 = vunpack.c.l.b16 %v674
    %v1315 = vunpack.c.h.b16 %v674
    %v1316 = vunpack.c.l.b16 %v675
    %v1317 = vunpack.c.h.b16 %v675
    %v1318 = vunpack.c.l.b16 %v676
    %v1319 = vunpack.c.h.b16 %v676
    %v1320 = vunpack.c.l.b16 %v677
    %v1321 = vunpack.c.h.b16 %v677
    %v1322 = vunpack.c.l.b16 %v678
    %v1323 = vunpack.c.h.b16 %v678
    %v1324 = vunpack.c.l.b16 %v679
    %v1325 = vunpack.c.h.b16 %v679
    %v1326 = vunpack.c.l.b16 %v680
    %v1327 = vunpack.c.h.b16 %v680
    %v1328 = vunpack.c.l.b16 %v681
    %v1329 = vunpack.c.h.b16 %v681
    %v1330 = vunpack.c.l.b16 %v682
    %v1331 = vunpack.c.h.b16 %v682
    %v1332 = vunpack.c.l.b16 %v683
    %v1333 = vunpack.c.h.b16 %v683
    %v1334 = vunpack.c.l.b16 %v684
    %v1335 = vunpack.c.h.b16 %v684
    %v1336 = vunpack.c.l.b16 %v685
    %v1337 = vunpack.c.h.b16 %v685
    %v1338 = vunpack.c.l.b16 %v686
    %v1339 = vunpack.c.h.b16 %v686
    %v1340 = vunpack.c.l.b16 %v687
    %v1341 = vunpack.c.h.b16 %v687
    %v1342 = vunpack.c.l.b16 %v688
    %v1343 = vunpack.c.h.b16 %v688
    %v1344 = vunpack.c.l.b16 %v689
    %v1345 = vunpack.c.h.b16 %v689
    %v1346 = vunpack.c.l.b16 %v690
    %v1347 = vunpack.c.h.b16 %v690
    %v1348 = vunpack.c.l.b16 %v691
    %v1349 = vunpack.c.h.b16 %v691
    %v1350 = vunpack.c.l.b16 %v692
    %v1351 = vunpack.c.h.b16 %v692
    %v1352 = vunpack.c.l.b16 %v693
    %v1353 = vunpack.c.h.b16 %v693
    %v1354 = vunpack.c.l.b16 %v694
    %v1355 = vunpack.c.h.b16 %v694
    %v1356 = vunpack.c.l.b16 %v695
    %v1357 = vunpack.c.h.b16 %v695
    %v1358 = vunpack.c.l.b16 %v696
    %v1359 = vunpack.c.h.b16 %v696
    %v1360 = vunpack.c.l.b16 %v697
    %v1361 = vunpack.c.h.b16 %v697
    %v1362 = vunpack.c.l.b16 %v698
    %v1363 = vunpack.c.h.b16 %v698
    %v1364 = vunpack.c.l.b16 %v699
    %v1365 = vunpack.c.h.b16 %v699
    %v1366 = vunpack.c.l.b16 %v700
    %v1367 = vunpack.c.h.b16 %v700
    %v1368 = vunpack.c.l.b16 %v701
    %v1369 = vunpack.c.h.b16 %v701
    %v1370 = vunpack.c.l.b16 %v702
    %v1371 = vunpack.c.h.b16 %v702
    %v1372 = vunpack.c.l.b16 %v703
    %v1373 = vunpack.c.h.b16 %v703
    %v1374 = vunpack.c.l.b16 %v704
    %v1375 = vunpack.c.h.b16 %v704
    %v1376 = vunpack.c.l.b16 %v705
    %v1377 = vunpack.c.h.b16 %v705
    %v1378 = vunpack.c.l.b16 %v706
    %v1379 = vunpack.c.h.b16 %v706
    %v1380 = vunpack.c.l.b16 %v707
    %v1381 = vunpack.c.h.b16 %v707
    %v1382 = vunpack.c.l.b16 %v708
    %v1383 = vunpack.c.h.b16 %v708
    %v1384 = vunpack.c.l.b16 %v709
    %v1385 = vunpack.c.h.b16 %v709
    %v1386 = vunpack.c.l.b16 %v710
    %v1387 = vunpack.c.h.b16 %v710
    %v1388 = vunpack.c.l.b16 %v711
    %v1389 = vunpack.c.h.b16 %v711
    %v1390 = vunpack.c.l.b16 %v712
    %v1391 = vunpack.c.h.b16 %v712
    %v1392 = vunpack.c.l.b16 %v713
    %v1393 = vunpack.c.h.b16 %v713
    %v1394 = vunpack.c.l.b16 %v714
    %v1395 = vunpack.c.h.b16 %v714
    %v1396 = vunpack.c.l.b16 %v715
    %v1397 = vunpack.c.h.b16 %v715
    %v1398 = vunpack.c.l.b16 %v716
    %v1399 = vunpack.c.h.b16 %v716
    %v1400 = vunpack.c.l.b16 %v717
    %v1401 = vunpack.c.h.b16 %v717
    %v1402 = vunpack.c.l.b16 %v718
    %v1403 = vunpack.c.h.b16 %v718
    %v1404 = vunpack.c.l.b16 %v719
    %v1405 = vunpack.c.h.b16 %v719
    %v1406 = vunpack.c.l.b16 %v720
    %v1407 = vunpack.c.h.b16 %v720
    %v1408 = vunpack.c.l.b16 %v721
    %v1409 = vunpack.c.h.b16 %v721
    %v1410 = vunpack.c.l.b16 %v722
    %v1411 = vunpack.c.h.b16 %v722
    %v1412 = vunpack.c.l.b16 %v723
    %v1413 = vunpack.c.h.b16 %v723
    %v1414 = vunpack.c.l.b16 %v724
    %v1415 = vunpack.c.h.b16 %v724
    %v1416 = vunpack.c.l.b16 %v725
    %v1417 = vunpack.c.h.b16 %v725
    %v1418 = vunpack.c.l.b16 %v726
    %v1419 = vunpack.c.h.b16 %v726
    %v1420 = vunpack.c.l.b16 %v727
    %v1421 = vunpack.c.h.b16 %v727
    %v1422 = vunpack.c.l.b16 %v728
    %v1423 = vunpack.c.h.b16 %v728
    %v1424 = vunpack.c.l.b16 %v729
    %v1425 = vunpack.c.h.b16 %v729
    %v1426 = vunpack.c.l.b16 %v730
    %v1427 = vunpack.c.h.b16 %v730
    %v1428 = vunpack.c.l.b16 %v731
    %v1429 = vunpack.c.h.b16 %v731
    %v1430 = vunpack.c.l.b16 %v732
    %v1431 = vunpack.c.h.b16 %v732
    %v1432 = vunpack.c.l.b16 %v733
    %v1433 = vunpack.c.h.b16 %v733
    %v1434 = vunpack.c.l.b16 %v734
    %v1435 = vunpack.c.h.b16 %v734
    %v1436 = vunpack.c.l.b16 %v735
    %v1437 = vunpack.c.h.b16 %v735
    %v1438 = vunpack.c.l.b16 %v736
    %v1439 = vunpack.c.h.b16 %v736
    %v1440 = vunpack.c.l.b16 %v737
    %v1441 = vunpack.c.h.b16 %v737
    %v1442 = vunpack.c.l.b16 %v738
    %v1443 = vunpack.c.h.b16 %v738
    %v1444 = vunpack.c.l.b16 %v739
    %v1445 = vunpack.c.h.b16 %v739
    %v1446 = vunpack.c.l.b16 %v740
    %v1447 = vunpack.c.h.b16 %v740
    %v1448 = vunpack.c.l.b16 %v741
    %v1449 = vunpack.c.h.b16 %v741
    %v1450 = vunpack.c.l.b16 %v742
    %v1451 = vunpack.c.h.b16 %v742
    %v1452 = vunpack.c.l.b16 %v743
    %v1453 = vunpack.c.h.b16 %v743
    %v1454 = vunpack.c.l.b16 %v744
    %v1455 = vunpack.c.h.b16 %v744
    %v1456 = vunpack.c.l.b16 %v745
    %v1457 = vunpack.c.h.b16 %v745
    %v1458 = vunpack.c.l.b16 %v746
    %v1459 = vunpack.c.h.b16 %v746
    %v1460 = vunpack.c.l.b16 %v747
    %v1461 = vunpack.c.h.b16 %v747
    %v1462 = vunpack.c.l.b16 %v748
    %v1463 = vunpack.c.h.b16 %v748
    %v1464 = vunpack.c.l.b16 %v749
    %v1465 = vunpack.c.h.b16 %v749
    %v1466 = vunpack.c.l.b16 %v750
    %v1467 = vunpack.c.h.b16 %v750
    %v1468 = vunpack.c.l.b16 %v751
    %v1469 = vunpack.c.h.b16 %v751
    %v1470 = vunpack.c.l.b16 %v752
    %v1471 = vunpack.c.h.b16 %v752
    %v1472 = vunpack.c.l.b16 %v753
    %v1473 = vunpack.c.h.b16 %v753
    %v1474 = vunpack.c.l.b16 %v754
    %v1475 = vunpack.c.h.b16 %v754
    %v1476 = vunpack.c.l.b16 %v755
    %v1477 = vunpack.c.h.b16 %v755
    %v1478 = vunpack.c.l.b16 %v756
    %v1479 = vunpack.c.h.b16 %v756
    %v1480 = vunpack.c.l.b16 %v757
    %v1481 = vunpack.c.h.b16 %v757
    %v1482 = vunpack.c.l.b16 %v758
    %v1483 = vunpack.c.h.b16 %v758
    %v1484 = vunpack.c.l.b16 %v759
    %v1485 = vunpack.c.h.b16 %v759
    %v1486 = vunpack.c.l.b16 %v760
    %v1487 = vunpack.c.h.b16 %v760
    %v1488 = vunpack.c.l.b16 %v761
    %v1489 = vunpack.c.h.b16 %v761
    %v1490 = vunpack.c.l.b16 %v762
    %v1491 = vunpack.c.h.b16 %v762
    %v1492 = vunpack.c.l.b16 %v763
    %v1493 = vunpack.c.h.b16 %v763
    %v1494 = vunpack.c.l.b16 %v764
    %v1495 = vunpack.c.h.b16 %v764
    %v1496 = vunpack.c.l.b16 %v765
    %v1497 = vunpack.c.h.b16 %v765
    %v1498 = vunpack.c.l.b16 %v766
    %v1499 = vunpack.c.h.b16 %v766
    %v1500 = vunpack.c.l.b16 %v767
    %v1501 = vunpack.c.h.b16 %v767
    %v1502 = vunpack.c.l.b16 %v768
    %v1503 = vunpack.c.h.b16 %v768
    %v1504 = vunpack.c.l.b16 %v769
    %v1505 = vunpack.c.h.b16 %v769
    %v1506 = vunpack.c.l.b16 %v770
    %v1507 = vunpack.c.h.b16 %v770
    %v1508 = vunpack.c.l.b16 %v771
    %v1509 = vunpack.c.h.b16 %v771
    %v1510 = vunpack.c.l.b16 %v772
    %v1511 = vunpack.c.h.b16 %v772
    %v1512 = vunpack.c.l.b16 %v773
    %v1513 = vunpack.c.h.b16 %v773
    %v1514 = vunpack.c.l.b16 %v774
    %v1515 = vunpack.c.h.b16 %v774
    %v1516 = vunpack.c.l.b16 %v775
    %v1517 = vunpack.c.h.b16 %v775
    %v1518 = vunpack.c.l.b16 %v776
    %v1519 = vunpack.c.h.b16 %v776
    %v1520 = vunpack.c.l.b16 %v777
    %v1521 = vunpack.c.h.b16 %v777
    %v1522 = vunpack.c.l.b16 %v778
    %v1523 = vunpack.c.h.b16 %v778
    %v1524 = vunpack.c.l.b16 %v779
    %v1525 = vunpack.c.h.b16 %v779
    %v1526 = vunpack.c.l.b16 %v780
    %v1527 = vunpack.c.h.b16 %v780
    %v1528 = vunpack.c.l.b16 %v781
    %v1529 = vunpack.c.h.b16 %v781
    %v1530 = vunpack.c.l.b16 %v782
    %v1531 = vunpack.c.h.b16 %v782
    %v1532 = vunpack.c.l.b16 %v783
    %v1533 = vunpack.c.h.b16 %v783
    %v1534 = vunpack.c.l.b16 %v784
    %v1535 = vunpack.c.h.b16 %v784
    %v1536 = vunpack.c.l.b16 %v785
    %v1537 = vunpack.c.h.b16 %v785
    %v1538 = vunpack.c.l.b16 %v786
    %v1539 = vunpack.c.h.b16 %v786
    %v1540 = vunpack.c.l.b16 %v787
    %v1541 = vunpack.c.h.b16 %v787
    %v1542 = vunpack.c.l.b16 %v788
    %v1543 = vunpack.c.h.b16 %v788
    %v1544 = vunpack.c.l.b16 %v789
    %v1545 = vunpack.c.h.b16 %v789
    %v1546 = vunpack.c.l.b16 %v790
    %v1547 = vunpack.c.h.b16 %v790
    %v1548 = vunpack.c.l.b16 %v791
    %v1549 = vunpack.c.h.b16 %v791
    %v1550 = vunpack.c.l.b16 %v792
    %v1551 = vunpack.c.h.b16 %v792
    %v1552 = vunpack.c.l.b16 %v793
    %v1553 = vunpack.c.h.b16 %v793
    %v1554 = vunpack.c.l.b16 %v794
    %v1555 = vunpack.c.h.b16 %v794
    %v1556 = vunpack.c.l.b16 %v795
    %v1557 = vunpack.c.h.b16 %v795
    %v1558 = vunpack.c.l.b16 %v796
    %v1559 = vunpack.c.h.b16 %v796
    %v1560 = vunpack.c.l.b16 %v797
    %v1561 = vunpack.c.h.b16 %v797
    %v1562 = vunpack.c.l.b16 %v798
    %v1563 = vunpack.c.h.b16 %v798
    %v1564 = vunpack.c.l.b16 %v799
    %v1565 = vunpack.c.h.b16 %v799
    %v1566 = vunpack.c.l.b16 %v800
    %v1567 = vunpack.c.h.b16 %v800
    %v1568 = vunpack.c.l.b16 %v801
    %v1569 = vunpack.c.h.b16 %v801
    %v1570 = vunpack.c.l.b16 %v802
    %v1571 = vunpack.c.h.b16 %v802
    %v1572 = vunpack.c.l.b16 %v803
    %v1573 = vunpack.c.h.b16 %v803
    %v1574 = vunpack.c.l.b16 %v804
    %v1575 = vunpack.c.h.b16 %v804
    %v1576 = vunpack.c.l.b16 %v805
    %v1577 = vunpack.c.h.b16 %v805
    %v1578 = vunpack.c.l.b16 %v806
    %v1579 = vunpack.c.h.b16 %v806
    %v1580 = vunpack.c.l.b16 %v807
    %v1581 = vunpack.c.h.b16 %v807
    %v1582 = vunpack.c.l.b16 %v808
    %v1583 = vunpack.c.h.b16 %v808
    %v1584 = vunpack.c.l.b16 %v809
    %v1585 = vunpack.c.h.b16 %v809
    %v1586 = vunpack.c.l.b16 %v810
    %v1587 = vunpack.c.h.b16 %v810
    %v1588 = vunpack.c.l.b16 %v811
    %v1589 = vunpack.c.h.b16 %v811
    %v1590 = vpack.c.b16 %v1082, %v1078
    %v1591 = vpack.c.b16 %v1083, %v1079
    %v1592 = vpack.c.b16 %v1084, %v1080
    %v1593 = vpack.c.b16 %v1085, %v1081
    %v1594 = vpack.c.b16 %v1090, %v1086
    %v1595 = vpack.c.b16 %v1091, %v1087
    %v1596 = vpack.c.b16 %v1092, %v1088
    %v1597 = vpack.c.b16 %v1093, %v1089
    %v1598 = vpack.c.b16 %v1098, %v1094
    %v1599 = vpack.c.b16 %v1099, %v1095
    %v1600 = vpack.c.b16 %v1100, %v1096
    %v1601 = vpack.c.b16 %v1101, %v1097
    %v1602 = vpack.c.b16 %v1106, %v1102
    %v1603 = vpack.c.b16 %v1107, %v1103
    %v1604 = vpack.c.b16 %v1108, %v1104
    %v1605 = vpack.c.b16 %v1109, %v1105
    %v1606 = vpack.c.b16 %v1114, %v1110
    %v1607 = vpack.c.b16 %v1115, %v1111
    %v1608 = vpack.c.b16 %v1116, %v1112
    %v1609 = vpack.c.b16 %v1117, %v1113
    %v1610 = vpack.c.b16 %v1122, %v1118
    %v1611 = vpack.c.b16 %v1123, %v1119
    %v1612 = vpack.c.b16 %v1124, %v1120
    %v1613 = vpack.c.b16 %v1125, %v1121
    %v1614 = vpack.c.b16 %v1130, %v1126
    %v1615 = vpack.c.b16 %v1131, %v1127
    %v1616 = vpack.c.b16 %v1132, %v1128
    %v1617 = vpack.c.b16 %v1133, %v1129
    %v1618 = vpack.c.b16 %v1138, %v1134
    %v1619 = vpack.c.b16 %v1139, %v1135
    %v1620 = vpack.c.b16 %v1140, %v1136
    %v1621 = vpack.c.b16 %v1141, %v1137
    %v1622 = vpack.c.b16 %v1146, %v1142
    %v1623 = vpack.c.b16 %v1147, %v1143
    %v1624 = vpack.c.b16 %v1148, %v1144
    %v1625 = vpack.c.b16 %v1149, %v1145
    %v1626 = vpack.c.b16 %v1154, %v1150
    %v1627 = vpack.c.b16 %v1155, %v1151
    %v1628 = vpack.c.b16 %v1156, %v1152
    %v1629 = vpack.c.b16 %v1157, %v1153
    %v1630 = vpack.c.b16 %v1162, %v1158
    %v1631 = vpack.c.b16 %v1163, %v1159
    %v1632 = vpack.c.b16 %v1164, %v1160
    %v1633 = vpack.c.b16 %v1165, %v1161
    %v1634 = vpack.c.b16 %v1170, %v1166
    %v1635 = vpack.c.b16 %v1171, %v1167
    %v1636 = vpack.c.b16 %v1172, %v1168
    %v1637 = vpack.c.b16 %v1173, %v1169
    %v1638 = vpack.c.b16 %v1178, %v1174
    %v1639 = vpack.c.b16 %v1179, %v1175
    %v1640 = vpack.c.b16 %v1180, %v1176
    %v1641 = vpack.c.b16 %v1181, %v1177
    %v1642 = vpack.c.b16 %v1186, %v1182
    %v1643 = vpack.c.b16 %v1187, %v1183
    %v1644 = vpack.c.b16 %v1188, %v1184
    %v1645 = vpack.c.b16 %v1189, %v1185
    %v1646 = vpack.c.b16 %v1194, %v1190
    %v1647 = vpack.c.b16 %v1195, %v1191
    %v1648 = vpack.c.b16 %v1196, %v1192
    %v1649 = vpack.c.b16 %v1197, %v1193
    %v1650 = vpack.c.b16 %v1202, %v1198
    %v1651 = vpack.c.b16 %v1203, %v1199
    %v1652 = vpack.c.b16 %v1204, %v1200
    %v1653 = vpack.c.b16 %v1205, %v1201
    %v1654 = vpack.c.b16 %v1210, %v1206
    %v1655 = vpack.c.b16 %v1211, %v1207
    %v1656 = vpack.c.b16 %v1212, %v1208
    %v1657 = vpack.c.b16 %v1213, %v1209
    %v1658 = vpack.c.b16 %v1218, %v1214
    %v1659 = vpack.c.b16 %v1219, %v1215
    %v1660 = vpack.c.b16 %v1220, %v1216
    %v1661 = vpack.c.b16 %v1221, %v1217
    %v1662 = vpack.c.b16 %v1226, %v1222
    %v1663 = vpack.c.b16 %v1227, %v1223
    %v1664 = vpack.c.b16 %v1228, %v1224
    %v1665 = vpack.c.b16 %v1229, %v1225
    %v1666 = vpack.c.b16 %v1234, %v1230
    %v1667 = vpack.c.b16 %v1235, %v1231
    %v1668 = vpack.c.b16 %v1236, %v1232
    %v1669 = vpack.c.b16 %v1237, %v1233
    %v1670 = vpack.c.b16 %v1242, %v1238
    %v1671 = vpack.c.b16 %v1243, %v1239
    %v1672 = vpack.c.b16 %v1244, %v1240
    %v1673 = vpack.c.b16 %v1245, %v1241
    %v1674 = vpack.c.b16 %v1250, %v1246
    %v1675 = vpack.c.b16 %v1251, %v1247
    %v1676 = vpack.c.b16 %v1252, %v1248
    %v1677 = vpack.c.b16 %v1253, %v1249
    %v1678 = vpack.c.b16 %v1258, %v1254
    %v1679 = vpack.c.b16 %v1259, %v1255
    %v1680 = vpack.c.b16 %v1260, %v1256
    %v1681 = vpack.c.b16 %v1261, %v1257
    %v1682 = vpack.c.b16 %v1266, %v1262
    %v1683 = vpack.c.b16 %v1267, %v1263
    %v1684 = vpack.c.b16 %v1268, %v1264
    %v1685 = vpack.c.b16 %v1269, %v1265
    %v1686 = vpack.c.b16 %v1274, %v1270
    %v1687 = vpack.c.b16 %v1275, %v1271
    %v1688 = vpack.c.b16 %v1276, %v1272
    %v1689 = vpack.c.b16 %v1277, %v1273
    %v1690 = vpack.c.b16 %v1282, %v1278
    %v1691 = vpack.c.b16 %v1283, %v1279
    %v1692 = vpack.c.b16 %v1284, %v1280
    %v1693 = vpack.c.b16 %v1285, %v1281
    %v1694 = vpack.c.b16 %v1290, %v1286
    %v1695 = vpack.c.b16 %v1291, %v1287
    %v1696 = vpack.c.b16 %v1292, %v1288
    %v1697 = vpack.c.b16 %v1293, %v1289
    %v1698 = vpack.c.b16 %v1298, %v1294
    %v1699 = vpack.c.b16 %v1299, %v1295
    %v1700 = vpack.c.b16 %v1300, %v1296
    %v1701 = vpack.c.b16 %v1301, %v1297
    %v1702 = vpack.c.b16 %v1306, %v1302
    %v1703 = vpack.c.b16 %v1307, %v1303
    %v1704 = vpack.c.b16 %v1308, %v1304
    %v1705 = vpack.c.b16 %v1309, %v1305
    %v1706 = vpack.c.b16 %v1314, %v1310
    %v1707 = vpack.c.b16 %v1315, %v1311
    %v1708 = vpack.c.b16 %v1316, %v1312
    %v1709 = vpack.c.b16 %v1317, %v1313
    %v1710 = vpack.c.b16 %v1322, %v1318
    %v1711 = vpack.c.b16 %v1323, %v1319
    %v1712 = vpack.c.b16 %v1324, %v1320
    %v1713 = vpack.c.b16 %v1325, %v1321
    %v1714 = vpack.c.b16 %v1330, %v1326
    %v1715 = vpack.c.b16 %v1331, %v1327
    %v1716 = vpack.c.b16 %v1332, %v1328
    %v1717 = vpack.c.b16 %v1333, %v1329
    %v1718 = vpack.c.b16 %v1338, %v1334
    %v1719 = vpack.c.b16 %v1339, %v1335
    %v1720 = vpack.c.b16 %v1340, %v1336
    %v1721 = vpack.c.b16 %v1341, %v1337
    %v1722 = vpack.c.b16 %v1346, %v1342
    %v1723 = vpack.c.b16 %v1347, %v1343
    %v1724 = vpack.c.b16 %v1348, %v1344
    %v1725 = vpack.c.b16 %v1349, %v1345
    %v1726 = vpack.c.b16 %v1354, %v1350
    %v1727 = vpack.c.b16 %v1355, %v1351
    %v1728 = vpack.c.b16 %v1356, %v1352
    %v1729 = vpack.c.b16 %v1357, %v1353
    %v1730 = vpack.c.b16 %v1362, %v1358
    %v1731 = vpack.c.b16 %v1363, %v1359
    %v1732 = vpack.c.b16 %v1364, %v1360
    %v1733 = vpack.c.b16 %v1365, %v1361
    %v1734 = vpack.c.b16 %v1370, %v1366
    %v1735 = vpack.c.b16 %v1371, %v1367
    %v1736 = vpack.c.b16 %v1372, %v1368
    %v1737 = vpack.c.b16 %v1373, %v1369
    %v1738 = vpack.c.b16 %v1378, %v1374
    %v1739 = vpack.c.b16 %v1379, %v1375
    %v1740 = vpack.c.b16 %v1380, %v1376
    %v1741 = vpack.c.b16 %v1381, %v1377
    %v1742 = vpack.c.b16 %v1386, %v1382
    %v1743 = vpack.c.b16 %v1387, %v1383
    %v1744 = vpack.c.b16 %v1388, %v1384
    %v1745 = vpack.c.b16 %v1389, %v1385
    %v1746 = vpack.c.b16 %v1394, %v1390
    %v1747 = vpack.c.b16 %v1395, %v1391
    %v1748 = vpack.c.b16 %v1396, %v1392
    %v1749 = vpack.c.b16 %v1397, %v1393
    %v1750 = vpack.c.b16 %v1402, %v1398
    %v1751 = vpack.c.b16 %v1403, %v1399
    %v1752 = vpack.c.b16 %v1404, %v1400
    %v1753 = vpack.c.b16 %v1405, %v1401
    %v1754 = vpack.c.b16 %v1410, %v1406
    %v1755 = vpack.c.b16 %v1411, %v1407
    %v1756 = vpack.c.b16 %v1412, %v1408
    %v1757 = vpack.c.b16 %v1413, %v1409
    %v1758 = vpack.c.b16 %v1418, %v1414
    %v1759 = vpack.c.b16 %v1419, %v1415
    %v1760 = vpack.c.b16 %v1420, %v1416
    %v1761 = vpack.c.b16 %v1421, %v1417
    %v1762 = vpack.c.b16 %v1426, %v1422
    %v1763 = vpack.c.b16 %v1427, %v1423
    %v1764 = vpack.c.b16 %v1428, %v1424
    %v1765 = vpack.c.b16 %v1429, %v1425
    %v1766 = vpack.c.b16 %v1434, %v1430
    %v1767 = vpack.c.b16 %v1435, %v1431
    %v1768 = vpack.c.b16 %v1436, %v1432
    %v1769 = vpack.c.b16 %v1437, %v1433
    %v1770 = vpack.c.b16 %v1442, %v1438
    %v1771 = vpack.c.b16 %v1443, %v1439
    %v1772 = vpack.c.b16 %v1444, %v1440
    %v1773 = vpack.c.b16 %v1445, %v1441
    %v1774 = vpack.c.b16 %v1450, %v1446
    %v1775 = vpack.c.b16 %v1451, %v1447
    %v1776 = vpack.c.b16 %v1452, %v1448
    %v1777 = vpack.c.b16 %v1453, %v1449
    %v1778 = vpack.c.b16 %v1458, %v1454
    %v1779 = vpack.c.b16 %v1459, %v1455
    %v1780 = vpack.c.b16 %v1460, %v1456
    %v1781 = vpack.c.b16 %v1461, %v1457
    %v1782 = vpack.c.b16 %v1466, %v1462
    %v1783 = vpack.c.b16 %v1467, %v1463
    %v1784 = vpack.c.b16 %v1468, %v1464
    %v1785 = vpack.c.b16 %v1469, %v1465
    %v1786 = vpack.c.b16 %v1474, %v1470
    %v1787 = vpack.c.b16 %v1475, %v1471
    %v1788 = vpack.c.b16 %v1476, %v1472
    %v1789 = vpack.c.b16 %v1477, %v1473
    %v1790 = vpack.c.b16 %v1482, %v1478
    %v1791 = vpack.c.b16 %v1483, %v1479
    %v1792 = vpack.c.b16 %v1484, %v1480
    %v1793 = vpack.c.b16 %v1485, %v1481
    %v1794 = vpack.c.b16 %v1490, %v1486
    %v1795 = vpack.c.b16 %v1491, %v1487
    %v1796 = vpack.c.b16 %v1492, %v1488
    %v1797 = vpack.c.b16 %v1493, %v1489
    %v1798 = vpack.c.b16 %v1498, %v1494
    %v1799 = vpack.c.b16 %v1499, %v1495
    %v1800 = vpack.c.b16 %v1500, %v1496
    %v1801 = vpack.c.b16 %v1501, %v1497
    %v1802 = vpack.c.b16 %v1506, %v1502
    %v1803 = vpack.c.b16 %v1507, %v1503
    %v1804 = vpack.c.b16 %v1508, %v1504
    %v1805 = vpack.c.b16 %v1509, %v1505
    %v1806 = vpack.c.b16 %v1514, %v1510
    %v1807 = vpack.c.b16 %v1515, %v1511
    %v1808 = vpack.c.b16 %v1516, %v1512
    %v1809 = vpack.c.b16 %v1517, %v1513
    %v1810 = vpack.c.b16 %v1522, %v1518
    %v1811 = vpack.c.b16 %v1523, %v1519
    %v1812 = vpack.c.b16 %v1524, %v1520
    %v1813 = vpack.c.b16 %v1525, %v1521
    %v1814 = vpack.c.b16 %v1530, %v1526
    %v1815 = vpack.c.b16 %v1531, %v1527
    %v1816 = vpack.c.b16 %v1532, %v1528
    %v1817 = vpack.c.b16 %v1533, %v1529
    %v1818 = vpack.c.b16 %v1538, %v1534
    %v1819 = vpack.c.b16 %v1539, %v1535
    %v1820 = vpack.c.b16 %v1540, %v1536
    %v1821 = vpack.c.b16 %v1541, %v1537
    %v1822 = vpack.c.b16 %v1546, %v1542
    %v1823 = vpack.c.b16 %v1547, %v1543
    %v1824 = vpack.c.b16 %v1548, %v1544
    %v1825 = vpack.c.b16 %v1549, %v1545
    %v1826 = vpack.c.b16 %v1554, %v1550
    %v1827 = vpack.c.b16 %v1555, %v1551
    %v1828 = vpack.c.b16 %v1556, %v1552
    %v1829 = vpack.c.b16 %v1557, %v1553
    %v1830 = vpack.c.b16 %v1562, %v1558
    %v1831 = vpack.c.b16 %v1563, %v1559
    %v1832 = vpack.c.b16 %v1564, %v1560
    %v1833 = vpack.c.b16 %v1565, %v1561
    %v1834 = vpack.c.b16 %v1570, %v1566
    %v1835 = vpack.c.b16 %v1571, %v1567
    %v1836 = vpack.c.b16 %v1572, %v1568
    %v1837 = vpack.c.b16 %v1573, %v1569
    %v1838 = vpack.c.b16 %v1578, %v1574
    %v1839 = vpack.c.b16 %v1579, %v1575
    %v1840 = vpack.c.b16 %v1580, %v1576
    %v1841 = vpack.c.b16 %v1581, %v1577
    %v1842 = vpack.c.b16 %v1586, %v1582
    %v1843 = vpack.c.b16 %v1587, %v1583
    %v1844 = vpack.c.b16 %v1588, %v1584
    %v1845 = vpack.c.b16 %v1589, %v1585
    %2102 = vmatpush.bf16.msra.mxu0 %v1618
    %2103 = vmatpush.bf16.msra.mxu0 %v1614
    %2104 = vmatpush.bf16.msra.mxu0 %v1610
    %2105 = vmatpush.bf16.msra.mxu0 %v1606
    %2106 = vmatpush.bf16.msra.mxu0 %v1602
    %2107 = vmatpush.bf16.msra.mxu0 %v1598
    %2108 = vmatpush.bf16.msra.mxu0 %v1594
    %2109 = vmatpush.bf16.msra.mxu0 %v1590
    %2110 = vmatmul.bf16.gmra.mxu0 %v548
    %v2111 = vpop.f32.mrf.mxu0
    %v2112 = vadd.f32 %v814, %v2111
    %v2113 = vpop.f32.mrf.mxu0
    %2114 = vdwg.mxu0
    %2115 = vmatpush.bf16.msra.mxu0 %v1650
    %2116 = vmatpush.bf16.msra.mxu0 %v1646
    %2117 = vmatpush.bf16.msra.mxu0 %v1642
    %2118 = vmatpush.bf16.msra.mxu0 %v1638
    %2119 = vmatpush.bf16.msra.mxu0 %v1634
    %2120 = vmatpush.bf16.msra.mxu0 %v1630
    %2121 = vmatpush.bf16.msra.mxu0 %v1626
    %2122 = vmatpush.bf16.msra.mxu0 %v1622
    %2123 = vmatmul.bf16.gmra.mxu0 %v549
    %v2124 = vpop.f32.mrf.mxu0
    %v2125 = vadd.f32 %v2112, %v2124
    %v2126 = vpop.f32.mrf.mxu0
    %2127 = vdwg.mxu0
    %2128 = vmatpush.bf16.msra.mxu0 %v1682
    %2129 = vmatpush.bf16.msra.mxu0 %v1678
    %2130 = vmatpush.bf16.msra.mxu0 %v1674
    %2131 = vmatpush.bf16.msra.mxu0 %v1670
    %2132 = vmatpush.bf16.msra.mxu0 %v1666
    %2133 = vmatpush.bf16.msra.mxu0 %v1662
    %2134 = vmatpush.bf16.msra.mxu0 %v1658
    %2135 = vmatpush.bf16.msra.mxu0 %v1654
    %2136 = vmatmul.bf16.gmra.mxu0 %v550
    %v2137 = vpop.f32.mrf.mxu0
    %v2138 = vadd.f32 %v2125, %v2137
    %v2139 = vpop.f32.mrf.mxu0
    %2140 = vdwg.mxu0
    %2141 = vmatpush.bf16.msra.mxu0 %v1714
    %2142 = vmatpush.bf16.msra.mxu0 %v1710
    %2143 = vmatpush.bf16.msra.mxu0 %v1706
    %2144 = vmatpush.bf16.msra.mxu0 %v1702
    %2145 = vmatpush.bf16.msra.mxu0 %v1698
    %2146 = vmatpush.bf16.msra.mxu0 %v1694
    %2147 = vmatpush.bf16.msra.mxu0 %v1690
    %2148 = vmatpush.bf16.msra.mxu0 %v1686
    %2149 = vmatmul.bf16.gmra.mxu0 %v551
    %v2150 = vpop.f32.mrf.mxu0
    %v2151 = vadd.f32 %v2138, %v2150
    %v2152 = vpop.f32.mrf.mxu0
    %2153 = vdwg.mxu0
    %2154 = vmatpush.bf16.msra.mxu0 %v1746
    %2155 = vmatpush.bf16.msra.mxu0 %v1742
    %2156 = vmatpush.bf16.msra.mxu0 %v1738
    %2157 = vmatpush.bf16.msra.mxu0 %v1734
    %2158 = vmatpush.bf16.msra.mxu0 %v1730
    %2159 = vmatpush.bf16.msra.mxu0 %v1726
    %2160 = vmatpush.bf16.msra.mxu0 %v1722
    %2161 = vmatpush.bf16.msra.mxu0 %v1718
    %2162 = vmatmul.bf16.gmra.mxu0 %v552
    %v2163 = vpop.f32.mrf.mxu0
    %v2164 = vadd.f32 %v2151, %v2163
    %v2165 = vpop.f32.mrf.mxu0
    %2166 = vdwg.mxu0
    %2167 = vmatpush.bf16.msra.mxu0 %v1778
    %2168 = vmatpush.bf16.msra.mxu0 %v1774
    %2169 = vmatpush.bf16.msra.mxu0 %v1770
    %2170 = vmatpush.bf16.msra.mxu0 %v1766
    %2171 = vmatpush.bf16.msra.mxu0 %v1762
    %2172 = vmatpush.bf16.msra.mxu0 %v1758
    %2173 = vmatpush.bf16.msra.mxu0 %v1754
    %2174 = vmatpush.bf16.msra.mxu0 %v1750
    %2175 = vmatmul.bf16.gmra.mxu0 %v553
    %v2176 = vpop.f32.mrf.mxu0
    %v2177 = vadd.f32 %v2164, %v2176
    %v2178 = vpop.f32.mrf.mxu0
    %2179 = vdwg.mxu0
    %2180 = vmatpush.bf16.msra.mxu0 %v1810
    %2181 = vmatpush.bf16.msra.mxu0 %v1806
    %2182 = vmatpush.bf16.msra.mxu0 %v1802
    %2183 = vmatpush.bf16.msra.mxu0 %v1798
    %2184 = vmatpush.bf16.msra.mxu0 %v1794
    %2185 = vmatpush.bf16.msra.mxu0 %v1790
    %2186 = vmatpush.bf16.msra.mxu0 %v1786
    %2187 = vmatpush.bf16.msra.mxu0 %v1782
    %2188 = vmatmul.bf16.gmra.mxu0 %v554
    %v2189 = vpop.f32.mrf.mxu0
    %v2190 = vadd.f32 %v2177, %v2189
    %v2191 = vpop.f32.mrf.mxu0
    %2192 = vdwg.mxu0
    %2193 = vmatpush.bf16.msra.mxu0 %v1842
    %2194 = vmatpush.bf16.msra.mxu0 %v1838
    %2195 = vmatpush.bf16.msra.mxu0 %v1834
    %2196 = vmatpush.bf16.msra.mxu0 %v1830
    %2197 = vmatpush.bf16.msra.mxu0 %v1826
    %2198 = vmatpush.bf16.msra.mxu0 %v1822
    %2199 = vmatpush.bf16.msra.mxu0 %v1818
    %2200 = vmatpush.bf16.msra.mxu0 %v1814
    %2201 = vmatmul.bf16.gmra.mxu0 %v555
    %v2202 = vpop.f32.mrf.mxu0
    %v2203 = vadd.f32 %v2190, %v2202
    %v2204 = vpop.f32.mrf.mxu0
    %2205 = vdwg.mxu0
    %2206 = vmatpush.bf16.msra.mxu0 %v1619
    %2207 = vmatpush.bf16.msra.mxu0 %v1615
    %2208 = vmatpush.bf16.msra.mxu0 %v1611
    %2209 = vmatpush.bf16.msra.mxu0 %v1607
    %2210 = vmatpush.bf16.msra.mxu0 %v1603
    %2211 = vmatpush.bf16.msra.mxu0 %v1599
    %2212 = vmatpush.bf16.msra.mxu0 %v1595
    %2213 = vmatpush.bf16.msra.mxu0 %v1591
    %2214 = vmatmul.bf16.gmra.mxu0 %v548
    %v2215 = vpop.f32.mrf.mxu0
    %v2216 = vadd.f32 %v815, %v2215
    %v2217 = vpop.f32.mrf.mxu0
    %2218 = vdwg.mxu0
    %2219 = vmatpush.bf16.msra.mxu0 %v1651
    %2220 = vmatpush.bf16.msra.mxu0 %v1647
    %2221 = vmatpush.bf16.msra.mxu0 %v1643
    %2222 = vmatpush.bf16.msra.mxu0 %v1639
    %2223 = vmatpush.bf16.msra.mxu0 %v1635
    %2224 = vmatpush.bf16.msra.mxu0 %v1631
    %2225 = vmatpush.bf16.msra.mxu0 %v1627
    %2226 = vmatpush.bf16.msra.mxu0 %v1623
    %2227 = vmatmul.bf16.gmra.mxu0 %v549
    %v2228 = vpop.f32.mrf.mxu0
    %v2229 = vadd.f32 %v2216, %v2228
    %v2230 = vpop.f32.mrf.mxu0
    %2231 = vdwg.mxu0
    %2232 = vmatpush.bf16.msra.mxu0 %v1683
    %2233 = vmatpush.bf16.msra.mxu0 %v1679
    %2234 = vmatpush.bf16.msra.mxu0 %v1675
    %2235 = vmatpush.bf16.msra.mxu0 %v1671
    %2236 = vmatpush.bf16.msra.mxu0 %v1667
    %2237 = vmatpush.bf16.msra.mxu0 %v1663
    %2238 = vmatpush.bf16.msra.mxu0 %v1659
    %2239 = vmatpush.bf16.msra.mxu0 %v1655
    %2240 = vmatmul.bf16.gmra.mxu0 %v550
    %v2241 = vpop.f32.mrf.mxu0
    %v2242 = vadd.f32 %v2229, %v2241
    %v2243 = vpop.f32.mrf.mxu0
    %2244 = vdwg.mxu0
    %2245 = vmatpush.bf16.msra.mxu0 %v1715
    %2246 = vmatpush.bf16.msra.mxu0 %v1711
    %2247 = vmatpush.bf16.msra.mxu0 %v1707
    %2248 = vmatpush.bf16.msra.mxu0 %v1703
    %2249 = vmatpush.bf16.msra.mxu0 %v1699
    %2250 = vmatpush.bf16.msra.mxu0 %v1695
    %2251 = vmatpush.bf16.msra.mxu0 %v1691
    %2252 = vmatpush.bf16.msra.mxu0 %v1687
    %2253 = vmatmul.bf16.gmra.mxu0 %v551
    %v2254 = vpop.f32.mrf.mxu0
    %v2255 = vadd.f32 %v2242, %v2254
    %v2256 = vpop.f32.mrf.mxu0
    %2257 = vdwg.mxu0
    %2258 = vmatpush.bf16.msra.mxu0 %v1747
    %2259 = vmatpush.bf16.msra.mxu0 %v1743
    %2260 = vmatpush.bf16.msra.mxu0 %v1739
    %2261 = vmatpush.bf16.msra.mxu0 %v1735
    %2262 = vmatpush.bf16.msra.mxu0 %v1731
    %2263 = vmatpush.bf16.msra.mxu0 %v1727
    %2264 = vmatpush.bf16.msra.mxu0 %v1723
    %2265 = vmatpush.bf16.msra.mxu0 %v1719
    %2266 = vmatmul.bf16.gmra.mxu0 %v552
    %v2267 = vpop.f32.mrf.mxu0
    %v2268 = vadd.f32 %v2255, %v2267
    %v2269 = vpop.f32.mrf.mxu0
    %2270 = vdwg.mxu0
    %2271 = vmatpush.bf16.msra.mxu0 %v1779
    %2272 = vmatpush.bf16.msra.mxu0 %v1775
    %2273 = vmatpush.bf16.msra.mxu0 %v1771
    %2274 = vmatpush.bf16.msra.mxu0 %v1767
    %2275 = vmatpush.bf16.msra.mxu0 %v1763
    %2276 = vmatpush.bf16.msra.mxu0 %v1759
    %2277 = vmatpush.bf16.msra.mxu0 %v1755
    %2278 = vmatpush.bf16.msra.mxu0 %v1751
    %2279 = vmatmul.bf16.gmra.mxu0 %v553
    %v2280 = vpop.f32.mrf.mxu0
    %v2281 = vadd.f32 %v2268, %v2280
    %v2282 = vpop.f32.mrf.mxu0
    %2283 = vdwg.mxu0
    %2284 = vmatpush.bf16.msra.mxu0 %v1811
    %2285 = vmatpush.bf16.msra.mxu0 %v1807
    %2286 = vmatpush.bf16.msra.mxu0 %v1803
    %2287 = vmatpush.bf16.msra.mxu0 %v1799
    %2288 = vmatpush.bf16.msra.mxu0 %v1795
    %2289 = vmatpush.bf16.msra.mxu0 %v1791
    %2290 = vmatpush.bf16.msra.mxu0 %v1787
    %2291 = vmatpush.bf16.msra.mxu0 %v1783
    %2292 = vmatmul.bf16.gmra.mxu0 %v554
    %v2293 = vpop.f32.mrf.mxu0
    %v2294 = vadd.f32 %v2281, %v2293
    %v2295 = vpop.f32.mrf.mxu0
    %2296 = vdwg.mxu0
    %2297 = vmatpush.bf16.msra.mxu0 %v1843
    %2298 = vmatpush.bf16.msra.mxu0 %v1839
    %2299 = vmatpush.bf16.msra.mxu0 %v1835
    %2300 = vmatpush.bf16.msra.mxu0 %v1831
    %2301 = vmatpush.bf16.msra.mxu0 %v1827
    %2302 = vmatpush.bf16.msra.mxu0 %v1823
    %2303 = vmatpush.bf16.msra.mxu0 %v1819
    %2304 = vmatpush.bf16.msra.mxu0 %v1815
    %2305 = vmatmul.bf16.gmra.mxu0 %v555
    %v2306 = vpop.f32.mrf.mxu0
    %v2307 = vadd.f32 %v2294, %v2306
    %v2308 = vpop.f32.mrf.mxu0
    %2309 = vdwg.mxu0
    %2310 = vmatpush.bf16.msra.mxu0 %v1620
    %2311 = vmatpush.bf16.msra.mxu0 %v1616
    %2312 = vmatpush.bf16.msra.mxu0 %v1612
    %2313 = vmatpush.bf16.msra.mxu0 %v1608
    %2314 = vmatpush.bf16.msra.mxu0 %v1604
    %2315 = vmatpush.bf16.msra.mxu0 %v1600
    %2316 = vmatpush.bf16.msra.mxu0 %v1596
    %2317 = vmatpush.bf16.msra.mxu0 %v1592
    %2318 = vmatmul.bf16.gmra.mxu0 %v548
    %v2319 = vpop.f32.mrf.mxu0
    %v2320 = vadd.f32 %v816, %v2319
    %v2321 = vpop.f32.mrf.mxu0
    %2322 = vdwg.mxu0
    %2323 = vmatpush.bf16.msra.mxu0 %v1652
    %2324 = vmatpush.bf16.msra.mxu0 %v1648
    %2325 = vmatpush.bf16.msra.mxu0 %v1644
    %2326 = vmatpush.bf16.msra.mxu0 %v1640
    %2327 = vmatpush.bf16.msra.mxu0 %v1636
    %2328 = vmatpush.bf16.msra.mxu0 %v1632
    %2329 = vmatpush.bf16.msra.mxu0 %v1628
    %2330 = vmatpush.bf16.msra.mxu0 %v1624
    %2331 = vmatmul.bf16.gmra.mxu0 %v549
    %v2332 = vpop.f32.mrf.mxu0
    %v2333 = vadd.f32 %v2320, %v2332
    %v2334 = vpop.f32.mrf.mxu0
    %2335 = vdwg.mxu0
    %2336 = vmatpush.bf16.msra.mxu0 %v1684
    %2337 = vmatpush.bf16.msra.mxu0 %v1680
    %2338 = vmatpush.bf16.msra.mxu0 %v1676
    %2339 = vmatpush.bf16.msra.mxu0 %v1672
    %2340 = vmatpush.bf16.msra.mxu0 %v1668
    %2341 = vmatpush.bf16.msra.mxu0 %v1664
    %2342 = vmatpush.bf16.msra.mxu0 %v1660
    %2343 = vmatpush.bf16.msra.mxu0 %v1656
    %2344 = vmatmul.bf16.gmra.mxu0 %v550
    %v2345 = vpop.f32.mrf.mxu0
    %v2346 = vadd.f32 %v2333, %v2345
    %v2347 = vpop.f32.mrf.mxu0
    %2348 = vdwg.mxu0
    %2349 = vmatpush.bf16.msra.mxu0 %v1716
    %2350 = vmatpush.bf16.msra.mxu0 %v1712
    %2351 = vmatpush.bf16.msra.mxu0 %v1708
    %2352 = vmatpush.bf16.msra.mxu0 %v1704
    %2353 = vmatpush.bf16.msra.mxu0 %v1700
    %2354 = vmatpush.bf16.msra.mxu0 %v1696
    %2355 = vmatpush.bf16.msra.mxu0 %v1692
    %2356 = vmatpush.bf16.msra.mxu0 %v1688
    %2357 = vmatmul.bf16.gmra.mxu0 %v551
    %v2358 = vpop.f32.mrf.mxu0
    %v2359 = vadd.f32 %v2346, %v2358
    %v2360 = vpop.f32.mrf.mxu0
    %2361 = vdwg.mxu0
    %2362 = vmatpush.bf16.msra.mxu0 %v1748
    %2363 = vmatpush.bf16.msra.mxu0 %v1744
    %2364 = vmatpush.bf16.msra.mxu0 %v1740
    %2365 = vmatpush.bf16.msra.mxu0 %v1736
    %2366 = vmatpush.bf16.msra.mxu0 %v1732
    %2367 = vmatpush.bf16.msra.mxu0 %v1728
    %2368 = vmatpush.bf16.msra.mxu0 %v1724
    %2369 = vmatpush.bf16.msra.mxu0 %v1720
    %2370 = vmatmul.bf16.gmra.mxu0 %v552
    %v2371 = vpop.f32.mrf.mxu0
    %v2372 = vadd.f32 %v2359, %v2371
    %v2373 = vpop.f32.mrf.mxu0
    %2374 = vdwg.mxu0
    %2375 = vmatpush.bf16.msra.mxu0 %v1780
    %2376 = vmatpush.bf16.msra.mxu0 %v1776
    %2377 = vmatpush.bf16.msra.mxu0 %v1772
    %2378 = vmatpush.bf16.msra.mxu0 %v1768
    %2379 = vmatpush.bf16.msra.mxu0 %v1764
    %2380 = vmatpush.bf16.msra.mxu0 %v1760
    %2381 = vmatpush.bf16.msra.mxu0 %v1756
    %2382 = vmatpush.bf16.msra.mxu0 %v1752
    %2383 = vmatmul.bf16.gmra.mxu0 %v553
    %v2384 = vpop.f32.mrf.mxu0
    %v2385 = vadd.f32 %v2372, %v2384
    %v2386 = vpop.f32.mrf.mxu0
    %2387 = vdwg.mxu0
    %2388 = vmatpush.bf16.msra.mxu0 %v1812
    %2389 = vmatpush.bf16.msra.mxu0 %v1808
    %2390 = vmatpush.bf16.msra.mxu0 %v1804
    %2391 = vmatpush.bf16.msra.mxu0 %v1800
    %2392 = vmatpush.bf16.msra.mxu0 %v1796
    %2393 = vmatpush.bf16.msra.mxu0 %v1792
    %2394 = vmatpush.bf16.msra.mxu0 %v1788
    %2395 = vmatpush.bf16.msra.mxu0 %v1784
    %2396 = vmatmul.bf16.gmra.mxu0 %v554
    %v2397 = vpop.f32.mrf.mxu0
    %v2398 = vadd.f32 %v2385, %v2397
    %v2399 = vpop.f32.mrf.mxu0
    %2400 = vdwg.mxu0
    %2401 = vmatpush.bf16.msra.mxu0 %v1844
    %2402 = vmatpush.bf16.msra.mxu0 %v1840
    %2403 = vmatpush.bf16.msra.mxu0 %v1836
    %2404 = vmatpush.bf16.msra.mxu0 %v1832
    %2405 = vmatpush.bf16.msra.mxu0 %v1828
    %2406 = vmatpush.bf16.msra.mxu0 %v1824
    %2407 = vmatpush.bf16.msra.mxu0 %v1820
    %2408 = vmatpush.bf16.msra.mxu0 %v1816
    %2409 = vmatmul.bf16.gmra.mxu0 %v555
    %v2410 = vpop.f32.mrf.mxu0
    %v2411 = vadd.f32 %v2398, %v2410
    %v2412 = vpop.f32.mrf.mxu0
    %2413 = vdwg.mxu0
    %2414 = vmatpush.bf16.msra.mxu0 %v1621
    %2415 = vmatpush.bf16.msra.mxu0 %v1617
    %2416 = vmatpush.bf16.msra.mxu0 %v1613
    %2417 = vmatpush.bf16.msra.mxu0 %v1609
    %2418 = vmatpush.bf16.msra.mxu0 %v1605
    %2419 = vmatpush.bf16.msra.mxu0 %v1601
    %2420 = vmatpush.bf16.msra.mxu0 %v1597
    %2421 = vmatpush.bf16.msra.mxu0 %v1593
    %2422 = vmatmul.bf16.gmra.mxu0 %v548
    %v2423 = vpop.f32.mrf.mxu0
    %v2424 = vadd.f32 %v817, %v2423
    %v2425 = vpop.f32.mrf.mxu0
    %2426 = vdwg.mxu0
    %2427 = vmatpush.bf16.msra.mxu0 %v1653
    %2428 = vmatpush.bf16.msra.mxu0 %v1649
    %2429 = vmatpush.bf16.msra.mxu0 %v1645
    %2430 = vmatpush.bf16.msra.mxu0 %v1641
    %2431 = vmatpush.bf16.msra.mxu0 %v1637
    %2432 = vmatpush.bf16.msra.mxu0 %v1633
    %2433 = vmatpush.bf16.msra.mxu0 %v1629
    %2434 = vmatpush.bf16.msra.mxu0 %v1625
    %2435 = vmatmul.bf16.gmra.mxu0 %v549
    %v2436 = vpop.f32.mrf.mxu0
    %v2437 = vadd.f32 %v2424, %v2436
    %v2438 = vpop.f32.mrf.mxu0
    %2439 = vdwg.mxu0
    %2440 = vmatpush.bf16.msra.mxu0 %v1685
    %2441 = vmatpush.bf16.msra.mxu0 %v1681
    %2442 = vmatpush.bf16.msra.mxu0 %v1677
    %2443 = vmatpush.bf16.msra.mxu0 %v1673
    %2444 = vmatpush.bf16.msra.mxu0 %v1669
    %2445 = vmatpush.bf16.msra.mxu0 %v1665
    %2446 = vmatpush.bf16.msra.mxu0 %v1661
    %2447 = vmatpush.bf16.msra.mxu0 %v1657
    %2448 = vmatmul.bf16.gmra.mxu0 %v550
    %v2449 = vpop.f32.mrf.mxu0
    %v2450 = vadd.f32 %v2437, %v2449
    %v2451 = vpop.f32.mrf.mxu0
    %2452 = vdwg.mxu0
    %2453 = vmatpush.bf16.msra.mxu0 %v1717
    %2454 = vmatpush.bf16.msra.mxu0 %v1713
    %2455 = vmatpush.bf16.msra.mxu0 %v1709
    %2456 = vmatpush.bf16.msra.mxu0 %v1705
    %2457 = vmatpush.bf16.msra.mxu0 %v1701
    %2458 = vmatpush.bf16.msra.mxu0 %v1697
    %2459 = vmatpush.bf16.msra.mxu0 %v1693
    %2460 = vmatpush.bf16.msra.mxu0 %v1689
    %2461 = vmatmul.bf16.gmra.mxu0 %v551
    %v2462 = vpop.f32.mrf.mxu0
    %v2463 = vadd.f32 %v2450, %v2462
    %v2464 = vpop.f32.mrf.mxu0
    %2465 = vdwg.mxu0
    %2466 = vmatpush.bf16.msra.mxu0 %v1749
    %2467 = vmatpush.bf16.msra.mxu0 %v1745
    %2468 = vmatpush.bf16.msra.mxu0 %v1741
    %2469 = vmatpush.bf16.msra.mxu0 %v1737
    %2470 = vmatpush.bf16.msra.mxu0 %v1733
    %2471 = vmatpush.bf16.msra.mxu0 %v1729
    %2472 = vmatpush.bf16.msra.mxu0 %v1725
    %2473 = vmatpush.bf16.msra.mxu0 %v1721
    %2474 = vmatmul.bf16.gmra.mxu0 %v552
    %v2475 = vpop.f32.mrf.mxu0
    %v2476 = vadd.f32 %v2463, %v2475
    %v2477 = vpop.f32.mrf.mxu0
    %2478 = vdwg.mxu0
    %2479 = vmatpush.bf16.msra.mxu0 %v1781
    %2480 = vmatpush.bf16.msra.mxu0 %v1777
    %2481 = vmatpush.bf16.msra.mxu0 %v1773
    %2482 = vmatpush.bf16.msra.mxu0 %v1769
    %2483 = vmatpush.bf16.msra.mxu0 %v1765
    %2484 = vmatpush.bf16.msra.mxu0 %v1761
    %2485 = vmatpush.bf16.msra.mxu0 %v1757
    %2486 = vmatpush.bf16.msra.mxu0 %v1753
    %2487 = vmatmul.bf16.gmra.mxu0 %v553
    %v2488 = vpop.f32.mrf.mxu0
    %v2489 = vadd.f32 %v2476, %v2488
    %v2490 = vpop.f32.mrf.mxu0
    %2491 = vdwg.mxu0
    %2492 = vmatpush.bf16.msra.mxu0 %v1813
    %2493 = vmatpush.bf16.msra.mxu0 %v1809
    %2494 = vmatpush.bf16.msra.mxu0 %v1805
    %2495 = vmatpush.bf16.msra.mxu0 %v1801
    %2496 = vmatpush.bf16.msra.mxu0 %v1797
    %2497 = vmatpush.bf16.msra.mxu0 %v1793
    %2498 = vmatpush.bf16.msra.mxu0 %v1789
    %2499 = vmatpush.bf16.msra.mxu0 %v1785
    %2500 = vmatmul.bf16.gmra.mxu0 %v554
    %v2501 = vpop.f32.mrf.mxu0
    %v2502 = vadd.f32 %v2489, %v2501
    %v2503 = vpop.f32.mrf.mxu0
    %2504 = vdwg.mxu0
    %2505 = vmatpush.bf16.msra.mxu0 %v1845
    %2506 = vmatpush.bf16.msra.mxu0 %v1841
    %2507 = vmatpush.bf16.msra.mxu0 %v1837
    %2508 = vmatpush.bf16.msra.mxu0 %v1833
    %2509 = vmatpush.bf16.msra.mxu0 %v1829
    %2510 = vmatpush.bf16.msra.mxu0 %v1825
    %2511 = vmatpush.bf16.msra.mxu0 %v1821
    %2512 = vmatpush.bf16.msra.mxu0 %v1817
    %2513 = vmatmul.bf16.gmra.mxu0 %v555
    %v2514 = vpop.f32.mrf.mxu0
    %v2515 = vadd.f32 %v2502, %v2514
    %v2516 = vpop.f32.mrf.mxu0
    %2517 = vdwg.mxu0
    %v2518 = vmax.f32 %v2203, 0.0
    %v2519 = vmax.f32 %v2307, 0.0
    %v2520 = vmax.f32 %v2411, 0.0
    %v2521 = vmax.f32 %v2515, 0.0
    %v2522 = vpack.c.bf16 %v2518, %v2518
    %v2523 = vpack.c.bf16 %v2519, %v2519
    %v2524 = vpack.c.bf16 %v2520, %v2520
    %v2525 = vpack.c.bf16 %v2521, %v2521
    %v2526 = vld [vmem:[%s5] sm:$0xff]
    %v2527 = vld [vmem:[%s5 + $0x8] sm:$0xff]
    %v2528 = vld [vmem:[%s5 + $0x10] sm:$0xff]
    %v2529 = vld [vmem:[%s5 + $0x18] sm:$0xff]
    %v2530 = vld [vmem:[%s5 + $0x20] sm:$0xff]
    %v2531 = vld [vmem:[%s5 + $0x28] sm:$0xff]
    %v2532 = vld [vmem:[%s5 + $0x30] sm:$0xff]
    %v2533 = vld [vmem:[%s5 + $0x38] sm:$0xff]
    %v2534 = vld [vmem:[%s5 + $0x40] sm:$0xff]
    %v2535 = vld [vmem:[%s5 + $0x48] sm:$0xff]
    %v2536 = vld [vmem:[%s5 + $0x50] sm:$0xff]
    %v2537 = vld [vmem:[%s5 + $0x58] sm:$0xff]
    %v2538 = vld [vmem:[%s5 + $0x60] sm:$0xff]
    %v2539 = vld [vmem:[%s5 + $0x68] sm:$0xff]
    %v2540 = vld [vmem:[%s5 + $0x70] sm:$0xff]
    %v2541 = vld [vmem:[%s5 + $0x78] sm:$0xff]
    %v2542 = vld [vmem:[%s5 + $0x80] sm:$0xff]
    %v2543 = vld [vmem:[%s5 + $0x88] sm:$0xff]
    %v2544 = vld [vmem:[%s5 + $0x90] sm:$0xff]
    %v2545 = vld [vmem:[%s5 + $0x98] sm:$0xff]
    %v2546 = vld [vmem:[%s5 + $0xa0] sm:$0xff]
    %v2547 = vld [vmem:[%s5 + $0xa8] sm:$0xff]
    %v2548 = vld [vmem:[%s5 + $0xb0] sm:$0xff]
    %v2549 = vld [vmem:[%s5 + $0xb8] sm:$0xff]
    %v2550 = vld [vmem:[%s5 + $0xc0] sm:$0xff]
    %v2551 = vld [vmem:[%s5 + $0xc8] sm:$0xff]
    %v2552 = vld [vmem:[%s5 + $0xd0] sm:$0xff]
    %v2553 = vld [vmem:[%s5 + $0xd8] sm:$0xff]
    %v2554 = vld [vmem:[%s5 + $0xe0] sm:$0xff]
    %v2555 = vld [vmem:[%s5 + $0xe8] sm:$0xff]
    %v2556 = vld [vmem:[%s5 + $0xf0] sm:$0xff]
    %v2557 = vld [vmem:[%s5 + $0xf8] sm:$0xff]
    %v2558 = vld [vmem:[%s5 + $0x100] sm:$0xff]
    %v2559 = vld [vmem:[%s5 + $0x108] sm:$0xff]
    %v2560 = vld [vmem:[%s5 + $0x110] sm:$0xff]
    %v2561 = vld [vmem:[%s5 + $0x118] sm:$0xff]
    %v2562 = vld [vmem:[%s5 + $0x120] sm:$0xff]
    %v2563 = vld [vmem:[%s5 + $0x128] sm:$0xff]
    %v2564 = vld [vmem:[%s5 + $0x130] sm:$0xff]
    %v2565 = vld [vmem:[%s5 + $0x138] sm:$0xff]
    %v2566 = vld [vmem:[%s5 + $0x140] sm:$0xff]
    %v2567 = vld [vmem:[%s5 + $0x148] sm:$0xff]
    %v2568 = vld [vmem:[%s5 + $0x150] sm:$0xff]
    %v2569 = vld [vmem:[%s5 + $0x158] sm:$0xff]
    %v2570 = vld [vmem:[%s5 + $0x160] sm:$0xff]
    %v2571 = vld [vmem:[%s5 + $0x168] sm:$0xff]
    %v2572 = vld [vmem:[%s5 + $0x170] sm:$0xff]
    %v2573 = vld [vmem:[%s5 + $0x178] sm:$0xff]
    %v2574 = vld [vmem:[%s5 + $0x180] sm:$0xff]
    %v2575 = vld [vmem:[%s5 + $0x188] sm:$0xff]
    %v2576 = vld [vmem:[%s5 + $0x190] sm:$0xff]
    %v2577 = vld [vmem:[%s5 + $0x198] sm:$0xff]
    %v2578 = vld [vmem:[%s5 + $0x1a0] sm:$0xff]
    %v2579 = vld [vmem:[%s5 + $0x1a8] sm:$0xff]
    %v2580 = vld [vmem:[%s5 + $0x1b0] sm:$0xff]
    %v2581 = vld [vmem:[%s5 + $0x1b8] sm:$0xff]
    %v2582 = vld [vmem:[%s5 + $0x1c0] sm:$0xff]
    %v2583 = vld [vmem:[%s5 + $0x1c8] sm:$0xff]
    %v2584 = vld [vmem:[%s5 + $0x1d0] sm:$0xff]
    %v2585 = vld [vmem:[%s5 + $0x1d8] sm:$0xff]
    %v2586 = vld [vmem:[%s5 + $0x1e0] sm:$0xff]
    %v2587 = vld [vmem:[%s5 + $0x1e8] sm:$0xff]
    %v2588 = vld [vmem:[%s5 + $0x1f0] sm:$0xff]
    %v2589 = vld [vmem:[%s5 + $0x1f8] sm:$0xff]
    %v2590 = vld [vmem:[%s6] sm:$0x3]
    %v2592 = vperm.slane %v2590, 0
    %v2593 = vperm.slane %v2590, 1
    %v2660 = vunpack.c.l.b16 %v2526
    %v2661 = vunpack.c.h.b16 %v2526
    %v2662 = vunpack.c.l.b16 %v2527
    %v2663 = vunpack.c.h.b16 %v2527
    %v2664 = vunpack.c.l.b16 %v2528
    %v2665 = vunpack.c.h.b16 %v2528
    %v2666 = vunpack.c.l.b16 %v2529
    %v2667 = vunpack.c.h.b16 %v2529
    %v2668 = vunpack.c.l.b16 %v2530
    %v2669 = vunpack.c.h.b16 %v2530
    %v2670 = vunpack.c.l.b16 %v2531
    %v2671 = vunpack.c.h.b16 %v2531
    %v2672 = vunpack.c.l.b16 %v2532
    %v2673 = vunpack.c.h.b16 %v2532
    %v2674 = vunpack.c.l.b16 %v2533
    %v2675 = vunpack.c.h.b16 %v2533
    %v2676 = vunpack.c.l.b16 %v2534
    %v2677 = vunpack.c.h.b16 %v2534
    %v2678 = vunpack.c.l.b16 %v2535
    %v2679 = vunpack.c.h.b16 %v2535
    %v2680 = vunpack.c.l.b16 %v2536
    %v2681 = vunpack.c.h.b16 %v2536
    %v2682 = vunpack.c.l.b16 %v2537
    %v2683 = vunpack.c.h.b16 %v2537
    %v2684 = vunpack.c.l.b16 %v2538
    %v2685 = vunpack.c.h.b16 %v2538
    %v2686 = vunpack.c.l.b16 %v2539
    %v2687 = vunpack.c.h.b16 %v2539
    %v2688 = vunpack.c.l.b16 %v2540
    %v2689 = vunpack.c.h.b16 %v2540
    %v2690 = vunpack.c.l.b16 %v2541
    %v2691 = vunpack.c.h.b16 %v2541
    %v2692 = vunpack.c.l.b16 %v2542
    %v2693 = vunpack.c.h.b16 %v2542
    %v2694 = vunpack.c.l.b16 %v2543
    %v2695 = vunpack.c.h.b16 %v2543
    %v2696 = vunpack.c.l.b16 %v2544
    %v2697 = vunpack.c.h.b16 %v2544
    %v2698 = vunpack.c.l.b16 %v2545
    %v2699 = vunpack.c.h.b16 %v2545
    %v2700 = vunpack.c.l.b16 %v2546
    %v2701 = vunpack.c.h.b16 %v2546
    %v2702 = vunpack.c.l.b16 %v2547
    %v2703 = vunpack.c.h.b16 %v2547
    %v2704 = vunpack.c.l.b16 %v2548
    %v2705 = vunpack.c.h.b16 %v2548
    %v2706 = vunpack.c.l.b16 %v2549
    %v2707 = vunpack.c.h.b16 %v2549
    %v2708 = vunpack.c.l.b16 %v2550
    %v2709 = vunpack.c.h.b16 %v2550
    %v2710 = vunpack.c.l.b16 %v2551
    %v2711 = vunpack.c.h.b16 %v2551
    %v2712 = vunpack.c.l.b16 %v2552
    %v2713 = vunpack.c.h.b16 %v2552
    %v2714 = vunpack.c.l.b16 %v2553
    %v2715 = vunpack.c.h.b16 %v2553
    %v2716 = vunpack.c.l.b16 %v2554
    %v2717 = vunpack.c.h.b16 %v2554
    %v2718 = vunpack.c.l.b16 %v2555
    %v2719 = vunpack.c.h.b16 %v2555
    %v2720 = vunpack.c.l.b16 %v2556
    %v2721 = vunpack.c.h.b16 %v2556
    %v2722 = vunpack.c.l.b16 %v2557
    %v2723 = vunpack.c.h.b16 %v2557
    %v2724 = vunpack.c.l.b16 %v2558
    %v2725 = vunpack.c.h.b16 %v2558
    %v2726 = vunpack.c.l.b16 %v2559
    %v2727 = vunpack.c.h.b16 %v2559
    %v2728 = vunpack.c.l.b16 %v2560
    %v2729 = vunpack.c.h.b16 %v2560
    %v2730 = vunpack.c.l.b16 %v2561
    %v2731 = vunpack.c.h.b16 %v2561
    %v2732 = vunpack.c.l.b16 %v2562
    %v2733 = vunpack.c.h.b16 %v2562
    %v2734 = vunpack.c.l.b16 %v2563
    %v2735 = vunpack.c.h.b16 %v2563
    %v2736 = vunpack.c.l.b16 %v2564
    %v2737 = vunpack.c.h.b16 %v2564
    %v2738 = vunpack.c.l.b16 %v2565
    %v2739 = vunpack.c.h.b16 %v2565
    %v2740 = vunpack.c.l.b16 %v2566
    %v2741 = vunpack.c.h.b16 %v2566
    %v2742 = vunpack.c.l.b16 %v2567
    %v2743 = vunpack.c.h.b16 %v2567
    %v2744 = vunpack.c.l.b16 %v2568
    %v2745 = vunpack.c.h.b16 %v2568
    %v2746 = vunpack.c.l.b16 %v2569
    %v2747 = vunpack.c.h.b16 %v2569
    %v2748 = vunpack.c.l.b16 %v2570
    %v2749 = vunpack.c.h.b16 %v2570
    %v2750 = vunpack.c.l.b16 %v2571
    %v2751 = vunpack.c.h.b16 %v2571
    %v2752 = vunpack.c.l.b16 %v2572
    %v2753 = vunpack.c.h.b16 %v2572
    %v2754 = vunpack.c.l.b16 %v2573
    %v2755 = vunpack.c.h.b16 %v2573
    %v2756 = vunpack.c.l.b16 %v2574
    %v2757 = vunpack.c.h.b16 %v2574
    %v2758 = vunpack.c.l.b16 %v2575
    %v2759 = vunpack.c.h.b16 %v2575
    %v2760 = vunpack.c.l.b16 %v2576
    %v2761 = vunpack.c.h.b16 %v2576
    %v2762 = vunpack.c.l.b16 %v2577
    %v2763 = vunpack.c.h.b16 %v2577
    %v2764 = vunpack.c.l.b16 %v2578
    %v2765 = vunpack.c.h.b16 %v2578
    %v2766 = vunpack.c.l.b16 %v2579
    %v2767 = vunpack.c.h.b16 %v2579
    %v2768 = vunpack.c.l.b16 %v2580
    %v2769 = vunpack.c.h.b16 %v2580
    %v2770 = vunpack.c.l.b16 %v2581
    %v2771 = vunpack.c.h.b16 %v2581
    %v2772 = vunpack.c.l.b16 %v2582
    %v2773 = vunpack.c.h.b16 %v2582
    %v2774 = vunpack.c.l.b16 %v2583
    %v2775 = vunpack.c.h.b16 %v2583
    %v2776 = vunpack.c.l.b16 %v2584
    %v2777 = vunpack.c.h.b16 %v2584
    %v2778 = vunpack.c.l.b16 %v2585
    %v2779 = vunpack.c.h.b16 %v2585
    %v2780 = vunpack.c.l.b16 %v2586
    %v2781 = vunpack.c.h.b16 %v2586
    %v2782 = vunpack.c.l.b16 %v2587
    %v2783 = vunpack.c.h.b16 %v2587
    %v2784 = vunpack.c.l.b16 %v2588
    %v2785 = vunpack.c.h.b16 %v2588
    %v2786 = vunpack.c.l.b16 %v2589
    %v2787 = vunpack.c.h.b16 %v2589
    %v2788 = vpack.c.b16 %v2662, %v2660
    %v2789 = vpack.c.b16 %v2663, %v2661
    %v2790 = vpack.c.b16 %v2666, %v2664
    %v2791 = vpack.c.b16 %v2667, %v2665
    %v2792 = vpack.c.b16 %v2670, %v2668
    %v2793 = vpack.c.b16 %v2671, %v2669
    %v2794 = vpack.c.b16 %v2674, %v2672
    %v2795 = vpack.c.b16 %v2675, %v2673
    %v2796 = vpack.c.b16 %v2678, %v2676
    %v2797 = vpack.c.b16 %v2679, %v2677
    %v2798 = vpack.c.b16 %v2682, %v2680
    %v2799 = vpack.c.b16 %v2683, %v2681
    %v2800 = vpack.c.b16 %v2686, %v2684
    %v2801 = vpack.c.b16 %v2687, %v2685
    %v2802 = vpack.c.b16 %v2690, %v2688
    %v2803 = vpack.c.b16 %v2691, %v2689
    %v2804 = vpack.c.b16 %v2694, %v2692
    %v2805 = vpack.c.b16 %v2695, %v2693
    %v2806 = vpack.c.b16 %v2698, %v2696
    %v2807 = vpack.c.b16 %v2699, %v2697
    %v2808 = vpack.c.b16 %v2702, %v2700
    %v2809 = vpack.c.b16 %v2703, %v2701
    %v2810 = vpack.c.b16 %v2706, %v2704
    %v2811 = vpack.c.b16 %v2707, %v2705
    %v2812 = vpack.c.b16 %v2710, %v2708
    %v2813 = vpack.c.b16 %v2711, %v2709
    %v2814 = vpack.c.b16 %v2714, %v2712
    %v2815 = vpack.c.b16 %v2715, %v2713
    %v2816 = vpack.c.b16 %v2718, %v2716
    %v2817 = vpack.c.b16 %v2719, %v2717
    %v2818 = vpack.c.b16 %v2722, %v2720
    %v2819 = vpack.c.b16 %v2723, %v2721
    %v2820 = vpack.c.b16 %v2726, %v2724
    %v2821 = vpack.c.b16 %v2727, %v2725
    %v2822 = vpack.c.b16 %v2730, %v2728
    %v2823 = vpack.c.b16 %v2731, %v2729
    %v2824 = vpack.c.b16 %v2734, %v2732
    %v2825 = vpack.c.b16 %v2735, %v2733
    %v2826 = vpack.c.b16 %v2738, %v2736
    %v2827 = vpack.c.b16 %v2739, %v2737
    %v2828 = vpack.c.b16 %v2742, %v2740
    %v2829 = vpack.c.b16 %v2743, %v2741
    %v2830 = vpack.c.b16 %v2746, %v2744
    %v2831 = vpack.c.b16 %v2747, %v2745
    %v2832 = vpack.c.b16 %v2750, %v2748
    %v2833 = vpack.c.b16 %v2751, %v2749
    %v2834 = vpack.c.b16 %v2754, %v2752
    %v2835 = vpack.c.b16 %v2755, %v2753
    %v2836 = vpack.c.b16 %v2758, %v2756
    %v2837 = vpack.c.b16 %v2759, %v2757
    %v2838 = vpack.c.b16 %v2762, %v2760
    %v2839 = vpack.c.b16 %v2763, %v2761
    %v2840 = vpack.c.b16 %v2766, %v2764
    %v2841 = vpack.c.b16 %v2767, %v2765
    %v2842 = vpack.c.b16 %v2770, %v2768
    %v2843 = vpack.c.b16 %v2771, %v2769
    %v2844 = vpack.c.b16 %v2774, %v2772
    %v2845 = vpack.c.b16 %v2775, %v2773
    %v2846 = vpack.c.b16 %v2778, %v2776
    %v2847 = vpack.c.b16 %v2779, %v2777
    %v2848 = vpack.c.b16 %v2782, %v2780
    %v2849 = vpack.c.b16 %v2783, %v2781
    %v2850 = vpack.c.b16 %v2786, %v2784
    %v2851 = vpack.c.b16 %v2787, %v2785
    %2916 = vmatpush.bf16.msra.mxu0 %v2802
    %2917 = vmatpush.bf16.msra.mxu0 %v2800
    %2918 = vmatpush.bf16.msra.mxu0 %v2798
    %2919 = vmatpush.bf16.msra.mxu0 %v2796
    %2920 = vmatpush.bf16.msra.mxu0 %v2794
    %2921 = vmatpush.bf16.msra.mxu0 %v2792
    %2922 = vmatpush.bf16.msra.mxu0 %v2790
    %2923 = vmatpush.bf16.msra.mxu0 %v2788
    %2924 = vmatmul.bf16.gmra.mxu0 %v2522
    %v2925 = vpop.f32.mrf.mxu0
    %v2926 = vadd.f32 %v2592, %v2925
    %v2927 = vpop.f32.mrf.mxu0
    %2928 = vdwg.mxu0
    %2929 = vmatpush.bf16.msra.mxu0 %v2818
    %2930 = vmatpush.bf16.msra.mxu0 %v2816
    %2931 = vmatpush.bf16.msra.mxu0 %v2814
    %2932 = vmatpush.bf16.msra.mxu0 %v2812
    %2933 = vmatpush.bf16.msra.mxu0 %v2810
    %2934 = vmatpush.bf16.msra.mxu0 %v2808
    %2935 = vmatpush.bf16.msra.mxu0 %v2806
    %2936 = vmatpush.bf16.msra.mxu0 %v2804
    %2937 = vmatmul.bf16.gmra.mxu0 %v2523
    %v2938 = vpop.f32.mrf.mxu0
    %v2939 = vadd.f32 %v2926, %v2938
    %v2940 = vpop.f32.mrf.mxu0
    %2941 = vdwg.mxu0
    %2942 = vmatpush.bf16.msra.mxu0 %v2834
    %2943 = vmatpush.bf16.msra.mxu0 %v2832
    %2944 = vmatpush.bf16.msra.mxu0 %v2830
    %2945 = vmatpush.bf16.msra.mxu0 %v2828
    %2946 = vmatpush.bf16.msra.mxu0 %v2826
    %2947 = vmatpush.bf16.msra.mxu0 %v2824
    %2948 = vmatpush.bf16.msra.mxu0 %v2822
    %2949 = vmatpush.bf16.msra.mxu0 %v2820
    %2950 = vmatmul.bf16.gmra.mxu0 %v2524
    %v2951 = vpop.f32.mrf.mxu0
    %v2952 = vadd.f32 %v2939, %v2951
    %v2953 = vpop.f32.mrf.mxu0
    %2954 = vdwg.mxu0
    %2955 = vmatpush.bf16.msra.mxu0 %v2850
    %2956 = vmatpush.bf16.msra.mxu0 %v2848
    %2957 = vmatpush.bf16.msra.mxu0 %v2846
    %2958 = vmatpush.bf16.msra.mxu0 %v2844
    %2959 = vmatpush.bf16.msra.mxu0 %v2842
    %2960 = vmatpush.bf16.msra.mxu0 %v2840
    %2961 = vmatpush.bf16.msra.mxu0 %v2838
    %2962 = vmatpush.bf16.msra.mxu0 %v2836
    %2963 = vmatmul.bf16.gmra.mxu0 %v2525
    %v2964 = vpop.f32.mrf.mxu0
    %v2965 = vadd.f32 %v2952, %v2964
    %v2966 = vpop.f32.mrf.mxu0
    %2967 = vdwg.mxu0
    %2968 = vmatpush.bf16.msra.mxu0 %v2803
    %2969 = vmatpush.bf16.msra.mxu0 %v2801
    %2970 = vmatpush.bf16.msra.mxu0 %v2799
    %2971 = vmatpush.bf16.msra.mxu0 %v2797
    %2972 = vmatpush.bf16.msra.mxu0 %v2795
    %2973 = vmatpush.bf16.msra.mxu0 %v2793
    %2974 = vmatpush.bf16.msra.mxu0 %v2791
    %2975 = vmatpush.bf16.msra.mxu0 %v2789
    %2976 = vmatmul.bf16.gmra.mxu0 %v2522
    %v2977 = vpop.f32.mrf.mxu0
    %v2978 = vadd.f32 %v2593, %v2977
    %v2979 = vpop.f32.mrf.mxu0
    %2980 = vdwg.mxu0
    %2981 = vmatpush.bf16.msra.mxu0 %v2819
    %2982 = vmatpush.bf16.msra.mxu0 %v2817
    %2983 = vmatpush.bf16.msra.mxu0 %v2815
    %2984 = vmatpush.bf16.msra.mxu0 %v2813
    %2985 = vmatpush.bf16.msra.mxu0 %v2811
    %2986 = vmatpush.bf16.msra.mxu0 %v2809
    %2987 = vmatpush.bf16.msra.mxu0 %v2807
    %2988 = vmatpush.bf16.msra.mxu0 %v2805
    %2989 = vmatmul.bf16.gmra.mxu0 %v2523
    %v2990 = vpop.f32.mrf.mxu0
    %v2991 = vadd.f32 %v2978, %v2990
    %v2992 = vpop.f32.mrf.mxu0
    %2993 = vdwg.mxu0
    %2994 = vmatpush.bf16.msra.mxu0 %v2835
    %2995 = vmatpush.bf16.msra.mxu0 %v2833
    %2996 = vmatpush.bf16.msra.mxu0 %v2831
    %2997 = vmatpush.bf16.msra.mxu0 %v2829
    %2998 = vmatpush.bf16.msra.mxu0 %v2827
    %2999 = vmatpush.bf16.msra.mxu0 %v2825
    %3000 = vmatpush.bf16.msra.mxu0 %v2823
    %3001 = vmatpush.bf16.msra.mxu0 %v2821
    %3002 = vmatmul.bf16.gmra.mxu0 %v2524
    %v3003 = vpop.f32.mrf.mxu0
    %v3004 = vadd.f32 %v2991, %v3003
    %v3005 = vpop.f32.mrf.mxu0
    %3006 = vdwg.mxu0
    %3007 = vmatpush.bf16.msra.mxu0 %v2851
    %3008 = vmatpush.bf16.msra.mxu0 %v2849
    %3009 = vmatpush.bf16.msra.mxu0 %v2847
    %3010 = vmatpush.bf16.msra.mxu0 %v2845
    %3011 = vmatpush.bf16.msra.mxu0 %v2843
    %3012 = vmatpush.bf16.msra.mxu0 %v2841
    %3013 = vmatpush.bf16.msra.mxu0 %v2839
    %3014 = vmatpush.bf16.msra.mxu0 %v2837
    %3015 = vmatmul.bf16.gmra.mxu0 %v2525
    %v3016 = vpop.f32.mrf.mxu0
    %v3017 = vadd.f32 %v3004, %v3016
    %v3018 = vpop.f32.mrf.mxu0
    %3019 = vdwg.mxu0
    %v3020 = vmax.f32 %v2965, 0.0
    %v3021 = vmax.f32 %v3017, 0.0
    %v3022 = vpack.c.bf16 %v3020, %v3020
    %v3023 = vpack.c.bf16 %v3021, %v3021
    %v3024 = vld [vmem:[%s7] sm:$0xf]
    %v3025 = vld [vmem:[%s7 + $0x4] sm:$0xf]
    %v3026 = vld [vmem:[%s7 + $0x8] sm:$0xf]
    %v3027 = vld [vmem:[%s7 + $0xc] sm:$0xf]
    %v3028 = vld [vmem:[%s7 + $0x10] sm:$0xf]
    %v3029 = vld [vmem:[%s7 + $0x14] sm:$0xf]
    %v3030 = vld [vmem:[%s7 + $0x18] sm:$0xf]
    %v3031 = vld [vmem:[%s7 + $0x1c] sm:$0xf]
    %v3032 = vld [vmem:[%s7 + $0x20] sm:$0xf]
    %v3033 = vld [vmem:[%s7 + $0x24] sm:$0xf]
    %v3034 = vld [vmem:[%s7 + $0x28] sm:$0xf]
    %v3035 = vld [vmem:[%s7 + $0x2c] sm:$0xf]
    %v3036 = vld [vmem:[%s7 + $0x30] sm:$0xf]
    %v3037 = vld [vmem:[%s7 + $0x34] sm:$0xf]
    %v3038 = vld [vmem:[%s7 + $0x38] sm:$0xf]
    %v3039 = vld [vmem:[%s7 + $0x3c] sm:$0xf]
    %v3040 = vld [vmem:[%s7 + $0x40] sm:$0xf]
    %v3041 = vld [vmem:[%s7 + $0x44] sm:$0xf]
    %v3042 = vld [vmem:[%s7 + $0x48] sm:$0xf]
    %v3043 = vld [vmem:[%s7 + $0x4c] sm:$0xf]
    %v3044 = vld [vmem:[%s7 + $0x50] sm:$0xf]
    %v3045 = vld [vmem:[%s7 + $0x54] sm:$0xf]
    %v3046 = vld [vmem:[%s7 + $0x58] sm:$0xf]
    %v3047 = vld [vmem:[%s7 + $0x5c] sm:$0xf]
    %v3048 = vld [vmem:[%s7 + $0x60] sm:$0xf]
    %v3049 = vld [vmem:[%s7 + $0x64] sm:$0xf]
    %v3050 = vld [vmem:[%s7 + $0x68] sm:$0xf]
    %v3051 = vld [vmem:[%s7 + $0x6c] sm:$0xf]
    %v3052 = vld [vmem:[%s7 + $0x70] sm:$0xf]
    %v3053 = vld [vmem:[%s7 + $0x74] sm:$0xf]
    %v3054 = vld [vmem:[%s7 + $0x78] sm:$0xf]
    %v3055 = vld [vmem:[%s7 + $0x7c] sm:$0xf]
    %v3056 = vld [vmem:[%s8] sm:$0x1]
    %v3058 = vperm.slane %v3056, 0
    %v3092 = vunpack.c.l.b16 %v3024
    %v3093 = vunpack.c.l.b16 %v3025
    %v3094 = vunpack.c.l.b16 %v3026
    %v3095 = vunpack.c.l.b16 %v3027
    %v3096 = vunpack.c.l.b16 %v3028
    %v3097 = vunpack.c.l.b16 %v3029
    %v3098 = vunpack.c.l.b16 %v3030
    %v3099 = vunpack.c.l.b16 %v3031
    %v3100 = vunpack.c.l.b16 %v3032
    %v3101 = vunpack.c.l.b16 %v3033
    %v3102 = vunpack.c.l.b16 %v3034
    %v3103 = vunpack.c.l.b16 %v3035
    %v3104 = vunpack.c.l.b16 %v3036
    %v3105 = vunpack.c.l.b16 %v3037
    %v3106 = vunpack.c.l.b16 %v3038
    %v3107 = vunpack.c.l.b16 %v3039
    %v3108 = vunpack.c.l.b16 %v3040
    %v3109 = vunpack.c.l.b16 %v3041
    %v3110 = vunpack.c.l.b16 %v3042
    %v3111 = vunpack.c.l.b16 %v3043
    %v3112 = vunpack.c.l.b16 %v3044
    %v3113 = vunpack.c.l.b16 %v3045
    %v3114 = vunpack.c.l.b16 %v3046
    %v3115 = vunpack.c.l.b16 %v3047
    %v3116 = vunpack.c.l.b16 %v3048
    %v3117 = vunpack.c.l.b16 %v3049
    %v3118 = vunpack.c.l.b16 %v3050
    %v3119 = vunpack.c.l.b16 %v3051
    %v3120 = vunpack.c.l.b16 %v3052
    %v3121 = vunpack.c.l.b16 %v3053
    %v3122 = vunpack.c.l.b16 %v3054
    %v3123 = vunpack.c.l.b16 %v3055
    %v3124 = vpack.c.b16 %v3093, %v3092
    %v3125 = vpack.c.b16 %v3095, %v3094
    %v3126 = vpack.c.b16 %v3097, %v3096
    %v3127 = vpack.c.b16 %v3099, %v3098
    %v3128 = vpack.c.b16 %v3101, %v3100
    %v3129 = vpack.c.b16 %v3103, %v3102
    %v3130 = vpack.c.b16 %v3105, %v3104
    %v3131 = vpack.c.b16 %v3107, %v3106
    %v3132 = vpack.c.b16 %v3109, %v3108
    %v3133 = vpack.c.b16 %v3111, %v3110
    %v3134 = vpack.c.b16 %v3113, %v3112
    %v3135 = vpack.c.b16 %v3115, %v3114
    %v3136 = vpack.c.b16 %v3117, %v3116
    %v3137 = vpack.c.b16 %v3119, %v3118
    %v3138 = vpack.c.b16 %v3121, %v3120
    %v3139 = vpack.c.b16 %v3123, %v3122
    %3156 = vmatpush.bf16.msra.mxu0 %v3131
    %3157 = vmatpush.bf16.msra.mxu0 %v3130
    %3158 = vmatpush.bf16.msra.mxu0 %v3129
    %3159 = vmatpush.bf16.msra.mxu0 %v3128
    %3160 = vmatpush.bf16.msra.mxu0 %v3127
    %3161 = vmatpush.bf16.msra.mxu0 %v3126
    %3162 = vmatpush.bf16.msra.mxu0 %v3125
    %3163 = vmatpush.bf16.msra.mxu0 %v3124
    %3164 = vmatmul.bf16.gmra.mxu0 %v3022
    %v3165 = vpop.f32.mrf.mxu0
    %v3166 = vadd.f32 %v3058, %v3165
    %v3167 = vpop.f32.mrf.mxu0
    %3168 = vdwg.mxu0
    %3169 = vmatpush.bf16.msra.mxu0 %v3139
    %3170 = vmatpush.bf16.msra.mxu0 %v3138
    %3171 = vmatpush.bf16.msra.mxu0 %v3137
    %3172 = vmatpush.bf16.msra.mxu0 %v3136
    %3173 = vmatpush.bf16.msra.mxu0 %v3135
    %3174 = vmatpush.bf16.msra.mxu0 %v3134
    %3175 = vmatpush.bf16.msra.mxu0 %v3133
    %3176 = vmatpush.bf16.msra.mxu0 %v3132
    %3177 = vmatmul.bf16.gmra.mxu0 %v3023
    %v3178 = vpop.f32.mrf.mxu0
    %v3179 = vadd.f32 %v3166, %v3178
    %v3180 = vpop.f32.mrf.mxu0
    %3181 = vdwg.mxu0
    %3182 = vmax.xlane.f32.xlu0 %v3179
    %v3183 = vpop.xlane.xlu0 %3182
    %v3184 = vsub.f32 %v3179, %v3183
    %v3185 = vmul.f32 %v3184, 1.442695
    %v3186 = vpow.pop %v3185
    %3187 = vadd.xlane.f32.xlu0 %v3186
    %v3188 = vpop.xlane.xlu0 %3187
    %v3189 = vlog2.pop %v3188
    %v3190 = vmul.f32 %v3189, 0.6931472
    %v3191 = vsub.f32 %v3184, %v3190
    %3192 = vst [vmem:[#allocation2] sm:$0xff] %v3191
    // Predicated region
    $region38: #{nn_arch_forward.1} parent=1 // pred_check
      _
    $region39: #{nn_arch_forward.1} parent=1 // pred_check_branch
      %3194 = sbr.rel (0) target = $region41
    $region40: #{nn_arch_forward.1} parent=1 // pred_region
      %3196 = vsyncadd [#allocation3], 0
      %s3198 = sshll.u32 [#allocation2], 4
      %s3199 = int_to_ptr.vmem [resolvable:$true] %s3198
      %s3200 = sshll.u32 %s9, 4
      %s3201 = int_to_ptr.hbm [resolvable:$true] %s3200
      %3203 = dma.vmem_to_hbm [thread:$0]  %s3199, 128, %s3201, [#allocation3]
    $region41: #{nn_arch_forward.1} parent=1 // pred_fallthru
      _
    // Predicated region
    $region42: #{nn_arch_forward.1} parent=1 // pred_check
      _
    $region43: #{nn_arch_forward.1} parent=1 // pred_check_branch
      %3205 = sbr.rel (0) target = $region45
    $region44: #{nn_arch_forward.1} parent=1 // pred_region
      %3207 = dma.done [#allocation3], 128
    $region45: #{nn_arch_forward.1} parent=1 // pred_fallthru
      _
    %3208 = vsyncpa [#allocation3], 1

</llo_original>
